<compile_context>
chip_gen: v7x
topology: tpu7x:2x2x1
jax: 0.10.0
libtpu: 0.0.40
codegen_flags: <defaults>
</compile_context>

<pallas_src>
import functools

import jax
import jax.numpy as jnp
from jax.experimental import pallas as pl
from jax.experimental.pallas import tpu as pltpu


# ----------------------------------------------------------------------------
# Fused kernel factory: LSTM stack + final FC, single invocation, no grid.
# ----------------------------------------------------------------------------
def _make_fused_kernel(num_layers, T, B, D, H, O, t_chunk):
    multi_layer = num_layers > 1
    n_chunks = -(-T // t_chunk)  # static

    def kernel(*refs):
        # ---- parse refs: inputs, output, scratch ---------------------------
        x_ref = refs[0]                                   # (B, T, D) batch-first
        pos = 1
        layers = []
        for _ in range(num_layers):
            layers.append((refs[pos], refs[pos + 1], refs[pos + 2]))
            pos += 3                                      # wih (Din,4H), whh (H,4H), bias (1,4H)
        wfc_ref, bfc_ref = refs[pos], refs[pos + 1]       # (H, O), (1, O)
        out_ref = refs[pos + 2]                           # (B, O)
        xproj_scr = refs[pos + 3]                         # (t_chunk, B, 4H) f32
        hseq_scr = refs[pos + 4] if multi_layer else None  # (T, B, H) f32

        h = jnp.zeros((B, H), jnp.float32)
        c = jnp.zeros((B, H), jnp.float32)

        for layer_idx, (wih_ref, whh_ref, b_ref) in enumerate(layers):
            last = layer_idx == num_layers - 1
            mm_dtype = wih_ref.dtype
            d_in = wih_ref.shape[0]

            # zero-init h/c for this layer (PyTorch h0 = c0 = 0)
            h = jnp.zeros((B, H), jnp.float32)
            c = jnp.zeros((B, H), jnp.float32)

            for ck in range(n_chunks):
                t0 = ck * t_chunk
                tc = min(t_chunk, T - t0)

                # -- hoisted fused-gate input projection for this time chunk --
                if layer_idx == 0:
                    # batch-first -> time-major, once per chunk (XLU transpose)
                    x_chunk = jnp.swapaxes(x_ref[:, t0:t0 + tc, :], 0, 1)  # (tc,B,D)
                else:
                    x_chunk = hseq_scr[pl.ds(t0, tc), :, :]                # (tc,B,H)
                x2d = x_chunk.reshape(tc * B, d_in).astype(mm_dtype)
                proj = (
                    jnp.dot(x2d, wih_ref[...],
                            preferred_element_type=jnp.float32)
                    + b_ref[...]
                )                                                           # (tc*B, 4H) f32
                xproj_scr[pl.ds(0, tc), :, :] = proj.reshape(tc, B, 4 * H)

                # -- serial recurrence over this chunk; (h, c) stay in vregs --
                def step(i, carry, t0=t0, last=last, mm_dtype=mm_dtype,
                         whh_ref=whh_ref):
                    h_prev, c_prev = carry
                    z = xproj_scr[i] + jnp.dot(
                        h_prev.astype(mm_dtype), whh_ref[...],
                        preferred_element_type=jnp.float32)                 # (B, 4H)
                    i_g = jax.nn.sigmoid(z[:, 0 * H:1 * H])
                    f_g = jax.nn.sigmoid(z[:, 1 * H:2 * H])
                    g_g = jnp.tanh(z[:, 2 * H:3 * H])
                    o_g = jax.nn.sigmoid(z[:, 3 * H:4 * H])
                    c_new = f_g * c_prev + i_g * g_g
                    h_new = o_g * jnp.tanh(c_new)
                    if not last:
                        hseq_scr[t0 + i] = h_new       # next layer's input (VMEM)
                    return (h_new, c_new)

                h, c = jax.lax.fori_loop(0, tc, step, (h, c),
                                         unroll=min(tc, 8))

        # ---- fused final FC on the last timestep only ------------------------
        out = (
            jnp.dot(h.astype(wfc_ref.dtype), wfc_ref[...],
                    preferred_element_type=jnp.float32)
            + bfc_ref[...]
        )
        out_ref[...] = out.astype(out_ref.dtype)

    return kernel


def _round_up(n, m):
    return ((n + m - 1) // m) * m


# ----------------------------------------------------------------------------
# Wrapper: pad batch to sublane multiple, launch the single fused pallas_call.
# ----------------------------------------------------------------------------
@functools.partial(jax.jit, static_argnames=("t_chunk",))
def prediction_model_forward(x_btd, params, *, t_chunk=64):
    """x_btd: (B, T, input_dim) batch-first (like PyTorch batch_first=True)."""
    B, T, D = x_btd.shape
    H = params["lstm"][0]["whh"].shape[0]
    O = params["fc"]["w_t"].shape[-1]
    L = len(params["lstm"])
    tc = max(1, min(int(t_chunk), T))

    # Pad batch to a sublane multiple (8); padded rows are independent & dropped.
    Bp = max(8, _round_up(B, 8))
    x_p = x_btd.astype(jnp.float32)
    if Bp != B:
        x_p = jnp.pad(x_p, ((0, Bp - B), (0, 0), (0, 0)))

    inputs = [x_p]
    for lp in params["lstm"]:
        inputs += [lp["wih"], lp["whh"], lp["bias"]]
    inputs += [params["fc"]["w_t"], params["fc"]["b"]]

    kernel = _make_fused_kernel(L, T, Bp, D, H, O, tc)
    vmem_spec = pl.BlockSpec(memory_space=pltpu.MemorySpace.VMEM)

    scratch_shapes = [pltpu.VMEM((tc, Bp, 4 * H), jnp.float32)]   # chunked projections
    if L > 1:
        scratch_shapes.append(pltpu.VMEM((T, Bp, H), jnp.float32))  # layer-to-layer hseq

    # ---- VMEM budget: derive from the real resident footprint, clamp to HW ----
    def _nbytes(a):
        return int(a.size) * a.dtype.itemsize

    resident = sum(_nbytes(a) for a in inputs) + Bp * O * 4
    resident += tc * Bp * 4 * H * 4                                  # xproj scratch
    if L > 1:
        resident += T * Bp * H * 4                                   # hseq scratch
    try:
        phys_vmem = int(pltpu.get_tpu_info().vmem_capacity_bytes)
    except Exception:
        phys_vmem = 64 * 1024 * 1024                                 # v7x-safe fallback
    vmem_limit = int(min(phys_vmem - 8 * 1024 * 1024,
                         max(32 * 1024 * 1024, 2 * resident)))

    # ---- advisory cost estimate so XLA schedules around the fused call --------
    flops = 0
    d_in = D
    for _ in range(L):
        flops += 2 * T * Bp * d_in * 4 * H        # hoisted input projection
        flops += 2 * T * Bp * H * 4 * H           # recurrence matmuls
        d_in = H
    flops += 2 * Bp * H * O                       # final FC
    transcendentals = L * T * Bp * 5 * H          # 3 sigmoid + 2 tanh per element
    bytes_accessed = sum(_nbytes(a) for a in inputs) + Bp * O * 4

    out = pl.pallas_call(
        kernel,
        out_shape=jax.ShapeDtypeStruct((Bp, O), jnp.float32),
        in_specs=[vmem_spec] * len(inputs),
        out_specs=vmem_spec,
        scratch_shapes=scratch_shapes,
        compiler_params=pltpu.CompilerParams(vmem_limit_bytes=vmem_limit),
        cost_estimate=pl.CostEstimate(flops=int(flops),
                                      transcendentals=int(transcendentals),
                                      bytes_accessed=int(bytes_accessed)),
    )(*inputs)
    return out[:B]


# ----------------------------------------------------------------------------
# Parameter init (PyTorch-style uniform(-1/sqrt(H), 1/sqrt(H))), fused-gate layout:
#   wih: (D_in, 4H), whh: (H, 4H), bias: (1, 4H); gate column order [i | f | g | o].
# ----------------------------------------------------------------------------
def init_params(key, input_dim, hidden_dim, num_layers, output_dim,
                dtype=jnp.float32):
    H = hidden_dim
    bound = 1.0 / float(hidden_dim) ** 0.5
    params = {"lstm": [], "fc": None}
    for layer in range(num_layers):
        d_in = input_dim if layer == 0 else H
        key, k1, k2, k3, k4 = jax.random.split(key, 5)
        w_ih = jax.random.uniform(k1, (4 * H, d_in), jnp.float32, -bound, bound)
        w_hh = jax.random.uniform(k2, (4 * H, H), jnp.float32, -bound, bound)
        b_ih = jax.random.uniform(k3, (4 * H,), jnp.float32, -bound, bound)
        b_hh = jax.random.uniform(k4, (4 * H,), jnp.float32, -bound, bound)
        params["lstm"].append({
            "wih": jnp.transpose(w_ih).astype(dtype),                 # (d_in, 4H)
            "whh": jnp.transpose(w_hh).astype(dtype),                 # (H, 4H)
            "bias": (b_ih + b_hh).reshape(1, 4 * H).astype(jnp.float32),
        })
    key, k1, k2 = jax.random.split(key, 3)
    w_fc = jax.random.uniform(k1, (output_dim, H), jnp.float32, -bound, bound)
    b_fc = jax.random.uniform(k2, (output_dim,), jnp.float32, -bound, bound)
    params["fc"] = {"w_t": jnp.transpose(w_fc).astype(dtype),          # (H, O)
                    "b": b_fc.reshape(1, output_dim).astype(jnp.float32)}
    return params


# ----------------------------------------------------------------------------
# Pure-JAX reference for the correctness check (same fused-gate layout).
# ----------------------------------------------------------------------------
def reference_forward(x_btd, params):
    B, T, D = x_btd.shape
    h_seq = jnp.transpose(x_btd.astype(jnp.float32), (1, 0, 2))   # (T, B, D)
    for lp in params["lstm"]:
        H = lp["whh"].shape[0]
        wih = lp["wih"].astype(jnp.float32)
        whh = lp["whh"].astype(jnp.float32)
        bias = lp["bias"].astype(jnp.float32)

        def step(carry, x_t, wih=wih, whh=whh, bias=bias, H=H):
            h, c = carry
            z = x_t @ wih + h @ whh + bias
            i_g = jax.nn.sigmoid(z[:, 0 * H:1 * H])
            f_g = jax.nn.sigmoid(z[:, 1 * H:2 * H])
            g_g = jnp.tanh(z[:, 2 * H:3 * H])
            o_g = jax.nn.sigmoid(z[:, 3 * H:4 * H])
            c_new = f_g * c + i_g * g_g
            h_new = o_g * jnp.tanh(c_new)
            return (h_new, c_new), h_new

        init = (jnp.zeros((B, H), jnp.float32), jnp.zeros((B, H), jnp.float32))
        _, h_seq = jax.lax.scan(step, init, h_seq)
    return (h_seq[-1] @ params["fc"]["w_t"].astype(jnp.float32)
            + params["fc"]["b"].astype(jnp.float32))


if __name__ == "__main__":
    # Small shapes consistent with the module's forward.
    B, T = 2, 8
    input_dim, hidden_dim, num_layers, output_dim = 16, 32, 2, 4

    key = jax.random.PRNGKey(0)
    key, xkey, pkey = jax.random.split(key, 3)
    x = jax.random.normal(xkey, (B, T, input_dim), jnp.float32)
    params = init_params(pkey, input_dim, hidden_dim, num_layers, output_dim)

    out = prediction_model_forward(x, params)
    out = jax.block_until_ready(out)
    assert out.shape == (B, output_dim), out.shape

    ref = reference_forward(x, params)
    assert jnp.allclose(out, ref, atol=1e-4, rtol=1e-4), (out, ref)

    print("KERNEL_OK")
</pallas_src>

<mosaic_0001>
module attributes {stable_mosaic.version = 11 : i64} {
  func.func @kernel(%arg0: memref<8x8x16xf32, #tpu.memory_space<vmem>>, %arg1: memref<16x128xf32, #tpu.memory_space<vmem>>, %arg2: memref<32x128xf32, #tpu.memory_space<vmem>>, %arg3: memref<1x128xf32, #tpu.memory_space<vmem>>, %arg4: memref<32x128xf32, #tpu.memory_space<vmem>>, %arg5: memref<32x128xf32, #tpu.memory_space<vmem>>, %arg6: memref<1x128xf32, #tpu.memory_space<vmem>>, %arg7: memref<32x4xf32, #tpu.memory_space<vmem>>, %arg8: memref<1x4xf32, #tpu.memory_space<vmem>>, %arg9: memref<8x4xf32, #tpu.memory_space<vmem>>, %arg10: memref<8x8x128xf32, #tpu.memory_space<vmem>>, %arg11: memref<8x8x32xf32, #tpu.memory_space<vmem>>) attributes {dimension_semantics = [], scalar_prefetch = 0 : i64, scratch_operands = 2 : i64, tpu.core_type = #tpu.core_type<tc>} {
    %cst = arith.constant 0.000000e+00 : f32
    %0 = vector.broadcast %cst : f32 to vector<8x32xf32>
    %cst_0 = arith.constant 0.000000e+00 : f32
    %1 = vector.broadcast %cst_0 : f32 to vector<8x32xf32>
    %c0 = arith.constant 0 : index
    %c0_1 = arith.constant 0 : index
    %c0_2 = arith.constant 0 : index
    %2 = vector.load %arg0[%c0, %c0_1, %c0_2] : memref<8x8x16xf32, #tpu.memory_space<vmem>>, vector<8x8x16xf32>
    %3 = tpu.transpose %2, [1, 0, 2] : vector<8x8x16xf32> -> vector<8x8x16xf32>
    %4 = vector.shape_cast %3 : vector<8x8x16xf32> to vector<64x16xf32>
    %c0_3 = arith.constant 0 : index
    %c0_4 = arith.constant 0 : index
    %5 = vector.load %arg1[%c0_3, %c0_4] : memref<16x128xf32, #tpu.memory_space<vmem>>, vector<16x128xf32>
    %cst_5 = arith.constant dense<0.000000e+00> : vector<64x128xf32>
    %6 = tpu.matmul %4, %5, %cst_5 {dimension_numbers = #tpu.dot_dimension_numbers<[1], [0], [0], [1], [0, 0, 1, 1], [], []>} : vector<64x16xf32>, vector<16x128xf32>, vector<64x128xf32> -> vector<64x128xf32>
    %c0_6 = arith.constant 0 : index
    %c0_7 = arith.constant 0 : index
    %7 = vector.load %arg3[%c0_6, %c0_7] : memref<1x128xf32, #tpu.memory_space<vmem>>, vector<1x128xf32>
    %8 = vector.broadcast %7 : vector<1x128xf32> to vector<64x128xf32>
    %9 = arith.addf %6, %8 : vector<64x128xf32>
    %10 = vector.shape_cast %9 : vector<64x128xf32> to vector<8x8x128xf32>
    %c0_8 = arith.constant 0 : index
    %c0_9 = arith.constant 0 : index
    %c0_10 = arith.constant 0 : index
    %11 = vector.load %arg10[%c0_8, %c0_9, %c0_10] : memref<8x8x128xf32, #tpu.memory_space<vmem>>, vector<8x8x128xf32>
    tpu.vector_store %arg10[%c0_8, %c0_9, %c0_10], %10 {strides = array<i32>} : memref<8x8x128xf32, #tpu.memory_space<vmem>>, vector<8x8x128xf32>,
    %c0_i32 = arith.constant 0 : i32
    %12 = arith.index_cast %c0_i32 : i32 to index
    %c0_11 = arith.constant 0 : index
    %c0_12 = arith.constant 0 : index
    %13 = vector.load %arg10[%12, %c0_11, %c0_12] : memref<8x8x128xf32, #tpu.memory_space<vmem>>, vector<1x8x128xf32>
    %14 = vector.shape_cast %13 : vector<1x8x128xf32> to vector<8x128xf32>
    %c0_13 = arith.constant 0 : index
    %c0_14 = arith.constant 0 : index
    %15 = vector.load %arg2[%c0_13, %c0_14] : memref<32x128xf32, #tpu.memory_space<vmem>>, vector<32x128xf32>
    %cst_15 = arith.constant dense<0.000000e+00> : vector<8x128xf32>
    %16 = tpu.matmul %0, %15, %cst_15 {dimension_numbers = #tpu.dot_dimension_numbers<[1], [0], [0], [1], [0, 0, 1, 1], [], []>} : vector<8x32xf32>, vector<32x128xf32>, vector<8x128xf32> -> vector<8x128xf32>
    %17 = arith.addf %14, %16 : vector<8x128xf32>
    %18 = vector.extract_strided_slice %17 {offsets = [0, 0], sizes = [8, 32], strides = [1, 1]} : vector<8x128xf32> to vector<8x32xf32>
    %19 = arith.negf %18 : vector<8x32xf32>
    %20 = math.exp %19 : vector<8x32xf32>
    %cst_16 = arith.constant 1.000000e+00 : f32
    %21 = vector.broadcast %cst_16 : f32 to vector<8x32xf32>
    %22 = arith.addf %21, %20 : vector<8x32xf32>
    %23 = arith.divf %21, %22 : vector<8x32xf32>
    %24 = vector.extract_strided_slice %17 {offsets = [0, 32], sizes = [8, 32], strides = [1, 1]} : vector<8x128xf32> to vector<8x32xf32>
    %25 = arith.negf %24 : vector<8x32xf32>
    %26 = math.exp %25 : vector<8x32xf32>
    %cst_17 = arith.constant 1.000000e+00 : f32
    %27 = vector.broadcast %cst_17 : f32 to vector<8x32xf32>
    %28 = arith.addf %27, %26 : vector<8x32xf32>
    %29 = arith.divf %27, %28 : vector<8x32xf32>
    %30 = vector.extract_strided_slice %17 {offsets = [0, 64], sizes = [8, 32], strides = [1, 1]} : vector<8x128xf32> to vector<8x32xf32>
    %31 = math.tanh %30 : vector<8x32xf32>
    %32 = vector.extract_strided_slice %17 {offsets = [0, 96], sizes = [8, 32], strides = [1, 1]} : vector<8x128xf32> to vector<8x32xf32>
    %33 = arith.negf %32 : vector<8x32xf32>
    %34 = math.exp %33 : vector<8x32xf32>
    %cst_18 = arith.constant 1.000000e+00 : f32
    %35 = vector.broadcast %cst_18 : f32 to vector<8x32xf32>
    %36 = arith.addf %35, %34 : vector<8x32xf32>
    %37 = arith.divf %35, %36 : vector<8x32xf32>
    %38 = arith.mulf %29, %1 : vector<8x32xf32>
    %39 = arith.mulf %23, %31 : vector<8x32xf32>
    %40 = arith.addf %38, %39 : vector<8x32xf32>
    %41 = math.tanh %40 : vector<8x32xf32>
    %42 = arith.mulf %37, %41 : vector<8x32xf32>
    %c0_i32_19 = arith.constant 0 : i32
    %43 = arith.addi %c0_i32_19, %c0_i32 : i32
    %44 = arith.index_cast %43 : i32 to index
    %c0_20 = arith.constant 0 : index
    %c0_21 = arith.constant 0 : index
    %45 = vector.load %arg11[%44, %c0_20, %c0_21] : memref<8x8x32xf32, #tpu.memory_space<vmem>>, vector<1x8x32xf32>
    %46 = vector.shape_cast %45 : vector<1x8x32xf32> to vector<8x32xf32>
    %47 = vector.shape_cast %42 : vector<8x32xf32> to vector<1x8x32xf32>
    tpu.vector_store %arg11[%44, %c0_20, %c0_21], %47 {strides = array<i32>} : memref<8x8x32xf32, #tpu.memory_space<vmem>>, vector<1x8x32xf32>,
    %c1_i32 = arith.constant 1 : i32
    %48 = arith.index_cast %c1_i32 : i32 to index
    %c0_22 = arith.constant 0 : index
    %c0_23 = arith.constant 0 : index
    %49 = vector.load %arg10[%48, %c0_22, %c0_23] : memref<8x8x128xf32, #tpu.memory_space<vmem>>, vector<1x8x128xf32>
    %50 = vector.shape_cast %49 : vector<1x8x128xf32> to vector<8x128xf32>
    %c0_24 = arith.constant 0 : index
    %c0_25 = arith.constant 0 : index
    %51 = vector.load %arg2[%c0_24, %c0_25] : memref<32x128xf32, #tpu.memory_space<vmem>>, vector<32x128xf32>
    %cst_26 = arith.constant dense<0.000000e+00> : vector<8x128xf32>
    %52 = tpu.matmul %42, %51, %cst_26 {dimension_numbers = #tpu.dot_dimension_numbers<[1], [0], [0], [1], [0, 0, 1, 1], [], []>} : vector<8x32xf32>, vector<32x128xf32>, vector<8x128xf32> -> vector<8x128xf32>
    %53 = arith.addf %50, %52 : vector<8x128xf32>
    %54 = vector.extract_strided_slice %53 {offsets = [0, 0], sizes = [8, 32], strides = [1, 1]} : vector<8x128xf32> to vector<8x32xf32>
    %55 = arith.negf %54 : vector<8x32xf32>
    %56 = math.exp %55 : vector<8x32xf32>
    %cst_27 = arith.constant 1.000000e+00 : f32
    %57 = vector.broadcast %cst_27 : f32 to vector<8x32xf32>
    %58 = arith.addf %57, %56 : vector<8x32xf32>
    %59 = arith.divf %57, %58 : vector<8x32xf32>
    %60 = vector.extract_strided_slice %53 {offsets = [0, 32], sizes = [8, 32], strides = [1, 1]} : vector<8x128xf32> to vector<8x32xf32>
    %61 = arith.negf %60 : vector<8x32xf32>
    %62 = math.exp %61 : vector<8x32xf32>
    %cst_28 = arith.constant 1.000000e+00 : f32
    %63 = vector.broadcast %cst_28 : f32 to vector<8x32xf32>
    %64 = arith.addf %63, %62 : vector<8x32xf32>
    %65 = arith.divf %63, %64 : vector<8x32xf32>
    %66 = vector.extract_strided_slice %53 {offsets = [0, 64], sizes = [8, 32], strides = [1, 1]} : vector<8x128xf32> to vector<8x32xf32>
    %67 = math.tanh %66 : vector<8x32xf32>
    %68 = vector.extract_strided_slice %53 {offsets = [0, 96], sizes = [8, 32], strides = [1, 1]} : vector<8x128xf32> to vector<8x32xf32>
    %69 = arith.negf %68 : vector<8x32xf32>
    %70 = math.exp %69 : vector<8x32xf32>
    %cst_29 = arith.constant 1.000000e+00 : f32
    %71 = vector.broadcast %cst_29 : f32 to vector<8x32xf32>
    %72 = arith.addf %71, %70 : vector<8x32xf32>
    %73 = arith.divf %71, %72 : vector<8x32xf32>
    %74 = arith.mulf %65, %40 : vector<8x32xf32>
    %75 = arith.mulf %59, %67 : vector<8x32xf32>
    %76 = arith.addf %74, %75 : vector<8x32xf32>
    %77 = math.tanh %76 : vector<8x32xf32>
    %78 = arith.mulf %73, %77 : vector<8x32xf32>
    %c0_i32_30 = arith.constant 0 : i32
    %79 = arith.addi %c0_i32_30, %c1_i32 : i32
    %80 = arith.index_cast %79 : i32 to index
    %c0_31 = arith.constant 0 : index
    %c0_32 = arith.constant 0 : index
    %81 = vector.load %arg11[%80, %c0_31, %c0_32] : memref<8x8x32xf32, #tpu.memory_space<vmem>>, vector<1x8x32xf32>
    %82 = vector.shape_cast %81 : vector<1x8x32xf32> to vector<8x32xf32>
    %83 = vector.shape_cast %78 : vector<8x32xf32> to vector<1x8x32xf32>
    tpu.vector_store %arg11[%80, %c0_31, %c0_32], %83 {strides = array<i32>} : memref<8x8x32xf32, #tpu.memory_space<vmem>>, vector<1x8x32xf32>,
    %c2_i32 = arith.constant 2 : i32
    %84 = arith.index_cast %c2_i32 : i32 to index
    %c0_33 = arith.constant 0 : index
    %c0_34 = arith.constant 0 : index
    %85 = vector.load %arg10[%84, %c0_33, %c0_34] : memref<8x8x128xf32, #tpu.memory_space<vmem>>, vector<1x8x128xf32>
    %86 = vector.shape_cast %85 : vector<1x8x128xf32> to vector<8x128xf32>
    %c0_35 = arith.constant 0 : index
    %c0_36 = arith.constant 0 : index
    %87 = vector.load %arg2[%c0_35, %c0_36] : memref<32x128xf32, #tpu.memory_space<vmem>>, vector<32x128xf32>
    %cst_37 = arith.constant dense<0.000000e+00> : vector<8x128xf32>
    %88 = tpu.matmul %78, %87, %cst_37 {dimension_numbers = #tpu.dot_dimension_numbers<[1], [0], [0], [1], [0, 0, 1, 1], [], []>} : vector<8x32xf32>, vector<32x128xf32>, vector<8x128xf32> -> vector<8x128xf32>
    %89 = arith.addf %86, %88 : vector<8x128xf32>
    %90 = vector.extract_strided_slice %89 {offsets = [0, 0], sizes = [8, 32], strides = [1, 1]} : vector<8x128xf32> to vector<8x32xf32>
    %91 = arith.negf %90 : vector<8x32xf32>
    %92 = math.exp %91 : vector<8x32xf32>
    %cst_38 = arith.constant 1.000000e+00 : f32
    %93 = vector.broadcast %cst_38 : f32 to vector<8x32xf32>
    %94 = arith.addf %93, %92 : vector<8x32xf32>
    %95 = arith.divf %93, %94 : vector<8x32xf32>
    %96 = vector.extract_strided_slice %89 {offsets = [0, 32], sizes = [8, 32], strides = [1, 1]} : vector<8x128xf32> to vector<8x32xf32>
    %97 = arith.negf %96 : vector<8x32xf32>
    %98 = math.exp %97 : vector<8x32xf32>
    %cst_39 = arith.constant 1.000000e+00 : f32
    %99 = vector.broadcast %cst_39 : f32 to vector<8x32xf32>
    %100 = arith.addf %99, %98 : vector<8x32xf32>
    %101 = arith.divf %99, %100 : vector<8x32xf32>
    %102 = vector.extract_strided_slice %89 {offsets = [0, 64], sizes = [8, 32], strides = [1, 1]} : vector<8x128xf32> to vector<8x32xf32>
    %103 = math.tanh %102 : vector<8x32xf32>
    %104 = vector.extract_strided_slice %89 {offsets = [0, 96], sizes = [8, 32], strides = [1, 1]} : vector<8x128xf32> to vector<8x32xf32>
    %105 = arith.negf %104 : vector<8x32xf32>
    %106 = math.exp %105 : vector<8x32xf32>
    %cst_40 = arith.constant 1.000000e+00 : f32
    %107 = vector.broadcast %cst_40 : f32 to vector<8x32xf32>
    %108 = arith.addf %107, %106 : vector<8x32xf32>
    %109 = arith.divf %107, %108 : vector<8x32xf32>
    %110 = arith.mulf %101, %76 : vector<8x32xf32>
    %111 = arith.mulf %95, %103 : vector<8x32xf32>
    %112 = arith.addf %110, %111 : vector<8x32xf32>
    %113 = math.tanh %112 : vector<8x32xf32>
    %114 = arith.mulf %109, %113 : vector<8x32xf32>
    %c0_i32_41 = arith.constant 0 : i32
    %115 = arith.addi %c0_i32_41, %c2_i32 : i32
    %116 = arith.index_cast %115 : i32 to index
    %c0_42 = arith.constant 0 : index
    %c0_43 = arith.constant 0 : index
    %117 = vector.load %arg11[%116, %c0_42, %c0_43] : memref<8x8x32xf32, #tpu.memory_space<vmem>>, vector<1x8x32xf32>
    %118 = vector.shape_cast %117 : vector<1x8x32xf32> to vector<8x32xf32>
    %119 = vector.shape_cast %114 : vector<8x32xf32> to vector<1x8x32xf32>
    tpu.vector_store %arg11[%116, %c0_42, %c0_43], %119 {strides = array<i32>} : memref<8x8x32xf32, #tpu.memory_space<vmem>>, vector<1x8x32xf32>,
    %c3_i32 = arith.constant 3 : i32
    %120 = arith.index_cast %c3_i32 : i32 to index
    %c0_44 = arith.constant 0 : index
    %c0_45 = arith.constant 0 : index
    %121 = vector.load %arg10[%120, %c0_44, %c0_45] : memref<8x8x128xf32, #tpu.memory_space<vmem>>, vector<1x8x128xf32>
    %122 = vector.shape_cast %121 : vector<1x8x128xf32> to vector<8x128xf32>
    %c0_46 = arith.constant 0 : index
    %c0_47 = arith.constant 0 : index
    %123 = vector.load %arg2[%c0_46, %c0_47] : memref<32x128xf32, #tpu.memory_space<vmem>>, vector<32x128xf32>
    %cst_48 = arith.constant dense<0.000000e+00> : vector<8x128xf32>
    %124 = tpu.matmul %114, %123, %cst_48 {dimension_numbers = #tpu.dot_dimension_numbers<[1], [0], [0], [1], [0, 0, 1, 1], [], []>} : vector<8x32xf32>, vector<32x128xf32>, vector<8x128xf32> -> vector<8x128xf32>
    %125 = arith.addf %122, %124 : vector<8x128xf32>
    %126 = vector.extract_strided_slice %125 {offsets = [0, 0], sizes = [8, 32], strides = [1, 1]} : vector<8x128xf32> to vector<8x32xf32>
    %127 = arith.negf %126 : vector<8x32xf32>
    %128 = math.exp %127 : vector<8x32xf32>
    %cst_49 = arith.constant 1.000000e+00 : f32
    %129 = vector.broadcast %cst_49 : f32 to vector<8x32xf32>
    %130 = arith.addf %129, %128 : vector<8x32xf32>
    %131 = arith.divf %129, %130 : vector<8x32xf32>
    %132 = vector.extract_strided_slice %125 {offsets = [0, 32], sizes = [8, 32], strides = [1, 1]} : vector<8x128xf32> to vector<8x32xf32>
    %133 = arith.negf %132 : vector<8x32xf32>
    %134 = math.exp %133 : vector<8x32xf32>
    %cst_50 = arith.constant 1.000000e+00 : f32
    %135 = vector.broadcast %cst_50 : f32 to vector<8x32xf32>
    %136 = arith.addf %135, %134 : vector<8x32xf32>
    %137 = arith.divf %135, %136 : vector<8x32xf32>
    %138 = vector.extract_strided_slice %125 {offsets = [0, 64], sizes = [8, 32], strides = [1, 1]} : vector<8x128xf32> to vector<8x32xf32>
    %139 = math.tanh %138 : vector<8x32xf32>
    %140 = vector.extract_strided_slice %125 {offsets = [0, 96], sizes = [8, 32], strides = [1, 1]} : vector<8x128xf32> to vector<8x32xf32>
    %141 = arith.negf %140 : vector<8x32xf32>
    %142 = math.exp %141 : vector<8x32xf32>
    %cst_51 = arith.constant 1.000000e+00 : f32
    %143 = vector.broadcast %cst_51 : f32 to vector<8x32xf32>
    %144 = arith.addf %143, %142 : vector<8x32xf32>
    %145 = arith.divf %143, %144 : vector<8x32xf32>
    %146 = arith.mulf %137, %112 : vector<8x32xf32>
    %147 = arith.mulf %131, %139 : vector<8x32xf32>
    %148 = arith.addf %146, %147 : vector<8x32xf32>
    %149 = math.tanh %148 : vector<8x32xf32>
    %150 = arith.mulf %145, %149 : vector<8x32xf32>
    %c0_i32_52 = arith.constant 0 : i32
    %151 = arith.addi %c0_i32_52, %c3_i32 : i32
    %152 = arith.index_cast %151 : i32 to index
    %c0_53 = arith.constant 0 : index
    %c0_54 = arith.constant 0 : index
    %153 = vector.load %arg11[%152, %c0_53, %c0_54] : memref<8x8x32xf32, #tpu.memory_space<vmem>>, vector<1x8x32xf32>
    %154 = vector.shape_cast %153 : vector<1x8x32xf32> to vector<8x32xf32>
    %155 = vector.shape_cast %150 : vector<8x32xf32> to vector<1x8x32xf32>
    tpu.vector_store %arg11[%152, %c0_53, %c0_54], %155 {strides = array<i32>} : memref<8x8x32xf32, #tpu.memory_space<vmem>>, vector<1x8x32xf32>,
    %c4_i32 = arith.constant 4 : i32
    %156 = arith.index_cast %c4_i32 : i32 to index
    %c0_55 = arith.constant 0 : index
    %c0_56 = arith.constant 0 : index
    %157 = vector.load %arg10[%156, %c0_55, %c0_56] : memref<8x8x128xf32, #tpu.memory_space<vmem>>, vector<1x8x128xf32>
    %158 = vector.shape_cast %157 : vector<1x8x128xf32> to vector<8x128xf32>
    %c0_57 = arith.constant 0 : index
    %c0_58 = arith.constant 0 : index
    %159 = vector.load %arg2[%c0_57, %c0_58] : memref<32x128xf32, #tpu.memory_space<vmem>>, vector<32x128xf32>
    %cst_59 = arith.constant dense<0.000000e+00> : vector<8x128xf32>
    %160 = tpu.matmul %150, %159, %cst_59 {dimension_numbers = #tpu.dot_dimension_numbers<[1], [0], [0], [1], [0, 0, 1, 1], [], []>} : vector<8x32xf32>, vector<32x128xf32>, vector<8x128xf32> -> vector<8x128xf32>
    %161 = arith.addf %158, %160 : vector<8x128xf32>
    %162 = vector.extract_strided_slice %161 {offsets = [0, 0], sizes = [8, 32], strides = [1, 1]} : vector<8x128xf32> to vector<8x32xf32>
    %163 = arith.negf %162 : vector<8x32xf32>
    %164 = math.exp %163 : vector<8x32xf32>
    %cst_60 = arith.constant 1.000000e+00 : f32
    %165 = vector.broadcast %cst_60 : f32 to vector<8x32xf32>
    %166 = arith.addf %165, %164 : vector<8x32xf32>
    %167 = arith.divf %165, %166 : vector<8x32xf32>
    %168 = vector.extract_strided_slice %161 {offsets = [0, 32], sizes = [8, 32], strides = [1, 1]} : vector<8x128xf32> to vector<8x32xf32>
    %169 = arith.negf %168 : vector<8x32xf32>
    %170 = math.exp %169 : vector<8x32xf32>
    %cst_61 = arith.constant 1.000000e+00 : f32
    %171 = vector.broadcast %cst_61 : f32 to vector<8x32xf32>
    %172 = arith.addf %171, %170 : vector<8x32xf32>
    %173 = arith.divf %171, %172 : vector<8x32xf32>
    %174 = vector.extract_strided_slice %161 {offsets = [0, 64], sizes = [8, 32], strides = [1, 1]} : vector<8x128xf32> to vector<8x32xf32>
    %175 = math.tanh %174 : vector<8x32xf32>
    %176 = vector.extract_strided_slice %161 {offsets = [0, 96], sizes = [8, 32], strides = [1, 1]} : vector<8x128xf32> to vector<8x32xf32>
    %177 = arith.negf %176 : vector<8x32xf32>
    %178 = math.exp %177 : vector<8x32xf32>
    %cst_62 = arith.constant 1.000000e+00 : f32
    %179 = vector.broadcast %cst_62 : f32 to vector<8x32xf32>
    %180 = arith.addf %179, %178 : vector<8x32xf32>
    %181 = arith.divf %179, %180 : vector<8x32xf32>
    %182 = arith.mulf %173, %148 : vector<8x32xf32>
    %183 = arith.mulf %167, %175 : vector<8x32xf32>
    %184 = arith.addf %182, %183 : vector<8x32xf32>
    %185 = math.tanh %184 : vector<8x32xf32>
    %186 = arith.mulf %181, %185 : vector<8x32xf32>
    %c0_i32_63 = arith.constant 0 : i32
    %187 = arith.addi %c0_i32_63, %c4_i32 : i32
    %188 = arith.index_cast %187 : i32 to index
    %c0_64 = arith.constant 0 : index
    %c0_65 = arith.constant 0 : index
    %189 = vector.load %arg11[%188, %c0_64, %c0_65] : memref<8x8x32xf32, #tpu.memory_space<vmem>>, vector<1x8x32xf32>
    %190 = vector.shape_cast %189 : vector<1x8x32xf32> to vector<8x32xf32>
    %191 = vector.shape_cast %186 : vector<8x32xf32> to vector<1x8x32xf32>
    tpu.vector_store %arg11[%188, %c0_64, %c0_65], %191 {strides = array<i32>} : memref<8x8x32xf32, #tpu.memory_space<vmem>>, vector<1x8x32xf32>,
    %c5_i32 = arith.constant 5 : i32
    %192 = arith.index_cast %c5_i32 : i32 to index
    %c0_66 = arith.constant 0 : index
    %c0_67 = arith.constant 0 : index
    %193 = vector.load %arg10[%192, %c0_66, %c0_67] : memref<8x8x128xf32, #tpu.memory_space<vmem>>, vector<1x8x128xf32>
    %194 = vector.shape_cast %193 : vector<1x8x128xf32> to vector<8x128xf32>
    %c0_68 = arith.constant 0 : index
    %c0_69 = arith.constant 0 : index
    %195 = vector.load %arg2[%c0_68, %c0_69] : memref<32x128xf32, #tpu.memory_space<vmem>>, vector<32x128xf32>
    %cst_70 = arith.constant dense<0.000000e+00> : vector<8x128xf32>
    %196 = tpu.matmul %186, %195, %cst_70 {dimension_numbers = #tpu.dot_dimension_numbers<[1], [0], [0], [1], [0, 0, 1, 1], [], []>} : vector<8x32xf32>, vector<32x128xf32>, vector<8x128xf32> -> vector<8x128xf32>
    %197 = arith.addf %194, %196 : vector<8x128xf32>
    %198 = vector.extract_strided_slice %197 {offsets = [0, 0], sizes = [8, 32], strides = [1, 1]} : vector<8x128xf32> to vector<8x32xf32>
    %199 = arith.negf %198 : vector<8x32xf32>
    %200 = math.exp %199 : vector<8x32xf32>
    %cst_71 = arith.constant 1.000000e+00 : f32
    %201 = vector.broadcast %cst_71 : f32 to vector<8x32xf32>
    %202 = arith.addf %201, %200 : vector<8x32xf32>
    %203 = arith.divf %201, %202 : vector<8x32xf32>
    %204 = vector.extract_strided_slice %197 {offsets = [0, 32], sizes = [8, 32], strides = [1, 1]} : vector<8x128xf32> to vector<8x32xf32>
    %205 = arith.negf %204 : vector<8x32xf32>
    %206 = math.exp %205 : vector<8x32xf32>
    %cst_72 = arith.constant 1.000000e+00 : f32
    %207 = vector.broadcast %cst_72 : f32 to vector<8x32xf32>
    %208 = arith.addf %207, %206 : vector<8x32xf32>
    %209 = arith.divf %207, %208 : vector<8x32xf32>
    %210 = vector.extract_strided_slice %197 {offsets = [0, 64], sizes = [8, 32], strides = [1, 1]} : vector<8x128xf32> to vector<8x32xf32>
    %211 = math.tanh %210 : vector<8x32xf32>
    %212 = vector.extract_strided_slice %197 {offsets = [0, 96], sizes = [8, 32], strides = [1, 1]} : vector<8x128xf32> to vector<8x32xf32>
    %213 = arith.negf %212 : vector<8x32xf32>
    %214 = math.exp %213 : vector<8x32xf32>
    %cst_73 = arith.constant 1.000000e+00 : f32
    %215 = vector.broadcast %cst_73 : f32 to vector<8x32xf32>
    %216 = arith.addf %215, %214 : vector<8x32xf32>
    %217 = arith.divf %215, %216 : vector<8x32xf32>
    %218 = arith.mulf %209, %184 : vector<8x32xf32>
    %219 = arith.mulf %203, %211 : vector<8x32xf32>
    %220 = arith.addf %218, %219 : vector<8x32xf32>
    %221 = math.tanh %220 : vector<8x32xf32>
    %222 = arith.mulf %217, %221 : vector<8x32xf32>
    %c0_i32_74 = arith.constant 0 : i32
    %223 = arith.addi %c0_i32_74, %c5_i32 : i32
    %224 = arith.index_cast %223 : i32 to index
    %c0_75 = arith.constant 0 : index
    %c0_76 = arith.constant 0 : index
    %225 = vector.load %arg11[%224, %c0_75, %c0_76] : memref<8x8x32xf32, #tpu.memory_space<vmem>>, vector<1x8x32xf32>
    %226 = vector.shape_cast %225 : vector<1x8x32xf32> to vector<8x32xf32>
    %227 = vector.shape_cast %222 : vector<8x32xf32> to vector<1x8x32xf32>
    tpu.vector_store %arg11[%224, %c0_75, %c0_76], %227 {strides = array<i32>} : memref<8x8x32xf32, #tpu.memory_space<vmem>>, vector<1x8x32xf32>,
    %c6_i32 = arith.constant 6 : i32
    %228 = arith.index_cast %c6_i32 : i32 to index
    %c0_77 = arith.constant 0 : index
    %c0_78 = arith.constant 0 : index
    %229 = vector.load %arg10[%228, %c0_77, %c0_78] : memref<8x8x128xf32, #tpu.memory_space<vmem>>, vector<1x8x128xf32>
    %230 = vector.shape_cast %229 : vector<1x8x128xf32> to vector<8x128xf32>
    %c0_79 = arith.constant 0 : index
    %c0_80 = arith.constant 0 : index
    %231 = vector.load %arg2[%c0_79, %c0_80] : memref<32x128xf32, #tpu.memory_space<vmem>>, vector<32x128xf32>
    %cst_81 = arith.constant dense<0.000000e+00> : vector<8x128xf32>
    %232 = tpu.matmul %222, %231, %cst_81 {dimension_numbers = #tpu.dot_dimension_numbers<[1], [0], [0], [1], [0, 0, 1, 1], [], []>} : vector<8x32xf32>, vector<32x128xf32>, vector<8x128xf32> -> vector<8x128xf32>
    %233 = arith.addf %230, %232 : vector<8x128xf32>
    %234 = vector.extract_strided_slice %233 {offsets = [0, 0], sizes = [8, 32], strides = [1, 1]} : vector<8x128xf32> to vector<8x32xf32>
    %235 = arith.negf %234 : vector<8x32xf32>
    %236 = math.exp %235 : vector<8x32xf32>
    %cst_82 = arith.constant 1.000000e+00 : f32
    %237 = vector.broadcast %cst_82 : f32 to vector<8x32xf32>
    %238 = arith.addf %237, %236 : vector<8x32xf32>
    %239 = arith.divf %237, %238 : vector<8x32xf32>
    %240 = vector.extract_strided_slice %233 {offsets = [0, 32], sizes = [8, 32], strides = [1, 1]} : vector<8x128xf32> to vector<8x32xf32>
    %241 = arith.negf %240 : vector<8x32xf32>
    %242 = math.exp %241 : vector<8x32xf32>
    %cst_83 = arith.constant 1.000000e+00 : f32
    %243 = vector.broadcast %cst_83 : f32 to vector<8x32xf32>
    %244 = arith.addf %243, %242 : vector<8x32xf32>
    %245 = arith.divf %243, %244 : vector<8x32xf32>
    %246 = vector.extract_strided_slice %233 {offsets = [0, 64], sizes = [8, 32], strides = [1, 1]} : vector<8x128xf32> to vector<8x32xf32>
    %247 = math.tanh %246 : vector<8x32xf32>
    %248 = vector.extract_strided_slice %233 {offsets = [0, 96], sizes = [8, 32], strides = [1, 1]} : vector<8x128xf32> to vector<8x32xf32>
    %249 = arith.negf %248 : vector<8x32xf32>
    %250 = math.exp %249 : vector<8x32xf32>
    %cst_84 = arith.constant 1.000000e+00 : f32
    %251 = vector.broadcast %cst_84 : f32 to vector<8x32xf32>
    %252 = arith.addf %251, %250 : vector<8x32xf32>
    %253 = arith.divf %251, %252 : vector<8x32xf32>
    %254 = arith.mulf %245, %220 : vector<8x32xf32>
    %255 = arith.mulf %239, %247 : vector<8x32xf32>
    %256 = arith.addf %254, %255 : vector<8x32xf32>
    %257 = math.tanh %256 : vector<8x32xf32>
    %258 = arith.mulf %253, %257 : vector<8x32xf32>
    %c0_i32_85 = arith.constant 0 : i32
    %259 = arith.addi %c0_i32_85, %c6_i32 : i32
    %260 = arith.index_cast %259 : i32 to index
    %c0_86 = arith.constant 0 : index
    %c0_87 = arith.constant 0 : index
    %261 = vector.load %arg11[%260, %c0_86, %c0_87] : memref<8x8x32xf32, #tpu.memory_space<vmem>>, vector<1x8x32xf32>
    %262 = vector.shape_cast %261 : vector<1x8x32xf32> to vector<8x32xf32>
    %263 = vector.shape_cast %258 : vector<8x32xf32> to vector<1x8x32xf32>
    tpu.vector_store %arg11[%260, %c0_86, %c0_87], %263 {strides = array<i32>} : memref<8x8x32xf32, #tpu.memory_space<vmem>>, vector<1x8x32xf32>,
    %c7_i32 = arith.constant 7 : i32
    %264 = arith.index_cast %c7_i32 : i32 to index
    %c0_88 = arith.constant 0 : index
    %c0_89 = arith.constant 0 : index
    %265 = vector.load %arg10[%264, %c0_88, %c0_89] : memref<8x8x128xf32, #tpu.memory_space<vmem>>, vector<1x8x128xf32>
    %266 = vector.shape_cast %265 : vector<1x8x128xf32> to vector<8x128xf32>
    %c0_90 = arith.constant 0 : index
    %c0_91 = arith.constant 0 : index
    %267 = vector.load %arg2[%c0_90, %c0_91] : memref<32x128xf32, #tpu.memory_space<vmem>>, vector<32x128xf32>
    %cst_92 = arith.constant dense<0.000000e+00> : vector<8x128xf32>
    %268 = tpu.matmul %258, %267, %cst_92 {dimension_numbers = #tpu.dot_dimension_numbers<[1], [0], [0], [1], [0, 0, 1, 1], [], []>} : vector<8x32xf32>, vector<32x128xf32>, vector<8x128xf32> -> vector<8x128xf32>
    %269 = arith.addf %266, %268 : vector<8x128xf32>
    %270 = vector.extract_strided_slice %269 {offsets = [0, 0], sizes = [8, 32], strides = [1, 1]} : vector<8x128xf32> to vector<8x32xf32>
    %271 = arith.negf %270 : vector<8x32xf32>
    %272 = math.exp %271 : vector<8x32xf32>
    %cst_93 = arith.constant 1.000000e+00 : f32
    %273 = vector.broadcast %cst_93 : f32 to vector<8x32xf32>
    %274 = arith.addf %273, %272 : vector<8x32xf32>
    %275 = arith.divf %273, %274 : vector<8x32xf32>
    %276 = vector.extract_strided_slice %269 {offsets = [0, 32], sizes = [8, 32], strides = [1, 1]} : vector<8x128xf32> to vector<8x32xf32>
    %277 = arith.negf %276 : vector<8x32xf32>
    %278 = math.exp %277 : vector<8x32xf32>
    %cst_94 = arith.constant 1.000000e+00 : f32
    %279 = vector.broadcast %cst_94 : f32 to vector<8x32xf32>
    %280 = arith.addf %279, %278 : vector<8x32xf32>
    %281 = arith.divf %279, %280 : vector<8x32xf32>
    %282 = vector.extract_strided_slice %269 {offsets = [0, 64], sizes = [8, 32], strides = [1, 1]} : vector<8x128xf32> to vector<8x32xf32>
    %283 = math.tanh %282 : vector<8x32xf32>
    %284 = vector.extract_strided_slice %269 {offsets = [0, 96], sizes = [8, 32], strides = [1, 1]} : vector<8x128xf32> to vector<8x32xf32>
    %285 = arith.negf %284 : vector<8x32xf32>
    %286 = math.exp %285 : vector<8x32xf32>
    %cst_95 = arith.constant 1.000000e+00 : f32
    %287 = vector.broadcast %cst_95 : f32 to vector<8x32xf32>
    %288 = arith.addf %287, %286 : vector<8x32xf32>
    %289 = arith.divf %287, %288 : vector<8x32xf32>
    %290 = arith.mulf %281, %256 : vector<8x32xf32>
    %291 = arith.mulf %275, %283 : vector<8x32xf32>
    %292 = arith.addf %290, %291 : vector<8x32xf32>
    %293 = math.tanh %292 : vector<8x32xf32>
    %294 = arith.mulf %289, %293 : vector<8x32xf32>
    %c0_i32_96 = arith.constant 0 : i32
    %295 = arith.addi %c0_i32_96, %c7_i32 : i32
    %296 = arith.index_cast %295 : i32 to index
    %c0_97 = arith.constant 0 : index
    %c0_98 = arith.constant 0 : index
    %297 = vector.load %arg11[%296, %c0_97, %c0_98] : memref<8x8x32xf32, #tpu.memory_space<vmem>>, vector<1x8x32xf32>
    %298 = vector.shape_cast %297 : vector<1x8x32xf32> to vector<8x32xf32>
    %299 = vector.shape_cast %294 : vector<8x32xf32> to vector<1x8x32xf32>
    tpu.vector_store %arg11[%296, %c0_97, %c0_98], %299 {strides = array<i32>} : memref<8x8x32xf32, #tpu.memory_space<vmem>>, vector<1x8x32xf32>,
    %c8_i32 = arith.constant 8 : i32
    %cst_99 = arith.constant 0.000000e+00 : f32
    %300 = vector.broadcast %cst_99 : f32 to vector<8x32xf32>
    %cst_100 = arith.constant 0.000000e+00 : f32
    %301 = vector.broadcast %cst_100 : f32 to vector<8x32xf32>
    %c0_101 = arith.constant 0 : index
    %c0_102 = arith.constant 0 : index
    %c0_103 = arith.constant 0 : index
    %302 = vector.load %arg11[%c0_101, %c0_102, %c0_103] : memref<8x8x32xf32, #tpu.memory_space<vmem>>, vector<8x8x32xf32>
    %303 = vector.shape_cast %302 : vector<8x8x32xf32> to vector<64x32xf32>
    %c0_104 = arith.constant 0 : index
    %c0_105 = arith.constant 0 : index
    %304 = vector.load %arg4[%c0_104, %c0_105] : memref<32x128xf32, #tpu.memory_space<vmem>>, vector<32x128xf32>
    %cst_106 = arith.constant dense<0.000000e+00> : vector<64x128xf32>
    %305 = tpu.matmul %303, %304, %cst_106 {dimension_numbers = #tpu.dot_dimension_numbers<[1], [0], [0], [1], [0, 0, 1, 1], [], []>} : vector<64x32xf32>, vector<32x128xf32>, vector<64x128xf32> -> vector<64x128xf32>
    %c0_107 = arith.constant 0 : index
    %c0_108 = arith.constant 0 : index
    %306 = vector.load %arg6[%c0_107, %c0_108] : memref<1x128xf32, #tpu.memory_space<vmem>>, vector<1x128xf32>
    %307 = vector.broadcast %306 : vector<1x128xf32> to vector<64x128xf32>
    %308 = arith.addf %305, %307 : vector<64x128xf32>
    %309 = vector.shape_cast %308 : vector<64x128xf32> to vector<8x8x128xf32>
    %c0_109 = arith.constant 0 : index
    %c0_110 = arith.constant 0 : index
    %c0_111 = arith.constant 0 : index
    %310 = vector.load %arg10[%c0_109, %c0_110, %c0_111] : memref<8x8x128xf32, #tpu.memory_space<vmem>>, vector<8x8x128xf32>
    tpu.vector_store %arg10[%c0_109, %c0_110, %c0_111], %309 {strides = array<i32>} : memref<8x8x128xf32, #tpu.memory_space<vmem>>, vector<8x8x128xf32>,
    %c0_i32_112 = arith.constant 0 : i32
    %311 = arith.index_cast %c0_i32_112 : i32 to index
    %c0_113 = arith.constant 0 : index
    %c0_114 = arith.constant 0 : index
    %312 = vector.load %arg10[%311, %c0_113, %c0_114] : memref<8x8x128xf32, #tpu.memory_space<vmem>>, vector<1x8x128xf32>
    %313 = vector.shape_cast %312 : vector<1x8x128xf32> to vector<8x128xf32>
    %c0_115 = arith.constant 0 : index
    %c0_116 = arith.constant 0 : index
    %314 = vector.load %arg5[%c0_115, %c0_116] : memref<32x128xf32, #tpu.memory_space<vmem>>, vector<32x128xf32>
    %cst_117 = arith.constant dense<0.000000e+00> : vector<8x128xf32>
    %315 = tpu.matmul %300, %314, %cst_117 {dimension_numbers = #tpu.dot_dimension_numbers<[1], [0], [0], [1], [0, 0, 1, 1], [], []>} : vector<8x32xf32>, vector<32x128xf32>, vector<8x128xf32> -> vector<8x128xf32>
    %316 = arith.addf %313, %315 : vector<8x128xf32>
    %317 = vector.extract_strided_slice %316 {offsets = [0, 0], sizes = [8, 32], strides = [1, 1]} : vector<8x128xf32> to vector<8x32xf32>
    %318 = arith.negf %317 : vector<8x32xf32>
    %319 = math.exp %318 : vector<8x32xf32>
    %cst_118 = arith.constant 1.000000e+00 : f32
    %320 = vector.broadcast %cst_118 : f32 to vector<8x32xf32>
    %321 = arith.addf %320, %319 : vector<8x32xf32>
    %322 = arith.divf %320, %321 : vector<8x32xf32>
    %323 = vector.extract_strided_slice %316 {offsets = [0, 32], sizes = [8, 32], strides = [1, 1]} : vector<8x128xf32> to vector<8x32xf32>
    %324 = arith.negf %323 : vector<8x32xf32>
    %325 = math.exp %324 : vector<8x32xf32>
    %cst_119 = arith.constant 1.000000e+00 : f32
    %326 = vector.broadcast %cst_119 : f32 to vector<8x32xf32>
    %327 = arith.addf %326, %325 : vector<8x32xf32>
    %328 = arith.divf %326, %327 : vector<8x32xf32>
    %329 = vector.extract_strided_slice %316 {offsets = [0, 64], sizes = [8, 32], strides = [1, 1]} : vector<8x128xf32> to vector<8x32xf32>
    %330 = math.tanh %329 : vector<8x32xf32>
    %331 = vector.extract_strided_slice %316 {offsets = [0, 96], sizes = [8, 32], strides = [1, 1]} : vector<8x128xf32> to vector<8x32xf32>
    %332 = arith.negf %331 : vector<8x32xf32>
    %333 = math.exp %332 : vector<8x32xf32>
    %cst_120 = arith.constant 1.000000e+00 : f32
    %334 = vector.broadcast %cst_120 : f32 to vector<8x32xf32>
    %335 = arith.addf %334, %333 : vector<8x32xf32>
    %336 = arith.divf %334, %335 : vector<8x32xf32>
    %337 = arith.mulf %328, %301 : vector<8x32xf32>
    %338 = arith.mulf %322, %330 : vector<8x32xf32>
    %339 = arith.addf %337, %338 : vector<8x32xf32>
    %340 = math.tanh %339 : vector<8x32xf32>
    %341 = arith.mulf %336, %340 : vector<8x32xf32>
    %c1_i32_121 = arith.constant 1 : i32
    %342 = arith.index_cast %c1_i32_121 : i32 to index
    %c0_122 = arith.constant 0 : index
    %c0_123 = arith.constant 0 : index
    %343 = vector.load %arg10[%342, %c0_122, %c0_123] : memref<8x8x128xf32, #tpu.memory_space<vmem>>, vector<1x8x128xf32>
    %344 = vector.shape_cast %343 : vector<1x8x128xf32> to vector<8x128xf32>
    %c0_124 = arith.constant 0 : index
    %c0_125 = arith.constant 0 : index
    %345 = vector.load %arg5[%c0_124, %c0_125] : memref<32x128xf32, #tpu.memory_space<vmem>>, vector<32x128xf32>
    %cst_126 = arith.constant dense<0.000000e+00> : vector<8x128xf32>
    %346 = tpu.matmul %341, %345, %cst_126 {dimension_numbers = #tpu.dot_dimension_numbers<[1], [0], [0], [1], [0, 0, 1, 1], [], []>} : vector<8x32xf32>, vector<32x128xf32>, vector<8x128xf32> -> vector<8x128xf32>
    %347 = arith.addf %344, %346 : vector<8x128xf32>
    %348 = vector.extract_strided_slice %347 {offsets = [0, 0], sizes = [8, 32], strides = [1, 1]} : vector<8x128xf32> to vector<8x32xf32>
    %349 = arith.negf %348 : vector<8x32xf32>
    %350 = math.exp %349 : vector<8x32xf32>
    %cst_127 = arith.constant 1.000000e+00 : f32
    %351 = vector.broadcast %cst_127 : f32 to vector<8x32xf32>
    %352 = arith.addf %351, %350 : vector<8x32xf32>
    %353 = arith.divf %351, %352 : vector<8x32xf32>
    %354 = vector.extract_strided_slice %347 {offsets = [0, 32], sizes = [8, 32], strides = [1, 1]} : vector<8x128xf32> to vector<8x32xf32>
    %355 = arith.negf %354 : vector<8x32xf32>
    %356 = math.exp %355 : vector<8x32xf32>
    %cst_128 = arith.constant 1.000000e+00 : f32
    %357 = vector.broadcast %cst_128 : f32 to vector<8x32xf32>
    %358 = arith.addf %357, %356 : vector<8x32xf32>
    %359 = arith.divf %357, %358 : vector<8x32xf32>
    %360 = vector.extract_strided_slice %347 {offsets = [0, 64], sizes = [8, 32], strides = [1, 1]} : vector<8x128xf32> to vector<8x32xf32>
    %361 = math.tanh %360 : vector<8x32xf32>
    %362 = vector.extract_strided_slice %347 {offsets = [0, 96], sizes = [8, 32], strides = [1, 1]} : vector<8x128xf32> to vector<8x32xf32>
    %363 = arith.negf %362 : vector<8x32xf32>
    %364 = math.exp %363 : vector<8x32xf32>
    %cst_129 = arith.constant 1.000000e+00 : f32
    %365 = vector.broadcast %cst_129 : f32 to vector<8x32xf32>
    %366 = arith.addf %365, %364 : vector<8x32xf32>
    %367 = arith.divf %365, %366 : vector<8x32xf32>
    %368 = arith.mulf %359, %339 : vector<8x32xf32>
    %369 = arith.mulf %353, %361 : vector<8x32xf32>
    %370 = arith.addf %368, %369 : vector<8x32xf32>
    %371 = math.tanh %370 : vector<8x32xf32>
    %372 = arith.mulf %367, %371 : vector<8x32xf32>
    %c2_i32_130 = arith.constant 2 : i32
    %373 = arith.index_cast %c2_i32_130 : i32 to index
    %c0_131 = arith.constant 0 : index
    %c0_132 = arith.constant 0 : index
    %374 = vector.load %arg10[%373, %c0_131, %c0_132] : memref<8x8x128xf32, #tpu.memory_space<vmem>>, vector<1x8x128xf32>
    %375 = vector.shape_cast %374 : vector<1x8x128xf32> to vector<8x128xf32>
    %c0_133 = arith.constant 0 : index
    %c0_134 = arith.constant 0 : index
    %376 = vector.load %arg5[%c0_133, %c0_134] : memref<32x128xf32, #tpu.memory_space<vmem>>, vector<32x128xf32>
    %cst_135 = arith.constant dense<0.000000e+00> : vector<8x128xf32>
    %377 = tpu.matmul %372, %376, %cst_135 {dimension_numbers = #tpu.dot_dimension_numbers<[1], [0], [0], [1], [0, 0, 1, 1], [], []>} : vector<8x32xf32>, vector<32x128xf32>, vector<8x128xf32> -> vector<8x128xf32>
    %378 = arith.addf %375, %377 : vector<8x128xf32>
    %379 = vector.extract_strided_slice %378 {offsets = [0, 0], sizes = [8, 32], strides = [1, 1]} : vector<8x128xf32> to vector<8x32xf32>
    %380 = arith.negf %379 : vector<8x32xf32>
    %381 = math.exp %380 : vector<8x32xf32>
    %cst_136 = arith.constant 1.000000e+00 : f32
    %382 = vector.broadcast %cst_136 : f32 to vector<8x32xf32>
    %383 = arith.addf %382, %381 : vector<8x32xf32>
    %384 = arith.divf %382, %383 : vector<8x32xf32>
    %385 = vector.extract_strided_slice %378 {offsets = [0, 32], sizes = [8, 32], strides = [1, 1]} : vector<8x128xf32> to vector<8x32xf32>
    %386 = arith.negf %385 : vector<8x32xf32>
    %387 = math.exp %386 : vector<8x32xf32>
    %cst_137 = arith.constant 1.000000e+00 : f32
    %388 = vector.broadcast %cst_137 : f32 to vector<8x32xf32>
    %389 = arith.addf %388, %387 : vector<8x32xf32>
    %390 = arith.divf %388, %389 : vector<8x32xf32>
    %391 = vector.extract_strided_slice %378 {offsets = [0, 64], sizes = [8, 32], strides = [1, 1]} : vector<8x128xf32> to vector<8x32xf32>
    %392 = math.tanh %391 : vector<8x32xf32>
    %393 = vector.extract_strided_slice %378 {offsets = [0, 96], sizes = [8, 32], strides = [1, 1]} : vector<8x128xf32> to vector<8x32xf32>
    %394 = arith.negf %393 : vector<8x32xf32>
    %395 = math.exp %394 : vector<8x32xf32>
    %cst_138 = arith.constant 1.000000e+00 : f32
    %396 = vector.broadcast %cst_138 : f32 to vector<8x32xf32>
    %397 = arith.addf %396, %395 : vector<8x32xf32>
    %398 = arith.divf %396, %397 : vector<8x32xf32>
    %399 = arith.mulf %390, %370 : vector<8x32xf32>
    %400 = arith.mulf %384, %392 : vector<8x32xf32>
    %401 = arith.addf %399, %400 : vector<8x32xf32>
    %402 = math.tanh %401 : vector<8x32xf32>
    %403 = arith.mulf %398, %402 : vector<8x32xf32>
    %c3_i32_139 = arith.constant 3 : i32
    %404 = arith.index_cast %c3_i32_139 : i32 to index
    %c0_140 = arith.constant 0 : index
    %c0_141 = arith.constant 0 : index
    %405 = vector.load %arg10[%404, %c0_140, %c0_141] : memref<8x8x128xf32, #tpu.memory_space<vmem>>, vector<1x8x128xf32>
    %406 = vector.shape_cast %405 : vector<1x8x128xf32> to vector<8x128xf32>
    %c0_142 = arith.constant 0 : index
    %c0_143 = arith.constant 0 : index
    %407 = vector.load %arg5[%c0_142, %c0_143] : memref<32x128xf32, #tpu.memory_space<vmem>>, vector<32x128xf32>
    %cst_144 = arith.constant dense<0.000000e+00> : vector<8x128xf32>
    %408 = tpu.matmul %403, %407, %cst_144 {dimension_numbers = #tpu.dot_dimension_numbers<[1], [0], [0], [1], [0, 0, 1, 1], [], []>} : vector<8x32xf32>, vector<32x128xf32>, vector<8x128xf32> -> vector<8x128xf32>
    %409 = arith.addf %406, %408 : vector<8x128xf32>
    %410 = vector.extract_strided_slice %409 {offsets = [0, 0], sizes = [8, 32], strides = [1, 1]} : vector<8x128xf32> to vector<8x32xf32>
    %411 = arith.negf %410 : vector<8x32xf32>
    %412 = math.exp %411 : vector<8x32xf32>
    %cst_145 = arith.constant 1.000000e+00 : f32
    %413 = vector.broadcast %cst_145 : f32 to vector<8x32xf32>
    %414 = arith.addf %413, %412 : vector<8x32xf32>
    %415 = arith.divf %413, %414 : vector<8x32xf32>
    %416 = vector.extract_strided_slice %409 {offsets = [0, 32], sizes = [8, 32], strides = [1, 1]} : vector<8x128xf32> to vector<8x32xf32>
    %417 = arith.negf %416 : vector<8x32xf32>
    %418 = math.exp %417 : vector<8x32xf32>
    %cst_146 = arith.constant 1.000000e+00 : f32
    %419 = vector.broadcast %cst_146 : f32 to vector<8x32xf32>
    %420 = arith.addf %419, %418 : vector<8x32xf32>
    %421 = arith.divf %419, %420 : vector<8x32xf32>
    %422 = vector.extract_strided_slice %409 {offsets = [0, 64], sizes = [8, 32], strides = [1, 1]} : vector<8x128xf32> to vector<8x32xf32>
    %423 = math.tanh %422 : vector<8x32xf32>
    %424 = vector.extract_strided_slice %409 {offsets = [0, 96], sizes = [8, 32], strides = [1, 1]} : vector<8x128xf32> to vector<8x32xf32>
    %425 = arith.negf %424 : vector<8x32xf32>
    %426 = math.exp %425 : vector<8x32xf32>
    %cst_147 = arith.constant 1.000000e+00 : f32
    %427 = vector.broadcast %cst_147 : f32 to vector<8x32xf32>
    %428 = arith.addf %427, %426 : vector<8x32xf32>
    %429 = arith.divf %427, %428 : vector<8x32xf32>
    %430 = arith.mulf %421, %401 : vector<8x32xf32>
    %431 = arith.mulf %415, %423 : vector<8x32xf32>
    %432 = arith.addf %430, %431 : vector<8x32xf32>
    %433 = math.tanh %432 : vector<8x32xf32>
    %434 = arith.mulf %429, %433 : vector<8x32xf32>
    %c4_i32_148 = arith.constant 4 : i32
    %435 = arith.index_cast %c4_i32_148 : i32 to index
    %c0_149 = arith.constant 0 : index
    %c0_150 = arith.constant 0 : index
    %436 = vector.load %arg10[%435, %c0_149, %c0_150] : memref<8x8x128xf32, #tpu.memory_space<vmem>>, vector<1x8x128xf32>
    %437 = vector.shape_cast %436 : vector<1x8x128xf32> to vector<8x128xf32>
    %c0_151 = arith.constant 0 : index
    %c0_152 = arith.constant 0 : index
    %438 = vector.load %arg5[%c0_151, %c0_152] : memref<32x128xf32, #tpu.memory_space<vmem>>, vector<32x128xf32>
    %cst_153 = arith.constant dense<0.000000e+00> : vector<8x128xf32>
    %439 = tpu.matmul %434, %438, %cst_153 {dimension_numbers = #tpu.dot_dimension_numbers<[1], [0], [0], [1], [0, 0, 1, 1], [], []>} : vector<8x32xf32>, vector<32x128xf32>, vector<8x128xf32> -> vector<8x128xf32>
    %440 = arith.addf %437, %439 : vector<8x128xf32>
    %441 = vector.extract_strided_slice %440 {offsets = [0, 0], sizes = [8, 32], strides = [1, 1]} : vector<8x128xf32> to vector<8x32xf32>
    %442 = arith.negf %441 : vector<8x32xf32>
    %443 = math.exp %442 : vector<8x32xf32>
    %cst_154 = arith.constant 1.000000e+00 : f32
    %444 = vector.broadcast %cst_154 : f32 to vector<8x32xf32>
    %445 = arith.addf %444, %443 : vector<8x32xf32>
    %446 = arith.divf %444, %445 : vector<8x32xf32>
    %447 = vector.extract_strided_slice %440 {offsets = [0, 32], sizes = [8, 32], strides = [1, 1]} : vector<8x128xf32> to vector<8x32xf32>
    %448 = arith.negf %447 : vector<8x32xf32>
    %449 = math.exp %448 : vector<8x32xf32>
    %cst_155 = arith.constant 1.000000e+00 : f32
    %450 = vector.broadcast %cst_155 : f32 to vector<8x32xf32>
    %451 = arith.addf %450, %449 : vector<8x32xf32>
    %452 = arith.divf %450, %451 : vector<8x32xf32>
    %453 = vector.extract_strided_slice %440 {offsets = [0, 64], sizes = [8, 32], strides = [1, 1]} : vector<8x128xf32> to vector<8x32xf32>
    %454 = math.tanh %453 : vector<8x32xf32>
    %455 = vector.extract_strided_slice %440 {offsets = [0, 96], sizes = [8, 32], strides = [1, 1]} : vector<8x128xf32> to vector<8x32xf32>
    %456 = arith.negf %455 : vector<8x32xf32>
    %457 = math.exp %456 : vector<8x32xf32>
    %cst_156 = arith.constant 1.000000e+00 : f32
    %458 = vector.broadcast %cst_156 : f32 to vector<8x32xf32>
    %459 = arith.addf %458, %457 : vector<8x32xf32>
    %460 = arith.divf %458, %459 : vector<8x32xf32>
    %461 = arith.mulf %452, %432 : vector<8x32xf32>
    %462 = arith.mulf %446, %454 : vector<8x32xf32>
    %463 = arith.addf %461, %462 : vector<8x32xf32>
    %464 = math.tanh %463 : vector<8x32xf32>
    %465 = arith.mulf %460, %464 : vector<8x32xf32>
    %c5_i32_157 = arith.constant 5 : i32
    %466 = arith.index_cast %c5_i32_157 : i32 to index
    %c0_158 = arith.constant 0 : index
    %c0_159 = arith.constant 0 : index
    %467 = vector.load %arg10[%466, %c0_158, %c0_159] : memref<8x8x128xf32, #tpu.memory_space<vmem>>, vector<1x8x128xf32>
    %468 = vector.shape_cast %467 : vector<1x8x128xf32> to vector<8x128xf32>
    %c0_160 = arith.constant 0 : index
    %c0_161 = arith.constant 0 : index
    %469 = vector.load %arg5[%c0_160, %c0_161] : memref<32x128xf32, #tpu.memory_space<vmem>>, vector<32x128xf32>
    %cst_162 = arith.constant dense<0.000000e+00> : vector<8x128xf32>
    %470 = tpu.matmul %465, %469, %cst_162 {dimension_numbers = #tpu.dot_dimension_numbers<[1], [0], [0], [1], [0, 0, 1, 1], [], []>} : vector<8x32xf32>, vector<32x128xf32>, vector<8x128xf32> -> vector<8x128xf32>
    %471 = arith.addf %468, %470 : vector<8x128xf32>
    %472 = vector.extract_strided_slice %471 {offsets = [0, 0], sizes = [8, 32], strides = [1, 1]} : vector<8x128xf32> to vector<8x32xf32>
    %473 = arith.negf %472 : vector<8x32xf32>
    %474 = math.exp %473 : vector<8x32xf32>
    %cst_163 = arith.constant 1.000000e+00 : f32
    %475 = vector.broadcast %cst_163 : f32 to vector<8x32xf32>
    %476 = arith.addf %475, %474 : vector<8x32xf32>
    %477 = arith.divf %475, %476 : vector<8x32xf32>
    %478 = vector.extract_strided_slice %471 {offsets = [0, 32], sizes = [8, 32], strides = [1, 1]} : vector<8x128xf32> to vector<8x32xf32>
    %479 = arith.negf %478 : vector<8x32xf32>
    %480 = math.exp %479 : vector<8x32xf32>
    %cst_164 = arith.constant 1.000000e+00 : f32
    %481 = vector.broadcast %cst_164 : f32 to vector<8x32xf32>
    %482 = arith.addf %481, %480 : vector<8x32xf32>
    %483 = arith.divf %481, %482 : vector<8x32xf32>
    %484 = vector.extract_strided_slice %471 {offsets = [0, 64], sizes = [8, 32], strides = [1, 1]} : vector<8x128xf32> to vector<8x32xf32>
    %485 = math.tanh %484 : vector<8x32xf32>
    %486 = vector.extract_strided_slice %471 {offsets = [0, 96], sizes = [8, 32], strides = [1, 1]} : vector<8x128xf32> to vector<8x32xf32>
    %487 = arith.negf %486 : vector<8x32xf32>
    %488 = math.exp %487 : vector<8x32xf32>
    %cst_165 = arith.constant 1.000000e+00 : f32
    %489 = vector.broadcast %cst_165 : f32 to vector<8x32xf32>
    %490 = arith.addf %489, %488 : vector<8x32xf32>
    %491 = arith.divf %489, %490 : vector<8x32xf32>
    %492 = arith.mulf %483, %463 : vector<8x32xf32>
    %493 = arith.mulf %477, %485 : vector<8x32xf32>
    %494 = arith.addf %492, %493 : vector<8x32xf32>
    %495 = math.tanh %494 : vector<8x32xf32>
    %496 = arith.mulf %491, %495 : vector<8x32xf32>
    %c6_i32_166 = arith.constant 6 : i32
    %497 = arith.index_cast %c6_i32_166 : i32 to index
    %c0_167 = arith.constant 0 : index
    %c0_168 = arith.constant 0 : index
    %498 = vector.load %arg10[%497, %c0_167, %c0_168] : memref<8x8x128xf32, #tpu.memory_space<vmem>>, vector<1x8x128xf32>
    %499 = vector.shape_cast %498 : vector<1x8x128xf32> to vector<8x128xf32>
    %c0_169 = arith.constant 0 : index
    %c0_170 = arith.constant 0 : index
    %500 = vector.load %arg5[%c0_169, %c0_170] : memref<32x128xf32, #tpu.memory_space<vmem>>, vector<32x128xf32>
    %cst_171 = arith.constant dense<0.000000e+00> : vector<8x128xf32>
    %501 = tpu.matmul %496, %500, %cst_171 {dimension_numbers = #tpu.dot_dimension_numbers<[1], [0], [0], [1], [0, 0, 1, 1], [], []>} : vector<8x32xf32>, vector<32x128xf32>, vector<8x128xf32> -> vector<8x128xf32>
    %502 = arith.addf %499, %501 : vector<8x128xf32>
    %503 = vector.extract_strided_slice %502 {offsets = [0, 0], sizes = [8, 32], strides = [1, 1]} : vector<8x128xf32> to vector<8x32xf32>
    %504 = arith.negf %503 : vector<8x32xf32>
    %505 = math.exp %504 : vector<8x32xf32>
    %cst_172 = arith.constant 1.000000e+00 : f32
    %506 = vector.broadcast %cst_172 : f32 to vector<8x32xf32>
    %507 = arith.addf %506, %505 : vector<8x32xf32>
    %508 = arith.divf %506, %507 : vector<8x32xf32>
    %509 = vector.extract_strided_slice %502 {offsets = [0, 32], sizes = [8, 32], strides = [1, 1]} : vector<8x128xf32> to vector<8x32xf32>
    %510 = arith.negf %509 : vector<8x32xf32>
    %511 = math.exp %510 : vector<8x32xf32>
    %cst_173 = arith.constant 1.000000e+00 : f32
    %512 = vector.broadcast %cst_173 : f32 to vector<8x32xf32>
    %513 = arith.addf %512, %511 : vector<8x32xf32>
    %514 = arith.divf %512, %513 : vector<8x32xf32>
    %515 = vector.extract_strided_slice %502 {offsets = [0, 64], sizes = [8, 32], strides = [1, 1]} : vector<8x128xf32> to vector<8x32xf32>
    %516 = math.tanh %515 : vector<8x32xf32>
    %517 = vector.extract_strided_slice %502 {offsets = [0, 96], sizes = [8, 32], strides = [1, 1]} : vector<8x128xf32> to vector<8x32xf32>
    %518 = arith.negf %517 : vector<8x32xf32>
    %519 = math.exp %518 : vector<8x32xf32>
    %cst_174 = arith.constant 1.000000e+00 : f32
    %520 = vector.broadcast %cst_174 : f32 to vector<8x32xf32>
    %521 = arith.addf %520, %519 : vector<8x32xf32>
    %522 = arith.divf %520, %521 : vector<8x32xf32>
    %523 = arith.mulf %514, %494 : vector<8x32xf32>
    %524 = arith.mulf %508, %516 : vector<8x32xf32>
    %525 = arith.addf %523, %524 : vector<8x32xf32>
    %526 = math.tanh %525 : vector<8x32xf32>
    %527 = arith.mulf %522, %526 : vector<8x32xf32>
    %c7_i32_175 = arith.constant 7 : i32
    %528 = arith.index_cast %c7_i32_175 : i32 to index
    %c0_176 = arith.constant 0 : index
    %c0_177 = arith.constant 0 : index
    %529 = vector.load %arg10[%528, %c0_176, %c0_177] : memref<8x8x128xf32, #tpu.memory_space<vmem>>, vector<1x8x128xf32>
    %530 = vector.shape_cast %529 : vector<1x8x128xf32> to vector<8x128xf32>
    %c0_178 = arith.constant 0 : index
    %c0_179 = arith.constant 0 : index
    %531 = vector.load %arg5[%c0_178, %c0_179] : memref<32x128xf32, #tpu.memory_space<vmem>>, vector<32x128xf32>
    %cst_180 = arith.constant dense<0.000000e+00> : vector<8x128xf32>
    %532 = tpu.matmul %527, %531, %cst_180 {dimension_numbers = #tpu.dot_dimension_numbers<[1], [0], [0], [1], [0, 0, 1, 1], [], []>} : vector<8x32xf32>, vector<32x128xf32>, vector<8x128xf32> -> vector<8x128xf32>
    %533 = arith.addf %530, %532 : vector<8x128xf32>
    %534 = vector.extract_strided_slice %533 {offsets = [0, 0], sizes = [8, 32], strides = [1, 1]} : vector<8x128xf32> to vector<8x32xf32>
    %535 = arith.negf %534 : vector<8x32xf32>
    %536 = math.exp %535 : vector<8x32xf32>
    %cst_181 = arith.constant 1.000000e+00 : f32
    %537 = vector.broadcast %cst_181 : f32 to vector<8x32xf32>
    %538 = arith.addf %537, %536 : vector<8x32xf32>
    %539 = arith.divf %537, %538 : vector<8x32xf32>
    %540 = vector.extract_strided_slice %533 {offsets = [0, 32], sizes = [8, 32], strides = [1, 1]} : vector<8x128xf32> to vector<8x32xf32>
    %541 = arith.negf %540 : vector<8x32xf32>
    %542 = math.exp %541 : vector<8x32xf32>
    %cst_182 = arith.constant 1.000000e+00 : f32
    %543 = vector.broadcast %cst_182 : f32 to vector<8x32xf32>
    %544 = arith.addf %543, %542 : vector<8x32xf32>
    %545 = arith.divf %543, %544 : vector<8x32xf32>
    %546 = vector.extract_strided_slice %533 {offsets = [0, 64], sizes = [8, 32], strides = [1, 1]} : vector<8x128xf32> to vector<8x32xf32>
    %547 = math.tanh %546 : vector<8x32xf32>
    %548 = vector.extract_strided_slice %533 {offsets = [0, 96], sizes = [8, 32], strides = [1, 1]} : vector<8x128xf32> to vector<8x32xf32>
    %549 = arith.negf %548 : vector<8x32xf32>
    %550 = math.exp %549 : vector<8x32xf32>
    %cst_183 = arith.constant 1.000000e+00 : f32
    %551 = vector.broadcast %cst_183 : f32 to vector<8x32xf32>
    %552 = arith.addf %551, %550 : vector<8x32xf32>
    %553 = arith.divf %551, %552 : vector<8x32xf32>
    %554 = arith.mulf %545, %525 : vector<8x32xf32>
    %555 = arith.mulf %539, %547 : vector<8x32xf32>
    %556 = arith.addf %554, %555 : vector<8x32xf32>
    %557 = math.tanh %556 : vector<8x32xf32>
    %558 = arith.mulf %553, %557 : vector<8x32xf32>
    %c8_i32_184 = arith.constant 8 : i32
    %c0_185 = arith.constant 0 : index
    %c0_186 = arith.constant 0 : index
    %559 = vector.load %arg7[%c0_185, %c0_186] : memref<32x4xf32, #tpu.memory_space<vmem>>, vector<32x4xf32>
    %cst_187 = arith.constant dense<0.000000e+00> : vector<8x4xf32>
    %560 = tpu.matmul %558, %559, %cst_187 {dimension_numbers = #tpu.dot_dimension_numbers<[1], [0], [0], [1], [0, 0, 1, 1], [], []>} : vector<8x32xf32>, vector<32x4xf32>, vector<8x4xf32> -> vector<8x4xf32>
    %c0_188 = arith.constant 0 : index
    %c0_189 = arith.constant 0 : index
    %561 = vector.load %arg8[%c0_188, %c0_189] : memref<1x4xf32, #tpu.memory_space<vmem>>, vector<1x4xf32>
    %562 = vector.broadcast %561 : vector<1x4xf32> to vector<8x4xf32>
    %563 = arith.addf %560, %562 : vector<8x4xf32>
    %c0_190 = arith.constant 0 : index
    %c0_191 = arith.constant 0 : index
    %564 = vector.load %arg9[%c0_190, %c0_191] : memref<8x4xf32, #tpu.memory_space<vmem>>, vector<8x4xf32>
    tpu.vector_store %arg9[%c0_190, %c0_191], %563 {strides = array<i32>} : memref<8x4xf32, #tpu.memory_space<vmem>>, vector<8x4xf32>,
    return
  }
}

</mosaic_0001>

<llo_original>
// kernel: prediction_model_forward.1
$region0: #{prediction_model_forward.1}
  #allocation0 [shape = 'u32[]', space=smem, size = 0x4, offset = 0x4, fixed_abs, tag = 'smem constant byte address 0x4 - core index']
  #allocation1 [shape = 'u32[144,128]{1,0:T(1,128)}', space=vmem, size = 0x12000, scoped, tag = 'internal scratch']
  #allocation2 [shape = 'f32[8,8,128]{2,1,0:T(8,128)}', space=vmem, size = 0x8000, scoped, tag = 'scratch operand']
  #allocation3 [shape = 'f32[8,8,32]{2,1,0:T(8,128)}', space=vmem, size = 0x8000, scoped, tag = 'scratch operand']
  %s0 = inlined_call_operand.vmem [shape: f32[8,8,16], index: 0, kind: input, shape index: {}]
  %s1 = inlined_call_operand.vmem [shape: f32[16,128], index: 1, kind: input, shape index: {}]
  %s2 = inlined_call_operand.vmem [shape: f32[32,128], index: 2, kind: input, shape index: {}]
  %s3 = inlined_call_operand.vmem [shape: f32[1,128], index: 3, kind: input, shape index: {}]
  %s4 = inlined_call_operand.vmem [shape: f32[32,128], index: 4, kind: input, shape index: {}]
  %s5 = inlined_call_operand.vmem [shape: f32[32,128], index: 5, kind: input, shape index: {}]
  %s6 = inlined_call_operand.vmem [shape: f32[1,128], index: 6, kind: input, shape index: {}]
  %s7 = inlined_call_operand.vmem [shape: f32[32,4], index: 7, kind: input, shape index: {}]
  %s8 = inlined_call_operand.vmem [shape: f32[1,4], index: 8, kind: input, shape index: {}]
  %s9 = inlined_call_operand.vmem [shape: f32[8,4], index: 9, kind: output, shape index: {}]
  %s10 = sld [smem:[#allocation0]]
  $region46: #{prediction_model_forward.1} parent=0
    _
  %s12 = ssub.s32 1, %s10
  %s13 = scalar_select 0, %s12, %s10
  // Predicated region
  $region2: #{prediction_model_forward.1} parent=0 // pred_check
    _
  $region3: #{prediction_model_forward.1} parent=0 // pred_check_branch
    %15 = sbr.rel (0) target = $region5
  $region4: #{prediction_model_forward.1} parent=0 // pred_region
    _
  $region5: #{prediction_model_forward.1} parent=0 // pred_fallthru
    _
  // Predicated region
  $region6: #{prediction_model_forward.1} parent=0 // pred_check
    _
  $region7: #{prediction_model_forward.1} parent=0 // pred_check_branch
    %17 = sbr.rel (0) target = $region9
  $region8: #{prediction_model_forward.1} parent=0 // pred_region
    _
  $region9: #{prediction_model_forward.1} parent=0 // pred_fallthru
    _
  // Predicated region
  $region10: #{prediction_model_forward.1} parent=0 // pred_check
    _
  $region11: #{prediction_model_forward.1} parent=0 // pred_check_branch
    %19 = sbr.rel (0) target = $region13
  $region12: #{prediction_model_forward.1} parent=0 // pred_region
    _
  $region13: #{prediction_model_forward.1} parent=0 // pred_fallthru
    _
  // Predicated region
  $region14: #{prediction_model_forward.1} parent=0 // pred_check
    _
  $region15: #{prediction_model_forward.1} parent=0 // pred_check_branch
    %21 = sbr.rel (0) target = $region17
  $region16: #{prediction_model_forward.1} parent=0 // pred_region
    _
  $region17: #{prediction_model_forward.1} parent=0 // pred_fallthru
    _
  // Predicated region
  $region18: #{prediction_model_forward.1} parent=0 // pred_check
    _
  $region19: #{prediction_model_forward.1} parent=0 // pred_check_branch
    %23 = sbr.rel (0) target = $region21
  $region20: #{prediction_model_forward.1} parent=0 // pred_region
    _
  $region21: #{prediction_model_forward.1} parent=0 // pred_fallthru
    _
  // Predicated region
  $region22: #{prediction_model_forward.1} parent=0 // pred_check
    _
  $region23: #{prediction_model_forward.1} parent=0 // pred_check_branch
    %25 = sbr.rel (0) target = $region25
  $region24: #{prediction_model_forward.1} parent=0 // pred_region
    _
  $region25: #{prediction_model_forward.1} parent=0 // pred_fallthru
    _
  // Predicated region
  $region26: #{prediction_model_forward.1} parent=0 // pred_check
    _
  $region27: #{prediction_model_forward.1} parent=0 // pred_check_branch
    %27 = sbr.rel (0) target = $region29
  $region28: #{prediction_model_forward.1} parent=0 // pred_region
    _
  $region29: #{prediction_model_forward.1} parent=0 // pred_fallthru
    _
  // Predicated region
  $region30: #{prediction_model_forward.1} parent=0 // pred_check
    _
  $region31: #{prediction_model_forward.1} parent=0 // pred_check_branch
    %29 = sbr.rel (0) target = $region33
  $region32: #{prediction_model_forward.1} parent=0 // pred_region
    _
  $region33: #{prediction_model_forward.1} parent=0 // pred_fallthru
    _
  // Predicated region
  $region34: #{prediction_model_forward.1} parent=0 // pred_check
    _
  $region35: #{prediction_model_forward.1} parent=0 // pred_check_branch
    %31 = sbr.rel (0) target = $region37
  $region36: #{prediction_model_forward.1} parent=0 // pred_region
    _
  $region37: #{prediction_model_forward.1} parent=0 // pred_fallthru
    _
  %v32 = vld [vmem:[%s0] sm:$0xff]
  %v33 = vld [vmem:[%s0 + $0x8] sm:$0xff]
  %v34 = vld [vmem:[%s0 + $0x10] sm:$0xff]
  %v35 = vld [vmem:[%s0 + $0x18] sm:$0xff]
  %v36 = vld [vmem:[%s0 + $0x20] sm:$0xff]
  %v37 = vld [vmem:[%s0 + $0x28] sm:$0xff]
  %v38 = vld [vmem:[%s0 + $0x30] sm:$0xff]
  %v39 = vld [vmem:[%s0 + $0x38] sm:$0xff]
  %v40 = vcombine.low %v32, %v34
  %v41 = vcombine.high %v32, %v34
  %v43 = vunpack.c.l.s4 1983009808
  %v44 = vunpack.c.0.s8 %v43
  %v45 = vlaneseq
  %v46 = vshrl.u32 %v45, 7
  %v47 = vsub.s32 %v44, %v46
  %v48 = vrot.slane %v40, %v47
  %v50 = vunpack.c.l.s4 1983009808
  %v51 = vunpack.c.0.s8 %v50
  %v52 = vlaneseq
  %v53 = vshrl.u32 %v52, 7
  %v54 = vsub.s32 %v51, %v53
  %v55 = vrot.slane %v41, %v54
  %v56 = vcombine.low %v33, %v35
  %v57 = vcombine.high %v33, %v35
  %v59 = vunpack.c.l.s4 1983009808
  %v60 = vunpack.c.0.s8 %v59
  %v61 = vlaneseq
  %v62 = vshrl.u32 %v61, 7
  %v63 = vsub.s32 %v60, %v62
  %v64 = vrot.slane %v56, %v63
  %v66 = vunpack.c.l.s4 1983009808
  %v67 = vunpack.c.0.s8 %v66
  %v68 = vlaneseq
  %v69 = vshrl.u32 %v68, 7
  %v70 = vsub.s32 %v67, %v69
  %v71 = vrot.slane %v57, %v70
  %v72 = vcombine.low %v36, %v38
  %v73 = vcombine.high %v36, %v38
  %v75 = vunpack.c.l.s4 1983009808
  %v76 = vunpack.c.0.s8 %v75
  %v77 = vlaneseq
  %v78 = vshrl.u32 %v77, 7
  %v79 = vsub.s32 %v76, %v78
  %v80 = vrot.slane %v72, %v79
  %v82 = vunpack.c.l.s4 1983009808
  %v83 = vunpack.c.0.s8 %v82
  %v84 = vlaneseq
  %v85 = vshrl.u32 %v84, 7
  %v86 = vsub.s32 %v83, %v85
  %v87 = vrot.slane %v73, %v86
  %v88 = vcombine.low %v37, %v39
  %v89 = vcombine.high %v37, %v39
  %v91 = vunpack.c.l.s4 1983009808
  %v92 = vunpack.c.0.s8 %v91
  %v93 = vlaneseq
  %v94 = vshrl.u32 %v93, 7
  %v95 = vsub.s32 %v92, %v94
  %v96 = vrot.slane %v88, %v95
  %v98 = vunpack.c.l.s4 1983009808
  %v99 = vunpack.c.0.s8 %v98
  %v100 = vlaneseq
  %v101 = vshrl.u32 %v100, 7
  %v102 = vsub.s32 %v99, %v101
  %v103 = vrot.slane %v89, %v102
  %v104 = vcombine.low %v48, %v64
  %v105 = vcombine.high %v48, %v64
  %v107 = vunpack.c.l.s4 1934713408
  %v108 = vunpack.c.0.s8 %v107
  %v109 = vlaneseq
  %v110 = vshrl.u32 %v109, 7
  %v111 = vsub.s32 %v108, %v110
  %v112 = vrot.slane %v104, %v111
  %v114 = vunpack.c.l.s4 1934713408
  %v115 = vunpack.c.0.s8 %v114
  %v116 = vlaneseq
  %v117 = vshrl.u32 %v116, 7
  %v118 = vsub.s32 %v115, %v117
  %v119 = vrot.slane %v105, %v118
  %v120 = vcombine.low %v55, %v71
  %v121 = vcombine.high %v55, %v71
  %v123 = vunpack.c.l.s4 1934713408
  %v124 = vunpack.c.0.s8 %v123
  %v125 = vlaneseq
  %v126 = vshrl.u32 %v125, 7
  %v127 = vsub.s32 %v124, %v126
  %v128 = vrot.slane %v120, %v127
  %v130 = vunpack.c.l.s4 1934713408
  %v131 = vunpack.c.0.s8 %v130
  %v132 = vlaneseq
  %v133 = vshrl.u32 %v132, 7
  %v134 = vsub.s32 %v131, %v133
  %v135 = vrot.slane %v121, %v134
  %v136 = vcombine.low %v80, %v96
  %v137 = vcombine.high %v80, %v96
  %v139 = vunpack.c.l.s4 1934713408
  %v140 = vunpack.c.0.s8 %v139
  %v141 = vlaneseq
  %v142 = vshrl.u32 %v141, 7
  %v143 = vsub.s32 %v140, %v142
  %v144 = vrot.slane %v136, %v143
  %v146 = vunpack.c.l.s4 1934713408
  %v147 = vunpack.c.0.s8 %v146
  %v148 = vlaneseq
  %v149 = vshrl.u32 %v148, 7
  %v150 = vsub.s32 %v147, %v149
  %v151 = vrot.slane %v137, %v150
  %v152 = vcombine.low %v87, %v103
  %v153 = vcombine.high %v87, %v103
  %v155 = vunpack.c.l.s4 1934713408
  %v156 = vunpack.c.0.s8 %v155
  %v157 = vlaneseq
  %v158 = vshrl.u32 %v157, 7
  %v159 = vsub.s32 %v156, %v158
  %v160 = vrot.slane %v152, %v159
  %v162 = vunpack.c.l.s4 1934713408
  %v163 = vunpack.c.0.s8 %v162
  %v164 = vlaneseq
  %v165 = vshrl.u32 %v164, 7
  %v166 = vsub.s32 %v163, %v165
  %v167 = vrot.slane %v153, %v166
  %v168 = vcombine.low %v112, %v144
  %v169 = vcombine.high %v112, %v144
  %v170 = vcombine.low %v119, %v151
  %v171 = vcombine.high %v119, %v151
  %v172 = vcombine.low %v128, %v160
  %v173 = vcombine.high %v128, %v160
  %v174 = vcombine.low %v135, %v167
  %v175 = vcombine.high %v135, %v167
  %v176 = vld [vmem:[%s1] sm:$0xff]
  %v177 = vld [vmem:[%s1 + $0x8] sm:$0xff]
  %v178 = vld [vmem:[%s3] sm:$0x1]
  %v180 = vlaneseq
  %v181 = vshrl.u32 %v180, 7
  %v182 = vsub.s32 0, %v181
  %v183 = vrot.slane %v178, %v182
  %vm185 = vcmask 130048
  %v187 = vsel %vm185, %v168, 0
  %v190 = vsel %vm185, %v169, 0
  %v193 = vsel %vm185, %v170, 0
  %v196 = vsel %vm185, %v171, 0
  %v199 = vsel %vm185, %v172, 0
  %v202 = vsel %vm185, %v173, 0
  %v205 = vsel %vm185, %v174, 0
  %v208 = vsel %vm185, %v175, 0
  %210 = vmatprep.subr.mxu0 0.0
  %211 = vmatpush1.msra.mxu0 %v176
  %212 = vmatprep.subr.mxu0 0.0
  %213 = vmatpush1.msra.mxu0 %v177
  %214 = vmatprep.subr.mxu0 0.0
  %215 = vmatpush1.msra.mxu0 0.0
  %216 = vmatprep.subr.mxu0 0.0
  %217 = vmatpush1.msra.mxu0 0.0
  %218 = vmatprep.subr.mxu0 0.0
  %219 = vmatpush1.msra.mxu0 0.0
  %220 = vmatprep.subr.mxu0 0.0
  %221 = vmatpush1.msra.mxu0 0.0
  %222 = vmatprep.subr.mxu0 0.0
  %223 = vmatpush1.msra.mxu0 0.0
  %224 = vmatprep.subr.mxu0 0.0
  %225 = vmatpush1.msra.mxu0 0.0
  %226 = vmatprep.subr.mxu0 0.0
  %227 = vmatpush1.msra.mxu0 0.0
  %228 = vmatprep.subr.mxu0 0.0
  %229 = vmatpush1.msra.mxu0 0.0
  %230 = vmatprep.subr.mxu0 0.0
  %231 = vmatpush1.msra.mxu0 0.0
  %232 = vmatprep.subr.mxu0 0.0
  %233 = vmatpush1.msra.mxu0 0.0
  %234 = vmatprep.subr.mxu0 0.0
  %235 = vmatpush1.msra.mxu0 0.0
  %236 = vmatprep.subr.mxu0 0.0
  %237 = vmatpush1.msra.mxu0 0.0
  %238 = vmatprep.subr.mxu0 0.0
  %239 = vmatpush1.msra.mxu0 0.0
  %240 = vmatprep.subr.mxu0 0.0
  %241 = vmatpush1.msra.mxu0 0.0
  %242 = vmatprep.subr.mxu0 0.0
  %243 = vmatpush1.msra.mxu0 0.0
  %244 = vmatprep.subr.mxu0 0.0
  %245 = vmatpush1.msra.mxu0 0.0
  %246 = vmatprep.subr.mxu0 0.0
  %247 = vmatpush1.msra.mxu0 0.0
  %248 = vmatprep.subr.mxu0 0.0
  %249 = vmatpush1.msra.mxu0 0.0
  %250 = vmatprep.subr.mxu0 0.0
  %251 = vmatpush1.msra.mxu0 0.0
  %252 = vmatprep.subr.mxu0 0.0
  %253 = vmatpush1.msra.mxu0 0.0
  %254 = vmatprep.subr.mxu0 0.0
  %255 = vmatpush1.msra.mxu0 0.0
  %256 = vmatprep.subr.mxu0 0.0
  %257 = vmatpush1.msra.mxu0 0.0
  %258 = vmatprep.subr.mxu0 0.0
  %259 = vmatpush1.msra.mxu0 0.0
  %260 = vmatprep.subr.mxu0 0.0
  %261 = vmatpush1.msra.mxu0 0.0
  %262 = vmatprep.subr.mxu0 0.0
  %263 = vmatpush1.msra.mxu0 0.0
  %264 = vmatprep.subr.mxu0 0.0
  %265 = vmatpush1.msra.mxu0 0.0
  %266 = vmatprep.subr.mxu0 0.0
  %267 = vmatpush1.msra.mxu0 0.0
  %268 = vmatprep.subr.mxu0 0.0
  %269 = vmatpush1.msra.mxu0 0.0
  %270 = vmatprep.subr.mxu0 0.0
  %271 = vmatpush1.msra.mxu0 0.0
  %272 = vmatprep.subr.mxu0 0.0
  %273 = vmatpush1.msra.mxu0 0.0
  %274 = vmatprep.mubr.f32.mxu0 0.0
  %275 = vmatmul.mubr.f32.gmra.mrb[0].mxu0 %v187
  %v276 = vpop.f32.mrb[0].mxu0
  %v277 = vadd.f32 %v183, %v276
  %v278 = vpop.f32.mrb[0].mxu0
  %279 = vmatprep.mubr.f32.mxu0 0.0
  %280 = vmatmul.mubr.f32.gmra.mrb[0].mxu0 %v190
  %v281 = vpop.f32.mrb[0].mxu0
  %v282 = vadd.f32 %v183, %v281
  %v283 = vpop.f32.mrb[0].mxu0
  %284 = vmatprep.mubr.f32.mxu0 0.0
  %285 = vmatmul.mubr.f32.gmra.mrb[0].mxu0 %v193
  %v286 = vpop.f32.mrb[0].mxu0
  %v287 = vadd.f32 %v183, %v286
  %v288 = vpop.f32.mrb[0].mxu0
  %289 = vmatprep.mubr.f32.mxu0 0.0
  %290 = vmatmul.mubr.f32.gmra.mrb[0].mxu0 %v196
  %v291 = vpop.f32.mrb[0].mxu0
  %v292 = vadd.f32 %v183, %v291
  %v293 = vpop.f32.mrb[0].mxu0
  %294 = vmatprep.mubr.f32.mxu0 0.0
  %295 = vmatmul.mubr.f32.gmra.mrb[0].mxu0 %v199
  %v296 = vpop.f32.mrb[0].mxu0
  %v297 = vadd.f32 %v183, %v296
  %v298 = vpop.f32.mrb[0].mxu0
  %299 = vmatprep.mubr.f32.mxu0 0.0
  %300 = vmatmul.mubr.f32.gmra.mrb[0].mxu0 %v202
  %v301 = vpop.f32.mrb[0].mxu0
  %v302 = vadd.f32 %v183, %v301
  %v303 = vpop.f32.mrb[0].mxu0
  %304 = vmatprep.mubr.f32.mxu0 0.0
  %305 = vmatmul.mubr.f32.gmra.mrb[0].mxu0 %v205
  %v306 = vpop.f32.mrb[0].mxu0
  %v307 = vadd.f32 %v183, %v306
  %v308 = vpop.f32.mrb[0].mxu0
  %309 = vmatprep.mubr.f32.mxu0 0.0
  %310 = vmatmul.mubr.f32.gmra.mrb[0].mxu0 %v208
  %v311 = vpop.f32.mrb[0].mxu0
  %v312 = vadd.f32 %v183, %v311
  %v313 = vpop.f32.mrb[0].mxu0
  %314 = vdwg.mxu0
  %315 = vst [vmem:[#allocation2] sm:$0xff] %v277
  %316 = vst [vmem:[#allocation2 + $0x8] sm:$0xff] %v282
  %317 = vst [vmem:[#allocation2 + $0x10] sm:$0xff] %v287
  %318 = vst [vmem:[#allocation2 + $0x18] sm:$0xff] %v292
  %319 = vst [vmem:[#allocation2 + $0x20] sm:$0xff] %v297
  %320 = vst [vmem:[#allocation2 + $0x28] sm:$0xff] %v302
  %321 = vst [vmem:[#allocation2 + $0x30] sm:$0xff] %v307
  %322 = vst [vmem:[#allocation2 + $0x38] sm:$0xff] %v312
  %v323 = vld [vmem:[#allocation2] sm:$0xff]
  %v324 = vld [vmem:[%s2] sm:$0xff]
  %v325 = vld [vmem:[%s2 + $0x8] sm:$0xff]
  %v326 = vld [vmem:[%s2 + $0x10] sm:$0xff]
  %v327 = vld [vmem:[%s2 + $0x18] sm:$0xff]
  %vm328 = vcmask 261120
  %v330 = vsel %vm328, 0.0, 0
  %332 = vmatprep.subr.mxu0 0.0
  %333 = vmatpush1.msra.mxu0 %v324
  %334 = vmatprep.subr.mxu0 0.0
  %335 = vmatpush1.msra.mxu0 %v325
  %336 = vmatprep.subr.mxu0 0.0
  %337 = vmatpush1.msra.mxu0 %v326
  %338 = vmatprep.subr.mxu0 0.0
  %339 = vmatpush1.msra.mxu0 %v327
  %340 = vmatprep.subr.mxu0 0.0
  %341 = vmatpush1.msra.mxu0 0.0
  %342 = vmatprep.subr.mxu0 0.0
  %343 = vmatpush1.msra.mxu0 0.0
  %344 = vmatprep.subr.mxu0 0.0
  %345 = vmatpush1.msra.mxu0 0.0
  %346 = vmatprep.subr.mxu0 0.0
  %347 = vmatpush1.msra.mxu0 0.0
  %348 = vmatprep.subr.mxu0 0.0
  %349 = vmatpush1.msra.mxu0 0.0
  %350 = vmatprep.subr.mxu0 0.0
  %351 = vmatpush1.msra.mxu0 0.0
  %352 = vmatprep.subr.mxu0 0.0
  %353 = vmatpush1.msra.mxu0 0.0
  %354 = vmatprep.subr.mxu0 0.0
  %355 = vmatpush1.msra.mxu0 0.0
  %356 = vmatprep.subr.mxu0 0.0
  %357 = vmatpush1.msra.mxu0 0.0
  %358 = vmatprep.subr.mxu0 0.0
  %359 = vmatpush1.msra.mxu0 0.0
  %360 = vmatprep.subr.mxu0 0.0
  %361 = vmatpush1.msra.mxu0 0.0
  %362 = vmatprep.subr.mxu0 0.0
  %363 = vmatpush1.msra.mxu0 0.0
  %364 = vmatprep.subr.mxu0 0.0
  %365 = vmatpush1.msra.mxu0 0.0
  %366 = vmatprep.subr.mxu0 0.0
  %367 = vmatpush1.msra.mxu0 0.0
  %368 = vmatprep.subr.mxu0 0.0
  %369 = vmatpush1.msra.mxu0 0.0
  %370 = vmatprep.subr.mxu0 0.0
  %371 = vmatpush1.msra.mxu0 0.0
  %372 = vmatprep.subr.mxu0 0.0
  %373 = vmatpush1.msra.mxu0 0.0
  %374 = vmatprep.subr.mxu0 0.0
  %375 = vmatpush1.msra.mxu0 0.0
  %376 = vmatprep.subr.mxu0 0.0
  %377 = vmatpush1.msra.mxu0 0.0
  %378 = vmatprep.subr.mxu0 0.0
  %379 = vmatpush1.msra.mxu0 0.0
  %380 = vmatprep.subr.mxu0 0.0
  %381 = vmatpush1.msra.mxu0 0.0
  %382 = vmatprep.subr.mxu0 0.0
  %383 = vmatpush1.msra.mxu0 0.0
  %384 = vmatprep.subr.mxu0 0.0
  %385 = vmatpush1.msra.mxu0 0.0
  %386 = vmatprep.subr.mxu0 0.0
  %387 = vmatpush1.msra.mxu0 0.0
  %388 = vmatprep.subr.mxu0 0.0
  %389 = vmatpush1.msra.mxu0 0.0
  %390 = vmatprep.subr.mxu0 0.0
  %391 = vmatpush1.msra.mxu0 0.0
  %392 = vmatprep.subr.mxu0 0.0
  %393 = vmatpush1.msra.mxu0 0.0
  %394 = vmatprep.subr.mxu0 0.0
  %395 = vmatpush1.msra.mxu0 0.0
  %396 = vmatprep.mubr.f32.mxu0 0.0
  %397 = vmatmul.mubr.f32.gmra.mrb[0].mxu0 %v330
  %v398 = vpop.f32.mrb[0].mxu0
  %v399 = vadd.f32 0.0, %v398
  %v400 = vpop.f32.mrb[0].mxu0
  %401 = vdwg.mxu0
  %v402 = vadd.f32 %v323, %v399
  %v403 = vxor.u32 %v402, 2147483648
  %v404 = vmul.f32 %v403, 1.442695
  %v405 = vpow.pop %v404
  %v406 = vadd.f32 %v405, 1.0
  %v407 = vrcp.pop %v406
  %v408 = vmul.f32 1.0, %v407
  %v409 = vtanh.pop %v402
  %v410 = vmul.f32 %v408, 0.0
  %412 = vrot.lane.b32.xlu0 %v409, 64
  %v413 = vpop.permute.xlu0 %412
  %v415 = vmul.f32 %v408, %v413
  %417 = vrot.lane.b32.xlu0 %v415, 32
  %v418 = vpop.permute.xlu0 %417
  %v420 = vadd.f32 %v410, %v418
  %v421 = vtanh.pop %v420
  %423 = vrot.lane.b32.xlu0 %v421, 64
  %v424 = vpop.permute.xlu0 %423
  %v426 = vmul.f32 %v408, %v424
  %428 = vrot.lane.b32.xlu0 %v426, 32
  %v429 = vpop.permute.xlu0 %428
  %431 = vst.msk [vmem:[#allocation3] sm:$0xff] %vm328, %v429
  %s432 = scalar_lea.vmem [#allocation2], 8
  %v433 = vld [vmem:[%s432] sm:$0xff]
  %v434 = vld [vmem:[%s2] sm:$0xff]
  %v435 = vld [vmem:[%s2 + $0x8] sm:$0xff]
  %v436 = vld [vmem:[%s2 + $0x10] sm:$0xff]
  %v437 = vld [vmem:[%s2 + $0x18] sm:$0xff]
  %v438 = vsel %vm328, %v429, 0
  %440 = vmatprep.subr.mxu0 0.0
  %441 = vmatpush1.msra.mxu0 %v434
  %442 = vmatprep.subr.mxu0 0.0
  %443 = vmatpush1.msra.mxu0 %v435
  %444 = vmatprep.subr.mxu0 0.0
  %445 = vmatpush1.msra.mxu0 %v436
  %446 = vmatprep.subr.mxu0 0.0
  %447 = vmatpush1.msra.mxu0 %v437
  %448 = vmatprep.subr.mxu0 0.0
  %449 = vmatpush1.msra.mxu0 0.0
  %450 = vmatprep.subr.mxu0 0.0
  %451 = vmatpush1.msra.mxu0 0.0
  %452 = vmatprep.subr.mxu0 0.0
  %453 = vmatpush1.msra.mxu0 0.0
  %454 = vmatprep.subr.mxu0 0.0
  %455 = vmatpush1.msra.mxu0 0.0
  %456 = vmatprep.subr.mxu0 0.0
  %457 = vmatpush1.msra.mxu0 0.0
  %458 = vmatprep.subr.mxu0 0.0
  %459 = vmatpush1.msra.mxu0 0.0
  %460 = vmatprep.subr.mxu0 0.0
  %461 = vmatpush1.msra.mxu0 0.0
  %462 = vmatprep.subr.mxu0 0.0
  %463 = vmatpush1.msra.mxu0 0.0
  %464 = vmatprep.subr.mxu0 0.0
  %465 = vmatpush1.msra.mxu0 0.0
  %466 = vmatprep.subr.mxu0 0.0
  %467 = vmatpush1.msra.mxu0 0.0
  %468 = vmatprep.subr.mxu0 0.0
  %469 = vmatpush1.msra.mxu0 0.0
  %470 = vmatprep.subr.mxu0 0.0
  %471 = vmatpush1.msra.mxu0 0.0
  %472 = vmatprep.subr.mxu0 0.0
  %473 = vmatpush1.msra.mxu0 0.0
  %474 = vmatprep.subr.mxu0 0.0
  %475 = vmatpush1.msra.mxu0 0.0
  %476 = vmatprep.subr.mxu0 0.0
  %477 = vmatpush1.msra.mxu0 0.0
  %478 = vmatprep.subr.mxu0 0.0
  %479 = vmatpush1.msra.mxu0 0.0
  %480 = vmatprep.subr.mxu0 0.0
  %481 = vmatpush1.msra.mxu0 0.0
  %482 = vmatprep.subr.mxu0 0.0
  %483 = vmatpush1.msra.mxu0 0.0
  %484 = vmatprep.subr.mxu0 0.0
  %485 = vmatpush1.msra.mxu0 0.0
  %486 = vmatprep.subr.mxu0 0.0
  %487 = vmatpush1.msra.mxu0 0.0
  %488 = vmatprep.subr.mxu0 0.0
  %489 = vmatpush1.msra.mxu0 0.0
  %490 = vmatprep.subr.mxu0 0.0
  %491 = vmatpush1.msra.mxu0 0.0
  %492 = vmatprep.subr.mxu0 0.0
  %493 = vmatpush1.msra.mxu0 0.0
  %494 = vmatprep.subr.mxu0 0.0
  %495 = vmatpush1.msra.mxu0 0.0
  %496 = vmatprep.subr.mxu0 0.0
  %497 = vmatpush1.msra.mxu0 0.0
  %498 = vmatprep.subr.mxu0 0.0
  %499 = vmatpush1.msra.mxu0 0.0
  %500 = vmatprep.subr.mxu0 0.0
  %501 = vmatpush1.msra.mxu0 0.0
  %502 = vmatprep.subr.mxu0 0.0
  %503 = vmatpush1.msra.mxu0 0.0
  %504 = vmatprep.mubr.f32.mxu0 0.0
  %505 = vmatmul.mubr.f32.gmra.mrb[0].mxu0 %v438
  %v506 = vpop.f32.mrb[0].mxu0
  %v507 = vadd.f32 0.0, %v506
  %v508 = vpop.f32.mrb[0].mxu0
  %509 = vdwg.mxu0
  %v510 = vadd.f32 %v433, %v507
  %v511 = vxor.u32 %v510, 2147483648
  %v512 = vmul.f32 %v511, 1.442695
  %v513 = vpow.pop %v512
  %v514 = vadd.f32 %v513, 1.0
  %v515 = vrcp.pop %v514
  %v516 = vmul.f32 1.0, %v515
  %v517 = vtanh.pop %v510
  %v518 = vmul.f32 %v516, %v420
  %520 = vrot.lane.b32.xlu0 %v517, 64
  %v521 = vpop.permute.xlu0 %520
  %v523 = vmul.f32 %v516, %v521
  %525 = vrot.lane.b32.xlu0 %v523, 32
  %v526 = vpop.permute.xlu0 %525
  %v528 = vadd.f32 %v518, %v526
  %v529 = vtanh.pop %v528
  %531 = vrot.lane.b32.xlu0 %v529, 64
  %v532 = vpop.permute.xlu0 %531
  %v534 = vmul.f32 %v516, %v532
  %536 = vrot.lane.b32.xlu0 %v534, 32
  %v537 = vpop.permute.xlu0 %536
  %s539 = scalar_lea.vmem [#allocation3], 8
  %540 = vst.msk [vmem:[%s539] sm:$0xff] %vm328, %v537
  %s541 = scalar_lea.vmem [#allocation2], 16
  %v542 = vld [vmem:[%s541] sm:$0xff]
  %v543 = vld [vmem:[%s2] sm:$0xff]
  %v544 = vld [vmem:[%s2 + $0x8] sm:$0xff]
  %v545 = vld [vmem:[%s2 + $0x10] sm:$0xff]
  %v546 = vld [vmem:[%s2 + $0x18] sm:$0xff]
  %v547 = vsel %vm328, %v537, 0
  %549 = vmatprep.subr.mxu0 0.0
  %550 = vmatpush1.msra.mxu0 %v543
  %551 = vmatprep.subr.mxu0 0.0
  %552 = vmatpush1.msra.mxu0 %v544
  %553 = vmatprep.subr.mxu0 0.0
  %554 = vmatpush1.msra.mxu0 %v545
  %555 = vmatprep.subr.mxu0 0.0
  %556 = vmatpush1.msra.mxu0 %v546
  %557 = vmatprep.subr.mxu0 0.0
  %558 = vmatpush1.msra.mxu0 0.0
  %559 = vmatprep.subr.mxu0 0.0
  %560 = vmatpush1.msra.mxu0 0.0
  %561 = vmatprep.subr.mxu0 0.0
  %562 = vmatpush1.msra.mxu0 0.0
  %563 = vmatprep.subr.mxu0 0.0
  %564 = vmatpush1.msra.mxu0 0.0
  %565 = vmatprep.subr.mxu0 0.0
  %566 = vmatpush1.msra.mxu0 0.0
  %567 = vmatprep.subr.mxu0 0.0
  %568 = vmatpush1.msra.mxu0 0.0
  %569 = vmatprep.subr.mxu0 0.0
  %570 = vmatpush1.msra.mxu0 0.0
  %571 = vmatprep.subr.mxu0 0.0
  %572 = vmatpush1.msra.mxu0 0.0
  %573 = vmatprep.subr.mxu0 0.0
  %574 = vmatpush1.msra.mxu0 0.0
  %575 = vmatprep.subr.mxu0 0.0
  %576 = vmatpush1.msra.mxu0 0.0
  %577 = vmatprep.subr.mxu0 0.0
  %578 = vmatpush1.msra.mxu0 0.0
  %579 = vmatprep.subr.mxu0 0.0
  %580 = vmatpush1.msra.mxu0 0.0
  %581 = vmatprep.subr.mxu0 0.0
  %582 = vmatpush1.msra.mxu0 0.0
  %583 = vmatprep.subr.mxu0 0.0
  %584 = vmatpush1.msra.mxu0 0.0
  %585 = vmatprep.subr.mxu0 0.0
  %586 = vmatpush1.msra.mxu0 0.0
  %587 = vmatprep.subr.mxu0 0.0
  %588 = vmatpush1.msra.mxu0 0.0
  %589 = vmatprep.subr.mxu0 0.0
  %590 = vmatpush1.msra.mxu0 0.0
  %591 = vmatprep.subr.mxu0 0.0
  %592 = vmatpush1.msra.mxu0 0.0
  %593 = vmatprep.subr.mxu0 0.0
  %594 = vmatpush1.msra.mxu0 0.0
  %595 = vmatprep.subr.mxu0 0.0
  %596 = vmatpush1.msra.mxu0 0.0
  %597 = vmatprep.subr.mxu0 0.0
  %598 = vmatpush1.msra.mxu0 0.0
  %599 = vmatprep.subr.mxu0 0.0
  %600 = vmatpush1.msra.mxu0 0.0
  %601 = vmatprep.subr.mxu0 0.0
  %602 = vmatpush1.msra.mxu0 0.0
  %603 = vmatprep.subr.mxu0 0.0
  %604 = vmatpush1.msra.mxu0 0.0
  %605 = vmatprep.subr.mxu0 0.0
  %606 = vmatpush1.msra.mxu0 0.0
  %607 = vmatprep.subr.mxu0 0.0
  %608 = vmatpush1.msra.mxu0 0.0
  %609 = vmatprep.subr.mxu0 0.0
  %610 = vmatpush1.msra.mxu0 0.0
  %611 = vmatprep.subr.mxu0 0.0
  %612 = vmatpush1.msra.mxu0 0.0
  %613 = vmatprep.mubr.f32.mxu0 0.0
  %614 = vmatmul.mubr.f32.gmra.mrb[0].mxu0 %v547
  %v615 = vpop.f32.mrb[0].mxu0
  %v616 = vadd.f32 0.0, %v615
  %v617 = vpop.f32.mrb[0].mxu0
  %618 = vdwg.mxu0
  %v619 = vadd.f32 %v542, %v616
  %v620 = vxor.u32 %v619, 2147483648
  %v621 = vmul.f32 %v620, 1.442695
  %v622 = vpow.pop %v621
  %v623 = vadd.f32 %v622, 1.0
  %v624 = vrcp.pop %v623
  %v625 = vmul.f32 1.0, %v624
  %v626 = vtanh.pop %v619
  %v627 = vmul.f32 %v625, %v528
  %629 = vrot.lane.b32.xlu0 %v626, 64
  %v630 = vpop.permute.xlu0 %629
  %v632 = vmul.f32 %v625, %v630
  %634 = vrot.lane.b32.xlu0 %v632, 32
  %v635 = vpop.permute.xlu0 %634
  %v637 = vadd.f32 %v627, %v635
  %v638 = vtanh.pop %v637
  %640 = vrot.lane.b32.xlu0 %v638, 64
  %v641 = vpop.permute.xlu0 %640
  %v643 = vmul.f32 %v625, %v641
  %645 = vrot.lane.b32.xlu0 %v643, 32
  %v646 = vpop.permute.xlu0 %645
  %s648 = scalar_lea.vmem [#allocation3], 16
  %649 = vst.msk [vmem:[%s648] sm:$0xff] %vm328, %v646
  %s650 = scalar_lea.vmem [#allocation2], 24
  %v651 = vld [vmem:[%s650] sm:$0xff]
  %v652 = vld [vmem:[%s2] sm:$0xff]
  %v653 = vld [vmem:[%s2 + $0x8] sm:$0xff]
  %v654 = vld [vmem:[%s2 + $0x10] sm:$0xff]
  %v655 = vld [vmem:[%s2 + $0x18] sm:$0xff]
  %v656 = vsel %vm328, %v646, 0
  %658 = vmatprep.subr.mxu0 0.0
  %659 = vmatpush1.msra.mxu0 %v652
  %660 = vmatprep.subr.mxu0 0.0
  %661 = vmatpush1.msra.mxu0 %v653
  %662 = vmatprep.subr.mxu0 0.0
  %663 = vmatpush1.msra.mxu0 %v654
  %664 = vmatprep.subr.mxu0 0.0
  %665 = vmatpush1.msra.mxu0 %v655
  %666 = vmatprep.subr.mxu0 0.0
  %667 = vmatpush1.msra.mxu0 0.0
  %668 = vmatprep.subr.mxu0 0.0
  %669 = vmatpush1.msra.mxu0 0.0
  %670 = vmatprep.subr.mxu0 0.0
  %671 = vmatpush1.msra.mxu0 0.0
  %672 = vmatprep.subr.mxu0 0.0
  %673 = vmatpush1.msra.mxu0 0.0
  %674 = vmatprep.subr.mxu0 0.0
  %675 = vmatpush1.msra.mxu0 0.0
  %676 = vmatprep.subr.mxu0 0.0
  %677 = vmatpush1.msra.mxu0 0.0
  %678 = vmatprep.subr.mxu0 0.0
  %679 = vmatpush1.msra.mxu0 0.0
  %680 = vmatprep.subr.mxu0 0.0
  %681 = vmatpush1.msra.mxu0 0.0
  %682 = vmatprep.subr.mxu0 0.0
  %683 = vmatpush1.msra.mxu0 0.0
  %684 = vmatprep.subr.mxu0 0.0
  %685 = vmatpush1.msra.mxu0 0.0
  %686 = vmatprep.subr.mxu0 0.0
  %687 = vmatpush1.msra.mxu0 0.0
  %688 = vmatprep.subr.mxu0 0.0
  %689 = vmatpush1.msra.mxu0 0.0
  %690 = vmatprep.subr.mxu0 0.0
  %691 = vmatpush1.msra.mxu0 0.0
  %692 = vmatprep.subr.mxu0 0.0
  %693 = vmatpush1.msra.mxu0 0.0
  %694 = vmatprep.subr.mxu0 0.0
  %695 = vmatpush1.msra.mxu0 0.0
  %696 = vmatprep.subr.mxu0 0.0
  %697 = vmatpush1.msra.mxu0 0.0
  %698 = vmatprep.subr.mxu0 0.0
  %699 = vmatpush1.msra.mxu0 0.0
  %700 = vmatprep.subr.mxu0 0.0
  %701 = vmatpush1.msra.mxu0 0.0
  %702 = vmatprep.subr.mxu0 0.0
  %703 = vmatpush1.msra.mxu0 0.0
  %704 = vmatprep.subr.mxu0 0.0
  %705 = vmatpush1.msra.mxu0 0.0
  %706 = vmatprep.subr.mxu0 0.0
  %707 = vmatpush1.msra.mxu0 0.0
  %708 = vmatprep.subr.mxu0 0.0
  %709 = vmatpush1.msra.mxu0 0.0
  %710 = vmatprep.subr.mxu0 0.0
  %711 = vmatpush1.msra.mxu0 0.0
  %712 = vmatprep.subr.mxu0 0.0
  %713 = vmatpush1.msra.mxu0 0.0
  %714 = vmatprep.subr.mxu0 0.0
  %715 = vmatpush1.msra.mxu0 0.0
  %716 = vmatprep.subr.mxu0 0.0
  %717 = vmatpush1.msra.mxu0 0.0
  %718 = vmatprep.subr.mxu0 0.0
  %719 = vmatpush1.msra.mxu0 0.0
  %720 = vmatprep.subr.mxu0 0.0
  %721 = vmatpush1.msra.mxu0 0.0
  %722 = vmatprep.mubr.f32.mxu0 0.0
  %723 = vmatmul.mubr.f32.gmra.mrb[0].mxu0 %v656
  %v724 = vpop.f32.mrb[0].mxu0
  %v725 = vadd.f32 0.0, %v724
  %v726 = vpop.f32.mrb[0].mxu0
  %727 = vdwg.mxu0
  %v728 = vadd.f32 %v651, %v725
  %v729 = vxor.u32 %v728, 2147483648
  %v730 = vmul.f32 %v729, 1.442695
  %v731 = vpow.pop %v730
  %v732 = vadd.f32 %v731, 1.0
  %v733 = vrcp.pop %v732
  %v734 = vmul.f32 1.0, %v733
  %v735 = vtanh.pop %v728
  %v736 = vmul.f32 %v734, %v637
  %738 = vrot.lane.b32.xlu0 %v735, 64
  %v739 = vpop.permute.xlu0 %738
  %v741 = vmul.f32 %v734, %v739
  %743 = vrot.lane.b32.xlu0 %v741, 32
  %v744 = vpop.permute.xlu0 %743
  %v746 = vadd.f32 %v736, %v744
  %v747 = vtanh.pop %v746
  %749 = vrot.lane.b32.xlu0 %v747, 64
  %v750 = vpop.permute.xlu0 %749
  %v752 = vmul.f32 %v734, %v750
  %754 = vrot.lane.b32.xlu0 %v752, 32
  %v755 = vpop.permute.xlu0 %754
  %s757 = scalar_lea.vmem [#allocation3], 24
  %758 = vst.msk [vmem:[%s757] sm:$0xff] %vm328, %v755
  %s759 = scalar_lea.vmem [#allocation2], 32
  %v760 = vld [vmem:[%s759] sm:$0xff]
  %v761 = vld [vmem:[%s2] sm:$0xff]
  %v762 = vld [vmem:[%s2 + $0x8] sm:$0xff]
  %v763 = vld [vmem:[%s2 + $0x10] sm:$0xff]
  %v764 = vld [vmem:[%s2 + $0x18] sm:$0xff]
  %v765 = vsel %vm328, %v755, 0
  %767 = vmatprep.subr.mxu0 0.0
  %768 = vmatpush1.msra.mxu0 %v761
  %769 = vmatprep.subr.mxu0 0.0
  %770 = vmatpush1.msra.mxu0 %v762
  %771 = vmatprep.subr.mxu0 0.0
  %772 = vmatpush1.msra.mxu0 %v763
  %773 = vmatprep.subr.mxu0 0.0
  %774 = vmatpush1.msra.mxu0 %v764
  %775 = vmatprep.subr.mxu0 0.0
  %776 = vmatpush1.msra.mxu0 0.0
  %777 = vmatprep.subr.mxu0 0.0
  %778 = vmatpush1.msra.mxu0 0.0
  %779 = vmatprep.subr.mxu0 0.0
  %780 = vmatpush1.msra.mxu0 0.0
  %781 = vmatprep.subr.mxu0 0.0
  %782 = vmatpush1.msra.mxu0 0.0
  %783 = vmatprep.subr.mxu0 0.0
  %784 = vmatpush1.msra.mxu0 0.0
  %785 = vmatprep.subr.mxu0 0.0
  %786 = vmatpush1.msra.mxu0 0.0
  %787 = vmatprep.subr.mxu0 0.0
  %788 = vmatpush1.msra.mxu0 0.0
  %789 = vmatprep.subr.mxu0 0.0
  %790 = vmatpush1.msra.mxu0 0.0
  %791 = vmatprep.subr.mxu0 0.0
  %792 = vmatpush1.msra.mxu0 0.0
  %793 = vmatprep.subr.mxu0 0.0
  %794 = vmatpush1.msra.mxu0 0.0
  %795 = vmatprep.subr.mxu0 0.0
  %796 = vmatpush1.msra.mxu0 0.0
  %797 = vmatprep.subr.mxu0 0.0
  %798 = vmatpush1.msra.mxu0 0.0
  %799 = vmatprep.subr.mxu0 0.0
  %800 = vmatpush1.msra.mxu0 0.0
  %801 = vmatprep.subr.mxu0 0.0
  %802 = vmatpush1.msra.mxu0 0.0
  %803 = vmatprep.subr.mxu0 0.0
  %804 = vmatpush1.msra.mxu0 0.0
  %805 = vmatprep.subr.mxu0 0.0
  %806 = vmatpush1.msra.mxu0 0.0
  %807 = vmatprep.subr.mxu0 0.0
  %808 = vmatpush1.msra.mxu0 0.0
  %809 = vmatprep.subr.mxu0 0.0
  %810 = vmatpush1.msra.mxu0 0.0
  %811 = vmatprep.subr.mxu0 0.0
  %812 = vmatpush1.msra.mxu0 0.0
  %813 = vmatprep.subr.mxu0 0.0
  %814 = vmatpush1.msra.mxu0 0.0
  %815 = vmatprep.subr.mxu0 0.0
  %816 = vmatpush1.msra.mxu0 0.0
  %817 = vmatprep.subr.mxu0 0.0
  %818 = vmatpush1.msra.mxu0 0.0
  %819 = vmatprep.subr.mxu0 0.0
  %820 = vmatpush1.msra.mxu0 0.0
  %821 = vmatprep.subr.mxu0 0.0
  %822 = vmatpush1.msra.mxu0 0.0
  %823 = vmatprep.subr.mxu0 0.0
  %824 = vmatpush1.msra.mxu0 0.0
  %825 = vmatprep.subr.mxu0 0.0
  %826 = vmatpush1.msra.mxu0 0.0
  %827 = vmatprep.subr.mxu0 0.0
  %828 = vmatpush1.msra.mxu0 0.0
  %829 = vmatprep.subr.mxu0 0.0
  %830 = vmatpush1.msra.mxu0 0.0
  %831 = vmatprep.mubr.f32.mxu0 0.0
  %832 = vmatmul.mubr.f32.gmra.mrb[0].mxu0 %v765
  %v833 = vpop.f32.mrb[0].mxu0
  %v834 = vadd.f32 0.0, %v833
  %v835 = vpop.f32.mrb[0].mxu0
  %836 = vdwg.mxu0
  %v837 = vadd.f32 %v760, %v834
  %v838 = vxor.u32 %v837, 2147483648
  %v839 = vmul.f32 %v838, 1.442695
  %v840 = vpow.pop %v839
  %v841 = vadd.f32 %v840, 1.0
  %v842 = vrcp.pop %v841
  %v843 = vmul.f32 1.0, %v842
  %v844 = vtanh.pop %v837
  %v845 = vmul.f32 %v843, %v746
  %847 = vrot.lane.b32.xlu0 %v844, 64
  %v848 = vpop.permute.xlu0 %847
  %v850 = vmul.f32 %v843, %v848
  %852 = vrot.lane.b32.xlu0 %v850, 32
  %v853 = vpop.permute.xlu0 %852
  %v855 = vadd.f32 %v845, %v853
  %v856 = vtanh.pop %v855
  %858 = vrot.lane.b32.xlu0 %v856, 64
  %v859 = vpop.permute.xlu0 %858
  %v861 = vmul.f32 %v843, %v859
  %863 = vrot.lane.b32.xlu0 %v861, 32
  %v864 = vpop.permute.xlu0 %863
  %s866 = scalar_lea.vmem [#allocation3], 32
  %867 = vst.msk [vmem:[%s866] sm:$0xff] %vm328, %v864
  %s868 = scalar_lea.vmem [#allocation2], 40
  %v869 = vld [vmem:[%s868] sm:$0xff]
  %v870 = vld [vmem:[%s2] sm:$0xff]
  %v871 = vld [vmem:[%s2 + $0x8] sm:$0xff]
  %v872 = vld [vmem:[%s2 + $0x10] sm:$0xff]
  %v873 = vld [vmem:[%s2 + $0x18] sm:$0xff]
  %v874 = vsel %vm328, %v864, 0
  %876 = vmatprep.subr.mxu0 0.0
  %877 = vmatpush1.msra.mxu0 %v870
  %878 = vmatprep.subr.mxu0 0.0
  %879 = vmatpush1.msra.mxu0 %v871
  %880 = vmatprep.subr.mxu0 0.0
  %881 = vmatpush1.msra.mxu0 %v872
  %882 = vmatprep.subr.mxu0 0.0
  %883 = vmatpush1.msra.mxu0 %v873
  %884 = vmatprep.subr.mxu0 0.0
  %885 = vmatpush1.msra.mxu0 0.0
  %886 = vmatprep.subr.mxu0 0.0
  %887 = vmatpush1.msra.mxu0 0.0
  %888 = vmatprep.subr.mxu0 0.0
  %889 = vmatpush1.msra.mxu0 0.0
  %890 = vmatprep.subr.mxu0 0.0
  %891 = vmatpush1.msra.mxu0 0.0
  %892 = vmatprep.subr.mxu0 0.0
  %893 = vmatpush1.msra.mxu0 0.0
  %894 = vmatprep.subr.mxu0 0.0
  %895 = vmatpush1.msra.mxu0 0.0
  %896 = vmatprep.subr.mxu0 0.0
  %897 = vmatpush1.msra.mxu0 0.0
  %898 = vmatprep.subr.mxu0 0.0
  %899 = vmatpush1.msra.mxu0 0.0
  %900 = vmatprep.subr.mxu0 0.0
  %901 = vmatpush1.msra.mxu0 0.0
  %902 = vmatprep.subr.mxu0 0.0
  %903 = vmatpush1.msra.mxu0 0.0
  %904 = vmatprep.subr.mxu0 0.0
  %905 = vmatpush1.msra.mxu0 0.0
  %906 = vmatprep.subr.mxu0 0.0
  %907 = vmatpush1.msra.mxu0 0.0
  %908 = vmatprep.subr.mxu0 0.0
  %909 = vmatpush1.msra.mxu0 0.0
  %910 = vmatprep.subr.mxu0 0.0
  %911 = vmatpush1.msra.mxu0 0.0
  %912 = vmatprep.subr.mxu0 0.0
  %913 = vmatpush1.msra.mxu0 0.0
  %914 = vmatprep.subr.mxu0 0.0
  %915 = vmatpush1.msra.mxu0 0.0
  %916 = vmatprep.subr.mxu0 0.0
  %917 = vmatpush1.msra.mxu0 0.0
  %918 = vmatprep.subr.mxu0 0.0
  %919 = vmatpush1.msra.mxu0 0.0
  %920 = vmatprep.subr.mxu0 0.0
  %921 = vmatpush1.msra.mxu0 0.0
  %922 = vmatprep.subr.mxu0 0.0
  %923 = vmatpush1.msra.mxu0 0.0
  %924 = vmatprep.subr.mxu0 0.0
  %925 = vmatpush1.msra.mxu0 0.0
  %926 = vmatprep.subr.mxu0 0.0
  %927 = vmatpush1.msra.mxu0 0.0
  %928 = vmatprep.subr.mxu0 0.0
  %929 = vmatpush1.msra.mxu0 0.0
  %930 = vmatprep.subr.mxu0 0.0
  %931 = vmatpush1.msra.mxu0 0.0
  %932 = vmatprep.subr.mxu0 0.0
  %933 = vmatpush1.msra.mxu0 0.0
  %934 = vmatprep.subr.mxu0 0.0
  %935 = vmatpush1.msra.mxu0 0.0
  %936 = vmatprep.subr.mxu0 0.0
  %937 = vmatpush1.msra.mxu0 0.0
  %938 = vmatprep.subr.mxu0 0.0
  %939 = vmatpush1.msra.mxu0 0.0
  %940 = vmatprep.mubr.f32.mxu0 0.0
  %941 = vmatmul.mubr.f32.gmra.mrb[0].mxu0 %v874
  %v942 = vpop.f32.mrb[0].mxu0
  %v943 = vadd.f32 0.0, %v942
  %v944 = vpop.f32.mrb[0].mxu0
  %945 = vdwg.mxu0
  %v946 = vadd.f32 %v869, %v943
  %v947 = vxor.u32 %v946, 2147483648
  %v948 = vmul.f32 %v947, 1.442695
  %v949 = vpow.pop %v948
  %v950 = vadd.f32 %v949, 1.0
  %v951 = vrcp.pop %v950
  %v952 = vmul.f32 1.0, %v951
  %v953 = vtanh.pop %v946
  %v954 = vmul.f32 %v952, %v855
  %956 = vrot.lane.b32.xlu0 %v953, 64
  %v957 = vpop.permute.xlu0 %956
  %v959 = vmul.f32 %v952, %v957
  %961 = vrot.lane.b32.xlu0 %v959, 32
  %v962 = vpop.permute.xlu0 %961
  %v964 = vadd.f32 %v954, %v962
  %v965 = vtanh.pop %v964
  %967 = vrot.lane.b32.xlu0 %v965, 64
  %v968 = vpop.permute.xlu0 %967
  %v970 = vmul.f32 %v952, %v968
  %972 = vrot.lane.b32.xlu0 %v970, 32
  %v973 = vpop.permute.xlu0 %972
  %s975 = scalar_lea.vmem [#allocation3], 40
  %976 = vst.msk [vmem:[%s975] sm:$0xff] %vm328, %v973
  %s977 = scalar_lea.vmem [#allocation2], 48
  %v978 = vld [vmem:[%s977] sm:$0xff]
  %v979 = vld [vmem:[%s2] sm:$0xff]
  %v980 = vld [vmem:[%s2 + $0x8] sm:$0xff]
  %v981 = vld [vmem:[%s2 + $0x10] sm:$0xff]
  %v982 = vld [vmem:[%s2 + $0x18] sm:$0xff]
  %v983 = vsel %vm328, %v973, 0
  %985 = vmatprep.subr.mxu0 0.0
  %986 = vmatpush1.msra.mxu0 %v979
  %987 = vmatprep.subr.mxu0 0.0
  %988 = vmatpush1.msra.mxu0 %v980
  %989 = vmatprep.subr.mxu0 0.0
  %990 = vmatpush1.msra.mxu0 %v981
  %991 = vmatprep.subr.mxu0 0.0
  %992 = vmatpush1.msra.mxu0 %v982
  %993 = vmatprep.subr.mxu0 0.0
  %994 = vmatpush1.msra.mxu0 0.0
  %995 = vmatprep.subr.mxu0 0.0
  %996 = vmatpush1.msra.mxu0 0.0
  %997 = vmatprep.subr.mxu0 0.0
  %998 = vmatpush1.msra.mxu0 0.0
  %999 = vmatprep.subr.mxu0 0.0
  %1000 = vmatpush1.msra.mxu0 0.0
  %1001 = vmatprep.subr.mxu0 0.0
  %1002 = vmatpush1.msra.mxu0 0.0
  %1003 = vmatprep.subr.mxu0 0.0
  %1004 = vmatpush1.msra.mxu0 0.0
  %1005 = vmatprep.subr.mxu0 0.0
  %1006 = vmatpush1.msra.mxu0 0.0
  %1007 = vmatprep.subr.mxu0 0.0
  %1008 = vmatpush1.msra.mxu0 0.0
  %1009 = vmatprep.subr.mxu0 0.0
  %1010 = vmatpush1.msra.mxu0 0.0
  %1011 = vmatprep.subr.mxu0 0.0
  %1012 = vmatpush1.msra.mxu0 0.0
  %1013 = vmatprep.subr.mxu0 0.0
  %1014 = vmatpush1.msra.mxu0 0.0
  %1015 = vmatprep.subr.mxu0 0.0
  %1016 = vmatpush1.msra.mxu0 0.0
  %1017 = vmatprep.subr.mxu0 0.0
  %1018 = vmatpush1.msra.mxu0 0.0
  %1019 = vmatprep.subr.mxu0 0.0
  %1020 = vmatpush1.msra.mxu0 0.0
  %1021 = vmatprep.subr.mxu0 0.0
  %1022 = vmatpush1.msra.mxu0 0.0
  %1023 = vmatprep.subr.mxu0 0.0
  %1024 = vmatpush1.msra.mxu0 0.0
  %1025 = vmatprep.subr.mxu0 0.0
  %1026 = vmatpush1.msra.mxu0 0.0
  %1027 = vmatprep.subr.mxu0 0.0
  %1028 = vmatpush1.msra.mxu0 0.0
  %1029 = vmatprep.subr.mxu0 0.0
  %1030 = vmatpush1.msra.mxu0 0.0
  %1031 = vmatprep.subr.mxu0 0.0
  %1032 = vmatpush1.msra.mxu0 0.0
  %1033 = vmatprep.subr.mxu0 0.0
  %1034 = vmatpush1.msra.mxu0 0.0
  %1035 = vmatprep.subr.mxu0 0.0
  %1036 = vmatpush1.msra.mxu0 0.0
  %1037 = vmatprep.subr.mxu0 0.0
  %1038 = vmatpush1.msra.mxu0 0.0
  %1039 = vmatprep.subr.mxu0 0.0
  %1040 = vmatpush1.msra.mxu0 0.0
  %1041 = vmatprep.subr.mxu0 0.0
  %1042 = vmatpush1.msra.mxu0 0.0
  %1043 = vmatprep.subr.mxu0 0.0
  %1044 = vmatpush1.msra.mxu0 0.0
  %1045 = vmatprep.subr.mxu0 0.0
  %1046 = vmatpush1.msra.mxu0 0.0
  %1047 = vmatprep.subr.mxu0 0.0
  %1048 = vmatpush1.msra.mxu0 0.0
  %1049 = vmatprep.mubr.f32.mxu0 0.0
  %1050 = vmatmul.mubr.f32.gmra.mrb[0].mxu0 %v983
  %v1051 = vpop.f32.mrb[0].mxu0
  %v1052 = vadd.f32 0.0, %v1051
  %v1053 = vpop.f32.mrb[0].mxu0
  %1054 = vdwg.mxu0
  %v1055 = vadd.f32 %v978, %v1052
  %v1056 = vxor.u32 %v1055, 2147483648
  %v1057 = vmul.f32 %v1056, 1.442695
  %v1058 = vpow.pop %v1057
  %v1059 = vadd.f32 %v1058, 1.0
  %v1060 = vrcp.pop %v1059
  %v1061 = vmul.f32 1.0, %v1060
  %v1062 = vtanh.pop %v1055
  %v1063 = vmul.f32 %v1061, %v964
  %1065 = vrot.lane.b32.xlu0 %v1062, 64
  %v1066 = vpop.permute.xlu0 %1065
  %v1068 = vmul.f32 %v1061, %v1066
  %1070 = vrot.lane.b32.xlu0 %v1068, 32
  %v1071 = vpop.permute.xlu0 %1070
  %v1073 = vadd.f32 %v1063, %v1071
  %v1074 = vtanh.pop %v1073
  %1076 = vrot.lane.b32.xlu0 %v1074, 64
  %v1077 = vpop.permute.xlu0 %1076
  %v1079 = vmul.f32 %v1061, %v1077
  %1081 = vrot.lane.b32.xlu0 %v1079, 32
  %v1082 = vpop.permute.xlu0 %1081
  %s1084 = scalar_lea.vmem [#allocation3], 48
  %1085 = vst.msk [vmem:[%s1084] sm:$0xff] %vm328, %v1082
  %s1086 = scalar_lea.vmem [#allocation2], 56
  %v1087 = vld [vmem:[%s1086] sm:$0xff]
  %v1088 = vld [vmem:[%s2] sm:$0xff]
  %v1089 = vld [vmem:[%s2 + $0x8] sm:$0xff]
  %v1090 = vld [vmem:[%s2 + $0x10] sm:$0xff]
  %v1091 = vld [vmem:[%s2 + $0x18] sm:$0xff]
  %v1092 = vsel %vm328, %v1082, 0
  %1094 = vmatprep.subr.mxu0 0.0
  %1095 = vmatpush1.msra.mxu0 %v1088
  %1096 = vmatprep.subr.mxu0 0.0
  %1097 = vmatpush1.msra.mxu0 %v1089
  %1098 = vmatprep.subr.mxu0 0.0
  %1099 = vmatpush1.msra.mxu0 %v1090
  %1100 = vmatprep.subr.mxu0 0.0
  %1101 = vmatpush1.msra.mxu0 %v1091
  %1102 = vmatprep.subr.mxu0 0.0
  %1103 = vmatpush1.msra.mxu0 0.0
  %1104 = vmatprep.subr.mxu0 0.0
  %1105 = vmatpush1.msra.mxu0 0.0
  %1106 = vmatprep.subr.mxu0 0.0
  %1107 = vmatpush1.msra.mxu0 0.0
  %1108 = vmatprep.subr.mxu0 0.0
  %1109 = vmatpush1.msra.mxu0 0.0
  %1110 = vmatprep.subr.mxu0 0.0
  %1111 = vmatpush1.msra.mxu0 0.0
  %1112 = vmatprep.subr.mxu0 0.0
  %1113 = vmatpush1.msra.mxu0 0.0
  %1114 = vmatprep.subr.mxu0 0.0
  %1115 = vmatpush1.msra.mxu0 0.0
  %1116 = vmatprep.subr.mxu0 0.0
  %1117 = vmatpush1.msra.mxu0 0.0
  %1118 = vmatprep.subr.mxu0 0.0
  %1119 = vmatpush1.msra.mxu0 0.0
  %1120 = vmatprep.subr.mxu0 0.0
  %1121 = vmatpush1.msra.mxu0 0.0
  %1122 = vmatprep.subr.mxu0 0.0
  %1123 = vmatpush1.msra.mxu0 0.0
  %1124 = vmatprep.subr.mxu0 0.0
  %1125 = vmatpush1.msra.mxu0 0.0
  %1126 = vmatprep.subr.mxu0 0.0
  %1127 = vmatpush1.msra.mxu0 0.0
  %1128 = vmatprep.subr.mxu0 0.0
  %1129 = vmatpush1.msra.mxu0 0.0
  %1130 = vmatprep.subr.mxu0 0.0
  %1131 = vmatpush1.msra.mxu0 0.0
  %1132 = vmatprep.subr.mxu0 0.0
  %1133 = vmatpush1.msra.mxu0 0.0
  %1134 = vmatprep.subr.mxu0 0.0
  %1135 = vmatpush1.msra.mxu0 0.0
  %1136 = vmatprep.subr.mxu0 0.0
  %1137 = vmatpush1.msra.mxu0 0.0
  %1138 = vmatprep.subr.mxu0 0.0
  %1139 = vmatpush1.msra.mxu0 0.0
  %1140 = vmatprep.subr.mxu0 0.0
  %1141 = vmatpush1.msra.mxu0 0.0
  %1142 = vmatprep.subr.mxu0 0.0
  %1143 = vmatpush1.msra.mxu0 0.0
  %1144 = vmatprep.subr.mxu0 0.0
  %1145 = vmatpush1.msra.mxu0 0.0
  %1146 = vmatprep.subr.mxu0 0.0
  %1147 = vmatpush1.msra.mxu0 0.0
  %1148 = vmatprep.subr.mxu0 0.0
  %1149 = vmatpush1.msra.mxu0 0.0
  %1150 = vmatprep.subr.mxu0 0.0
  %1151 = vmatpush1.msra.mxu0 0.0
  %1152 = vmatprep.subr.mxu0 0.0
  %1153 = vmatpush1.msra.mxu0 0.0
  %1154 = vmatprep.subr.mxu0 0.0
  %1155 = vmatpush1.msra.mxu0 0.0
  %1156 = vmatprep.subr.mxu0 0.0
  %1157 = vmatpush1.msra.mxu0 0.0
  %1158 = vmatprep.mubr.f32.mxu0 0.0
  %1159 = vmatmul.mubr.f32.gmra.mrb[0].mxu0 %v1092
  %v1160 = vpop.f32.mrb[0].mxu0
  %v1161 = vadd.f32 0.0, %v1160
  %v1162 = vpop.f32.mrb[0].mxu0
  %1163 = vdwg.mxu0
  %v1164 = vadd.f32 %v1087, %v1161
  %v1165 = vxor.u32 %v1164, 2147483648
  %v1166 = vmul.f32 %v1165, 1.442695
  %v1167 = vpow.pop %v1166
  %v1168 = vadd.f32 %v1167, 1.0
  %v1169 = vrcp.pop %v1168
  %v1170 = vmul.f32 1.0, %v1169
  %v1171 = vtanh.pop %v1164
  %v1172 = vmul.f32 %v1170, %v1073
  %1174 = vrot.lane.b32.xlu0 %v1171, 64
  %v1175 = vpop.permute.xlu0 %1174
  %v1177 = vmul.f32 %v1170, %v1175
  %1179 = vrot.lane.b32.xlu0 %v1177, 32
  %v1180 = vpop.permute.xlu0 %1179
  %v1182 = vadd.f32 %v1172, %v1180
  %v1183 = vtanh.pop %v1182
  %1185 = vrot.lane.b32.xlu0 %v1183, 64
  %v1186 = vpop.permute.xlu0 %1185
  %v1188 = vmul.f32 %v1170, %v1186
  %1190 = vrot.lane.b32.xlu0 %v1188, 32
  %v1191 = vpop.permute.xlu0 %1190
  %s1193 = scalar_lea.vmem [#allocation3], 56
  %1194 = vst.msk [vmem:[%s1193] sm:$0xff] %vm328, %v1191
  %v1195 = vld [vmem:[#allocation3] sm:$0xff]
  %v1196 = vld [vmem:[#allocation3 + $0x8] sm:$0xff]
  %v1197 = vld [vmem:[#allocation3 + $0x10] sm:$0xff]
  %v1198 = vld [vmem:[#allocation3 + $0x18] sm:$0xff]
  %v1199 = vld [vmem:[#allocation3 + $0x20] sm:$0xff]
  %v1200 = vld [vmem:[#allocation3 + $0x28] sm:$0xff]
  %v1201 = vld [vmem:[#allocation3 + $0x30] sm:$0xff]
  %v1202 = vld [vmem:[#allocation3 + $0x38] sm:$0xff]
  %v1203 = vld [vmem:[%s4] sm:$0xff]
  %v1204 = vld [vmem:[%s4 + $0x8] sm:$0xff]
  %v1205 = vld [vmem:[%s4 + $0x10] sm:$0xff]
  %v1206 = vld [vmem:[%s4 + $0x18] sm:$0xff]
  %v1207 = vld [vmem:[%s6] sm:$0x1]
  %v1209 = vlaneseq
  %v1210 = vshrl.u32 %v1209, 7
  %v1211 = vsub.s32 0, %v1210
  %v1212 = vrot.slane %v1207, %v1211
  %v1215 = vsel %vm328, %v1195, 0
  %v1218 = vsel %vm328, %v1196, 0
  %v1221 = vsel %vm328, %v1197, 0
  %v1224 = vsel %vm328, %v1198, 0
  %v1227 = vsel %vm328, %v1199, 0
  %v1230 = vsel %vm328, %v1200, 0
  %v1233 = vsel %vm328, %v1201, 0
  %v1236 = vsel %vm328, %v1202, 0
  %1238 = vmatprep.subr.mxu0 0.0
  %1239 = vmatpush1.msra.mxu0 %v1203
  %1240 = vmatprep.subr.mxu0 0.0
  %1241 = vmatpush1.msra.mxu0 %v1204
  %1242 = vmatprep.subr.mxu0 0.0
  %1243 = vmatpush1.msra.mxu0 %v1205
  %1244 = vmatprep.subr.mxu0 0.0
  %1245 = vmatpush1.msra.mxu0 %v1206
  %1246 = vmatprep.subr.mxu0 0.0
  %1247 = vmatpush1.msra.mxu0 0.0
  %1248 = vmatprep.subr.mxu0 0.0
  %1249 = vmatpush1.msra.mxu0 0.0
  %1250 = vmatprep.subr.mxu0 0.0
  %1251 = vmatpush1.msra.mxu0 0.0
  %1252 = vmatprep.subr.mxu0 0.0
  %1253 = vmatpush1.msra.mxu0 0.0
  %1254 = vmatprep.subr.mxu0 0.0
  %1255 = vmatpush1.msra.mxu0 0.0
  %1256 = vmatprep.subr.mxu0 0.0
  %1257 = vmatpush1.msra.mxu0 0.0
  %1258 = vmatprep.subr.mxu0 0.0
  %1259 = vmatpush1.msra.mxu0 0.0
  %1260 = vmatprep.subr.mxu0 0.0
  %1261 = vmatpush1.msra.mxu0 0.0
  %1262 = vmatprep.subr.mxu0 0.0
  %1263 = vmatpush1.msra.mxu0 0.0
  %1264 = vmatprep.subr.mxu0 0.0
  %1265 = vmatpush1.msra.mxu0 0.0
  %1266 = vmatprep.subr.mxu0 0.0
  %1267 = vmatpush1.msra.mxu0 0.0
  %1268 = vmatprep.subr.mxu0 0.0
  %1269 = vmatpush1.msra.mxu0 0.0
  %1270 = vmatprep.subr.mxu0 0.0
  %1271 = vmatpush1.msra.mxu0 0.0
  %1272 = vmatprep.subr.mxu0 0.0
  %1273 = vmatpush1.msra.mxu0 0.0
  %1274 = vmatprep.subr.mxu0 0.0
  %1275 = vmatpush1.msra.mxu0 0.0
  %1276 = vmatprep.subr.mxu0 0.0
  %1277 = vmatpush1.msra.mxu0 0.0
  %1278 = vmatprep.subr.mxu0 0.0
  %1279 = vmatpush1.msra.mxu0 0.0
  %1280 = vmatprep.subr.mxu0 0.0
  %1281 = vmatpush1.msra.mxu0 0.0
  %1282 = vmatprep.subr.mxu0 0.0
  %1283 = vmatpush1.msra.mxu0 0.0
  %1284 = vmatprep.subr.mxu0 0.0
  %1285 = vmatpush1.msra.mxu0 0.0
  %1286 = vmatprep.subr.mxu0 0.0
  %1287 = vmatpush1.msra.mxu0 0.0
  %1288 = vmatprep.subr.mxu0 0.0
  %1289 = vmatpush1.msra.mxu0 0.0
  %1290 = vmatprep.subr.mxu0 0.0
  %1291 = vmatpush1.msra.mxu0 0.0
  %1292 = vmatprep.subr.mxu0 0.0
  %1293 = vmatpush1.msra.mxu0 0.0
  %1294 = vmatprep.subr.mxu0 0.0
  %1295 = vmatpush1.msra.mxu0 0.0
  %1296 = vmatprep.subr.mxu0 0.0
  %1297 = vmatpush1.msra.mxu0 0.0
  %1298 = vmatprep.subr.mxu0 0.0
  %1299 = vmatpush1.msra.mxu0 0.0
  %1300 = vmatprep.subr.mxu0 0.0
  %1301 = vmatpush1.msra.mxu0 0.0
  %1302 = vmatprep.mubr.f32.mxu0 0.0
  %1303 = vmatmul.mubr.f32.gmra.mrb[0].mxu0 %v1215
  %v1304 = vpop.f32.mrb[0].mxu0
  %v1305 = vadd.f32 %v1212, %v1304
  %v1306 = vpop.f32.mrb[0].mxu0
  %1307 = vmatprep.mubr.f32.mxu0 0.0
  %1308 = vmatmul.mubr.f32.gmra.mrb[0].mxu0 %v1218
  %v1309 = vpop.f32.mrb[0].mxu0
  %v1310 = vadd.f32 %v1212, %v1309
  %v1311 = vpop.f32.mrb[0].mxu0
  %1312 = vmatprep.mubr.f32.mxu0 0.0
  %1313 = vmatmul.mubr.f32.gmra.mrb[0].mxu0 %v1221
  %v1314 = vpop.f32.mrb[0].mxu0
  %v1315 = vadd.f32 %v1212, %v1314
  %v1316 = vpop.f32.mrb[0].mxu0
  %1317 = vmatprep.mubr.f32.mxu0 0.0
  %1318 = vmatmul.mubr.f32.gmra.mrb[0].mxu0 %v1224
  %v1319 = vpop.f32.mrb[0].mxu0
  %v1320 = vadd.f32 %v1212, %v1319
  %v1321 = vpop.f32.mrb[0].mxu0
  %1322 = vmatprep.mubr.f32.mxu0 0.0
  %1323 = vmatmul.mubr.f32.gmra.mrb[0].mxu0 %v1227
  %v1324 = vpop.f32.mrb[0].mxu0
  %v1325 = vadd.f32 %v1212, %v1324
  %v1326 = vpop.f32.mrb[0].mxu0
  %1327 = vmatprep.mubr.f32.mxu0 0.0
  %1328 = vmatmul.mubr.f32.gmra.mrb[0].mxu0 %v1230
  %v1329 = vpop.f32.mrb[0].mxu0
  %v1330 = vadd.f32 %v1212, %v1329
  %v1331 = vpop.f32.mrb[0].mxu0
  %1332 = vmatprep.mubr.f32.mxu0 0.0
  %1333 = vmatmul.mubr.f32.gmra.mrb[0].mxu0 %v1233
  %v1334 = vpop.f32.mrb[0].mxu0
  %v1335 = vadd.f32 %v1212, %v1334
  %v1336 = vpop.f32.mrb[0].mxu0
  %1337 = vmatprep.mubr.f32.mxu0 0.0
  %1338 = vmatmul.mubr.f32.gmra.mrb[0].mxu0 %v1236
  %v1339 = vpop.f32.mrb[0].mxu0
  %v1340 = vadd.f32 %v1212, %v1339
  %v1341 = vpop.f32.mrb[0].mxu0
  %1342 = vdwg.mxu0
  %1343 = vst [vmem:[#allocation2] sm:$0xff] %v1305
  %1344 = vst [vmem:[#allocation2 + $0x8] sm:$0xff] %v1310
  %1345 = vst [vmem:[#allocation2 + $0x10] sm:$0xff] %v1315
  %1346 = vst [vmem:[#allocation2 + $0x18] sm:$0xff] %v1320
  %1347 = vst [vmem:[#allocation2 + $0x20] sm:$0xff] %v1325
  %1348 = vst [vmem:[#allocation2 + $0x28] sm:$0xff] %v1330
  %1349 = vst [vmem:[#allocation2 + $0x30] sm:$0xff] %v1335
  %1350 = vst [vmem:[#allocation2 + $0x38] sm:$0xff] %v1340
  %v1351 = vld [vmem:[#allocation2] sm:$0xff]
  %v1352 = vld [vmem:[%s5] sm:$0xff]
  %v1353 = vld [vmem:[%s5 + $0x8] sm:$0xff]
  %v1354 = vld [vmem:[%s5 + $0x10] sm:$0xff]
  %v1355 = vld [vmem:[%s5 + $0x18] sm:$0xff]
  %1356 = vmatprep.subr.mxu0 0.0
  %1357 = vmatpush1.msra.mxu0 %v1352
  %1358 = vmatprep.subr.mxu0 0.0
  %1359 = vmatpush1.msra.mxu0 %v1353
  %1360 = vmatprep.subr.mxu0 0.0
  %1361 = vmatpush1.msra.mxu0 %v1354
  %1362 = vmatprep.subr.mxu0 0.0
  %1363 = vmatpush1.msra.mxu0 %v1355
  %1364 = vmatprep.subr.mxu0 0.0
  %1365 = vmatpush1.msra.mxu0 0.0
  %1366 = vmatprep.subr.mxu0 0.0
  %1367 = vmatpush1.msra.mxu0 0.0
  %1368 = vmatprep.subr.mxu0 0.0
  %1369 = vmatpush1.msra.mxu0 0.0
  %1370 = vmatprep.subr.mxu0 0.0
  %1371 = vmatpush1.msra.mxu0 0.0
  %1372 = vmatprep.subr.mxu0 0.0
  %1373 = vmatpush1.msra.mxu0 0.0
  %1374 = vmatprep.subr.mxu0 0.0
  %1375 = vmatpush1.msra.mxu0 0.0
  %1376 = vmatprep.subr.mxu0 0.0
  %1377 = vmatpush1.msra.mxu0 0.0
  %1378 = vmatprep.subr.mxu0 0.0
  %1379 = vmatpush1.msra.mxu0 0.0
  %1380 = vmatprep.subr.mxu0 0.0
  %1381 = vmatpush1.msra.mxu0 0.0
  %1382 = vmatprep.subr.mxu0 0.0
  %1383 = vmatpush1.msra.mxu0 0.0
  %1384 = vmatprep.subr.mxu0 0.0
  %1385 = vmatpush1.msra.mxu0 0.0
  %1386 = vmatprep.subr.mxu0 0.0
  %1387 = vmatpush1.msra.mxu0 0.0
  %1388 = vmatprep.subr.mxu0 0.0
  %1389 = vmatpush1.msra.mxu0 0.0
  %1390 = vmatprep.subr.mxu0 0.0
  %1391 = vmatpush1.msra.mxu0 0.0
  %1392 = vmatprep.subr.mxu0 0.0
  %1393 = vmatpush1.msra.mxu0 0.0
  %1394 = vmatprep.subr.mxu0 0.0
  %1395 = vmatpush1.msra.mxu0 0.0
  %1396 = vmatprep.subr.mxu0 0.0
  %1397 = vmatpush1.msra.mxu0 0.0
  %1398 = vmatprep.subr.mxu0 0.0
  %1399 = vmatpush1.msra.mxu0 0.0
  %1400 = vmatprep.subr.mxu0 0.0
  %1401 = vmatpush1.msra.mxu0 0.0
  %1402 = vmatprep.subr.mxu0 0.0
  %1403 = vmatpush1.msra.mxu0 0.0
  %1404 = vmatprep.subr.mxu0 0.0
  %1405 = vmatpush1.msra.mxu0 0.0
  %1406 = vmatprep.subr.mxu0 0.0
  %1407 = vmatpush1.msra.mxu0 0.0
  %1408 = vmatprep.subr.mxu0 0.0
  %1409 = vmatpush1.msra.mxu0 0.0
  %1410 = vmatprep.subr.mxu0 0.0
  %1411 = vmatpush1.msra.mxu0 0.0
  %1412 = vmatprep.subr.mxu0 0.0
  %1413 = vmatpush1.msra.mxu0 0.0
  %1414 = vmatprep.subr.mxu0 0.0
  %1415 = vmatpush1.msra.mxu0 0.0
  %1416 = vmatprep.subr.mxu0 0.0
  %1417 = vmatpush1.msra.mxu0 0.0
  %1418 = vmatprep.subr.mxu0 0.0
  %1419 = vmatpush1.msra.mxu0 0.0
  %1420 = vmatprep.mubr.f32.mxu0 0.0
  %1421 = vmatmul.mubr.f32.gmra.mrb[0].mxu0 %v330
  %v1422 = vpop.f32.mrb[0].mxu0
  %v1423 = vadd.f32 0.0, %v1422
  %v1424 = vpop.f32.mrb[0].mxu0
  %1425 = vdwg.mxu0
  %v1426 = vadd.f32 %v1351, %v1423
  %v1427 = vxor.u32 %v1426, 2147483648
  %v1428 = vmul.f32 %v1427, 1.442695
  %v1429 = vpow.pop %v1428
  %v1430 = vadd.f32 %v1429, 1.0
  %v1431 = vrcp.pop %v1430
  %v1432 = vmul.f32 1.0, %v1431
  %v1433 = vtanh.pop %v1426
  %v1434 = vmul.f32 %v1432, 0.0
  %1436 = vrot.lane.b32.xlu0 %v1433, 64
  %v1437 = vpop.permute.xlu0 %1436
  %v1439 = vmul.f32 %v1432, %v1437
  %1441 = vrot.lane.b32.xlu0 %v1439, 32
  %v1442 = vpop.permute.xlu0 %1441
  %v1444 = vadd.f32 %v1434, %v1442
  %v1445 = vtanh.pop %v1444
  %1447 = vrot.lane.b32.xlu0 %v1445, 64
  %v1448 = vpop.permute.xlu0 %1447
  %v1450 = vmul.f32 %v1432, %v1448
  %v1451 = vld [vmem:[%s432] sm:$0xff]
  %1453 = vrot.lane.b32.xlu0 %v1450, 32
  %v1454 = vpop.permute.xlu0 %1453
  %v1455 = vsel %vm328, %v1454, 0
  %1457 = vmatprep.subr.mxu0 0.0
  %1458 = vmatpush1.msra.mxu0 %v1352
  %1459 = vmatprep.subr.mxu0 0.0
  %1460 = vmatpush1.msra.mxu0 %v1353
  %1461 = vmatprep.subr.mxu0 0.0
  %1462 = vmatpush1.msra.mxu0 %v1354
  %1463 = vmatprep.subr.mxu0 0.0
  %1464 = vmatpush1.msra.mxu0 %v1355
  %1465 = vmatprep.subr.mxu0 0.0
  %1466 = vmatpush1.msra.mxu0 0.0
  %1467 = vmatprep.subr.mxu0 0.0
  %1468 = vmatpush1.msra.mxu0 0.0
  %1469 = vmatprep.subr.mxu0 0.0
  %1470 = vmatpush1.msra.mxu0 0.0
  %1471 = vmatprep.subr.mxu0 0.0
  %1472 = vmatpush1.msra.mxu0 0.0
  %1473 = vmatprep.subr.mxu0 0.0
  %1474 = vmatpush1.msra.mxu0 0.0
  %1475 = vmatprep.subr.mxu0 0.0
  %1476 = vmatpush1.msra.mxu0 0.0
  %1477 = vmatprep.subr.mxu0 0.0
  %1478 = vmatpush1.msra.mxu0 0.0
  %1479 = vmatprep.subr.mxu0 0.0
  %1480 = vmatpush1.msra.mxu0 0.0
  %1481 = vmatprep.subr.mxu0 0.0
  %1482 = vmatpush1.msra.mxu0 0.0
  %1483 = vmatprep.subr.mxu0 0.0
  %1484 = vmatpush1.msra.mxu0 0.0
  %1485 = vmatprep.subr.mxu0 0.0
  %1486 = vmatpush1.msra.mxu0 0.0
  %1487 = vmatprep.subr.mxu0 0.0
  %1488 = vmatpush1.msra.mxu0 0.0
  %1489 = vmatprep.subr.mxu0 0.0
  %1490 = vmatpush1.msra.mxu0 0.0
  %1491 = vmatprep.subr.mxu0 0.0
  %1492 = vmatpush1.msra.mxu0 0.0
  %1493 = vmatprep.subr.mxu0 0.0
  %1494 = vmatpush1.msra.mxu0 0.0
  %1495 = vmatprep.subr.mxu0 0.0
  %1496 = vmatpush1.msra.mxu0 0.0
  %1497 = vmatprep.subr.mxu0 0.0
  %1498 = vmatpush1.msra.mxu0 0.0
  %1499 = vmatprep.subr.mxu0 0.0
  %1500 = vmatpush1.msra.mxu0 0.0
  %1501 = vmatprep.subr.mxu0 0.0
  %1502 = vmatpush1.msra.mxu0 0.0
  %1503 = vmatprep.subr.mxu0 0.0
  %1504 = vmatpush1.msra.mxu0 0.0
  %1505 = vmatprep.subr.mxu0 0.0
  %1506 = vmatpush1.msra.mxu0 0.0
  %1507 = vmatprep.subr.mxu0 0.0
  %1508 = vmatpush1.msra.mxu0 0.0
  %1509 = vmatprep.subr.mxu0 0.0
  %1510 = vmatpush1.msra.mxu0 0.0
  %1511 = vmatprep.subr.mxu0 0.0
  %1512 = vmatpush1.msra.mxu0 0.0
  %1513 = vmatprep.subr.mxu0 0.0
  %1514 = vmatpush1.msra.mxu0 0.0
  %1515 = vmatprep.subr.mxu0 0.0
  %1516 = vmatpush1.msra.mxu0 0.0
  %1517 = vmatprep.subr.mxu0 0.0
  %1518 = vmatpush1.msra.mxu0 0.0
  %1519 = vmatprep.subr.mxu0 0.0
  %1520 = vmatpush1.msra.mxu0 0.0
  %1521 = vmatprep.mubr.f32.mxu0 0.0
  %1522 = vmatmul.mubr.f32.gmra.mrb[0].mxu0 %v1455
  %v1523 = vpop.f32.mrb[0].mxu0
  %v1524 = vadd.f32 0.0, %v1523
  %v1525 = vpop.f32.mrb[0].mxu0
  %1526 = vdwg.mxu0
  %v1527 = vadd.f32 %v1451, %v1524
  %v1528 = vxor.u32 %v1527, 2147483648
  %v1529 = vmul.f32 %v1528, 1.442695
  %v1530 = vpow.pop %v1529
  %v1531 = vadd.f32 %v1530, 1.0
  %v1532 = vrcp.pop %v1531
  %v1533 = vmul.f32 1.0, %v1532
  %v1534 = vtanh.pop %v1527
  %v1535 = vmul.f32 %v1533, %v1444
  %1537 = vrot.lane.b32.xlu0 %v1534, 64
  %v1538 = vpop.permute.xlu0 %1537
  %v1540 = vmul.f32 %v1533, %v1538
  %1542 = vrot.lane.b32.xlu0 %v1540, 32
  %v1543 = vpop.permute.xlu0 %1542
  %v1545 = vadd.f32 %v1535, %v1543
  %v1546 = vtanh.pop %v1545
  %1548 = vrot.lane.b32.xlu0 %v1546, 64
  %v1549 = vpop.permute.xlu0 %1548
  %v1551 = vmul.f32 %v1533, %v1549
  %v1552 = vld [vmem:[%s541] sm:$0xff]
  %1554 = vrot.lane.b32.xlu0 %v1551, 32
  %v1555 = vpop.permute.xlu0 %1554
  %v1556 = vsel %vm328, %v1555, 0
  %1558 = vmatprep.subr.mxu0 0.0
  %1559 = vmatpush1.msra.mxu0 %v1352
  %1560 = vmatprep.subr.mxu0 0.0
  %1561 = vmatpush1.msra.mxu0 %v1353
  %1562 = vmatprep.subr.mxu0 0.0
  %1563 = vmatpush1.msra.mxu0 %v1354
  %1564 = vmatprep.subr.mxu0 0.0
  %1565 = vmatpush1.msra.mxu0 %v1355
  %1566 = vmatprep.subr.mxu0 0.0
  %1567 = vmatpush1.msra.mxu0 0.0
  %1568 = vmatprep.subr.mxu0 0.0
  %1569 = vmatpush1.msra.mxu0 0.0
  %1570 = vmatprep.subr.mxu0 0.0
  %1571 = vmatpush1.msra.mxu0 0.0
  %1572 = vmatprep.subr.mxu0 0.0
  %1573 = vmatpush1.msra.mxu0 0.0
  %1574 = vmatprep.subr.mxu0 0.0
  %1575 = vmatpush1.msra.mxu0 0.0
  %1576 = vmatprep.subr.mxu0 0.0
  %1577 = vmatpush1.msra.mxu0 0.0
  %1578 = vmatprep.subr.mxu0 0.0
  %1579 = vmatpush1.msra.mxu0 0.0
  %1580 = vmatprep.subr.mxu0 0.0
  %1581 = vmatpush1.msra.mxu0 0.0
  %1582 = vmatprep.subr.mxu0 0.0
  %1583 = vmatpush1.msra.mxu0 0.0
  %1584 = vmatprep.subr.mxu0 0.0
  %1585 = vmatpush1.msra.mxu0 0.0
  %1586 = vmatprep.subr.mxu0 0.0
  %1587 = vmatpush1.msra.mxu0 0.0
  %1588 = vmatprep.subr.mxu0 0.0
  %1589 = vmatpush1.msra.mxu0 0.0
  %1590 = vmatprep.subr.mxu0 0.0
  %1591 = vmatpush1.msra.mxu0 0.0
  %1592 = vmatprep.subr.mxu0 0.0
  %1593 = vmatpush1.msra.mxu0 0.0
  %1594 = vmatprep.subr.mxu0 0.0
  %1595 = vmatpush1.msra.mxu0 0.0
  %1596 = vmatprep.subr.mxu0 0.0
  %1597 = vmatpush1.msra.mxu0 0.0
  %1598 = vmatprep.subr.mxu0 0.0
  %1599 = vmatpush1.msra.mxu0 0.0
  %1600 = vmatprep.subr.mxu0 0.0
  %1601 = vmatpush1.msra.mxu0 0.0
  %1602 = vmatprep.subr.mxu0 0.0
  %1603 = vmatpush1.msra.mxu0 0.0
  %1604 = vmatprep.subr.mxu0 0.0
  %1605 = vmatpush1.msra.mxu0 0.0
  %1606 = vmatprep.subr.mxu0 0.0
  %1607 = vmatpush1.msra.mxu0 0.0
  %1608 = vmatprep.subr.mxu0 0.0
  %1609 = vmatpush1.msra.mxu0 0.0
  %1610 = vmatprep.subr.mxu0 0.0
  %1611 = vmatpush1.msra.mxu0 0.0
  %1612 = vmatprep.subr.mxu0 0.0
  %1613 = vmatpush1.msra.mxu0 0.0
  %1614 = vmatprep.subr.mxu0 0.0
  %1615 = vmatpush1.msra.mxu0 0.0
  %1616 = vmatprep.subr.mxu0 0.0
  %1617 = vmatpush1.msra.mxu0 0.0
  %1618 = vmatprep.subr.mxu0 0.0
  %1619 = vmatpush1.msra.mxu0 0.0
  %1620 = vmatprep.subr.mxu0 0.0
  %1621 = vmatpush1.msra.mxu0 0.0
  %1622 = vmatprep.mubr.f32.mxu0 0.0
  %1623 = vmatmul.mubr.f32.gmra.mrb[0].mxu0 %v1556
  %v1624 = vpop.f32.mrb[0].mxu0
  %v1625 = vadd.f32 0.0, %v1624
  %v1626 = vpop.f32.mrb[0].mxu0
  %1627 = vdwg.mxu0
  %v1628 = vadd.f32 %v1552, %v1625
  %v1629 = vxor.u32 %v1628, 2147483648
  %v1630 = vmul.f32 %v1629, 1.442695
  %v1631 = vpow.pop %v1630
  %v1632 = vadd.f32 %v1631, 1.0
  %v1633 = vrcp.pop %v1632
  %v1634 = vmul.f32 1.0, %v1633
  %v1635 = vtanh.pop %v1628
  %v1636 = vmul.f32 %v1634, %v1545
  %1638 = vrot.lane.b32.xlu0 %v1635, 64
  %v1639 = vpop.permute.xlu0 %1638
  %v1641 = vmul.f32 %v1634, %v1639
  %1643 = vrot.lane.b32.xlu0 %v1641, 32
  %v1644 = vpop.permute.xlu0 %1643
  %v1646 = vadd.f32 %v1636, %v1644
  %v1647 = vtanh.pop %v1646
  %1649 = vrot.lane.b32.xlu0 %v1647, 64
  %v1650 = vpop.permute.xlu0 %1649
  %v1652 = vmul.f32 %v1634, %v1650
  %v1653 = vld [vmem:[%s650] sm:$0xff]
  %1655 = vrot.lane.b32.xlu0 %v1652, 32
  %v1656 = vpop.permute.xlu0 %1655
  %v1657 = vsel %vm328, %v1656, 0
  %1659 = vmatprep.subr.mxu0 0.0
  %1660 = vmatpush1.msra.mxu0 %v1352
  %1661 = vmatprep.subr.mxu0 0.0
  %1662 = vmatpush1.msra.mxu0 %v1353
  %1663 = vmatprep.subr.mxu0 0.0
  %1664 = vmatpush1.msra.mxu0 %v1354
  %1665 = vmatprep.subr.mxu0 0.0
  %1666 = vmatpush1.msra.mxu0 %v1355
  %1667 = vmatprep.subr.mxu0 0.0
  %1668 = vmatpush1.msra.mxu0 0.0
  %1669 = vmatprep.subr.mxu0 0.0
  %1670 = vmatpush1.msra.mxu0 0.0
  %1671 = vmatprep.subr.mxu0 0.0
  %1672 = vmatpush1.msra.mxu0 0.0
  %1673 = vmatprep.subr.mxu0 0.0
  %1674 = vmatpush1.msra.mxu0 0.0
  %1675 = vmatprep.subr.mxu0 0.0
  %1676 = vmatpush1.msra.mxu0 0.0
  %1677 = vmatprep.subr.mxu0 0.0
  %1678 = vmatpush1.msra.mxu0 0.0
  %1679 = vmatprep.subr.mxu0 0.0
  %1680 = vmatpush1.msra.mxu0 0.0
  %1681 = vmatprep.subr.mxu0 0.0
  %1682 = vmatpush1.msra.mxu0 0.0
  %1683 = vmatprep.subr.mxu0 0.0
  %1684 = vmatpush1.msra.mxu0 0.0
  %1685 = vmatprep.subr.mxu0 0.0
  %1686 = vmatpush1.msra.mxu0 0.0
  %1687 = vmatprep.subr.mxu0 0.0
  %1688 = vmatpush1.msra.mxu0 0.0
  %1689 = vmatprep.subr.mxu0 0.0
  %1690 = vmatpush1.msra.mxu0 0.0
  %1691 = vmatprep.subr.mxu0 0.0
  %1692 = vmatpush1.msra.mxu0 0.0
  %1693 = vmatprep.subr.mxu0 0.0
  %1694 = vmatpush1.msra.mxu0 0.0
  %1695 = vmatprep.subr.mxu0 0.0
  %1696 = vmatpush1.msra.mxu0 0.0
  %1697 = vmatprep.subr.mxu0 0.0
  %1698 = vmatpush1.msra.mxu0 0.0
  %1699 = vmatprep.subr.mxu0 0.0
  %1700 = vmatpush1.msra.mxu0 0.0
  %1701 = vmatprep.subr.mxu0 0.0
  %1702 = vmatpush1.msra.mxu0 0.0
  %1703 = vmatprep.subr.mxu0 0.0
  %1704 = vmatpush1.msra.mxu0 0.0
  %1705 = vmatprep.subr.mxu0 0.0
  %1706 = vmatpush1.msra.mxu0 0.0
  %1707 = vmatprep.subr.mxu0 0.0
  %1708 = vmatpush1.msra.mxu0 0.0
  %1709 = vmatprep.subr.mxu0 0.0
  %1710 = vmatpush1.msra.mxu0 0.0
  %1711 = vmatprep.subr.mxu0 0.0
  %1712 = vmatpush1.msra.mxu0 0.0
  %1713 = vmatprep.subr.mxu0 0.0
  %1714 = vmatpush1.msra.mxu0 0.0
  %1715 = vmatprep.subr.mxu0 0.0
  %1716 = vmatpush1.msra.mxu0 0.0
  %1717 = vmatprep.subr.mxu0 0.0
  %1718 = vmatpush1.msra.mxu0 0.0
  %1719 = vmatprep.subr.mxu0 0.0
  %1720 = vmatpush1.msra.mxu0 0.0
  %1721 = vmatprep.subr.mxu0 0.0
  %1722 = vmatpush1.msra.mxu0 0.0
  %1723 = vmatprep.mubr.f32.mxu0 0.0
  %1724 = vmatmul.mubr.f32.gmra.mrb[0].mxu0 %v1657
  %v1725 = vpop.f32.mrb[0].mxu0
  %v1726 = vadd.f32 0.0, %v1725
  %v1727 = vpop.f32.mrb[0].mxu0
  %1728 = vdwg.mxu0
  %v1729 = vadd.f32 %v1653, %v1726
  %v1730 = vxor.u32 %v1729, 2147483648
  %v1731 = vmul.f32 %v1730, 1.442695
  %v1732 = vpow.pop %v1731
  %v1733 = vadd.f32 %v1732, 1.0
  %v1734 = vrcp.pop %v1733
  %v1735 = vmul.f32 1.0, %v1734
  %v1736 = vtanh.pop %v1729
  %v1737 = vmul.f32 %v1735, %v1646
  %1739 = vrot.lane.b32.xlu0 %v1736, 64
  %v1740 = vpop.permute.xlu0 %1739
  %v1742 = vmul.f32 %v1735, %v1740
  %1744 = vrot.lane.b32.xlu0 %v1742, 32
  %v1745 = vpop.permute.xlu0 %1744
  %v1747 = vadd.f32 %v1737, %v1745
  %v1748 = vtanh.pop %v1747
  %1750 = vrot.lane.b32.xlu0 %v1748, 64
  %v1751 = vpop.permute.xlu0 %1750
  %v1753 = vmul.f32 %v1735, %v1751
  %v1754 = vld [vmem:[%s759] sm:$0xff]
  %1756 = vrot.lane.b32.xlu0 %v1753, 32
  %v1757 = vpop.permute.xlu0 %1756
  %v1758 = vsel %vm328, %v1757, 0
  %1760 = vmatprep.subr.mxu0 0.0
  %1761 = vmatpush1.msra.mxu0 %v1352
  %1762 = vmatprep.subr.mxu0 0.0
  %1763 = vmatpush1.msra.mxu0 %v1353
  %1764 = vmatprep.subr.mxu0 0.0
  %1765 = vmatpush1.msra.mxu0 %v1354
  %1766 = vmatprep.subr.mxu0 0.0
  %1767 = vmatpush1.msra.mxu0 %v1355
  %1768 = vmatprep.subr.mxu0 0.0
  %1769 = vmatpush1.msra.mxu0 0.0
  %1770 = vmatprep.subr.mxu0 0.0
  %1771 = vmatpush1.msra.mxu0 0.0
  %1772 = vmatprep.subr.mxu0 0.0
  %1773 = vmatpush1.msra.mxu0 0.0
  %1774 = vmatprep.subr.mxu0 0.0
  %1775 = vmatpush1.msra.mxu0 0.0
  %1776 = vmatprep.subr.mxu0 0.0
  %1777 = vmatpush1.msra.mxu0 0.0
  %1778 = vmatprep.subr.mxu0 0.0
  %1779 = vmatpush1.msra.mxu0 0.0
  %1780 = vmatprep.subr.mxu0 0.0
  %1781 = vmatpush1.msra.mxu0 0.0
  %1782 = vmatprep.subr.mxu0 0.0
  %1783 = vmatpush1.msra.mxu0 0.0
  %1784 = vmatprep.subr.mxu0 0.0
  %1785 = vmatpush1.msra.mxu0 0.0
  %1786 = vmatprep.subr.mxu0 0.0
  %1787 = vmatpush1.msra.mxu0 0.0
  %1788 = vmatprep.subr.mxu0 0.0
  %1789 = vmatpush1.msra.mxu0 0.0
  %1790 = vmatprep.subr.mxu0 0.0
  %1791 = vmatpush1.msra.mxu0 0.0
  %1792 = vmatprep.subr.mxu0 0.0
  %1793 = vmatpush1.msra.mxu0 0.0
  %1794 = vmatprep.subr.mxu0 0.0
  %1795 = vmatpush1.msra.mxu0 0.0
  %1796 = vmatprep.subr.mxu0 0.0
  %1797 = vmatpush1.msra.mxu0 0.0
  %1798 = vmatprep.subr.mxu0 0.0
  %1799 = vmatpush1.msra.mxu0 0.0
  %1800 = vmatprep.subr.mxu0 0.0
  %1801 = vmatpush1.msra.mxu0 0.0
  %1802 = vmatprep.subr.mxu0 0.0
  %1803 = vmatpush1.msra.mxu0 0.0
  %1804 = vmatprep.subr.mxu0 0.0
  %1805 = vmatpush1.msra.mxu0 0.0
  %1806 = vmatprep.subr.mxu0 0.0
  %1807 = vmatpush1.msra.mxu0 0.0
  %1808 = vmatprep.subr.mxu0 0.0
  %1809 = vmatpush1.msra.mxu0 0.0
  %1810 = vmatprep.subr.mxu0 0.0
  %1811 = vmatpush1.msra.mxu0 0.0
  %1812 = vmatprep.subr.mxu0 0.0
  %1813 = vmatpush1.msra.mxu0 0.0
  %1814 = vmatprep.subr.mxu0 0.0
  %1815 = vmatpush1.msra.mxu0 0.0
  %1816 = vmatprep.subr.mxu0 0.0
  %1817 = vmatpush1.msra.mxu0 0.0
  %1818 = vmatprep.subr.mxu0 0.0
  %1819 = vmatpush1.msra.mxu0 0.0
  %1820 = vmatprep.subr.mxu0 0.0
  %1821 = vmatpush1.msra.mxu0 0.0
  %1822 = vmatprep.subr.mxu0 0.0
  %1823 = vmatpush1.msra.mxu0 0.0
  %1824 = vmatprep.mubr.f32.mxu0 0.0
  %1825 = vmatmul.mubr.f32.gmra.mrb[0].mxu0 %v1758
  %v1826 = vpop.f32.mrb[0].mxu0
  %v1827 = vadd.f32 0.0, %v1826
  %v1828 = vpop.f32.mrb[0].mxu0
  %1829 = vdwg.mxu0
  %v1830 = vadd.f32 %v1754, %v1827
  %v1831 = vxor.u32 %v1830, 2147483648
  %v1832 = vmul.f32 %v1831, 1.442695
  %v1833 = vpow.pop %v1832
  %v1834 = vadd.f32 %v1833, 1.0
  %v1835 = vrcp.pop %v1834
  %v1836 = vmul.f32 1.0, %v1835
  %v1837 = vtanh.pop %v1830
  %v1838 = vmul.f32 %v1836, %v1747
  %1840 = vrot.lane.b32.xlu0 %v1837, 64
  %v1841 = vpop.permute.xlu0 %1840
  %v1843 = vmul.f32 %v1836, %v1841
  %1845 = vrot.lane.b32.xlu0 %v1843, 32
  %v1846 = vpop.permute.xlu0 %1845
  %v1848 = vadd.f32 %v1838, %v1846
  %v1849 = vtanh.pop %v1848
  %1851 = vrot.lane.b32.xlu0 %v1849, 64
  %v1852 = vpop.permute.xlu0 %1851
  %v1854 = vmul.f32 %v1836, %v1852
  %v1855 = vld [vmem:[%s868] sm:$0xff]
  %1857 = vrot.lane.b32.xlu0 %v1854, 32
  %v1858 = vpop.permute.xlu0 %1857
  %v1859 = vsel %vm328, %v1858, 0
  %1861 = vmatprep.subr.mxu0 0.0
  %1862 = vmatpush1.msra.mxu0 %v1352
  %1863 = vmatprep.subr.mxu0 0.0
  %1864 = vmatpush1.msra.mxu0 %v1353
  %1865 = vmatprep.subr.mxu0 0.0
  %1866 = vmatpush1.msra.mxu0 %v1354
  %1867 = vmatprep.subr.mxu0 0.0
  %1868 = vmatpush1.msra.mxu0 %v1355
  %1869 = vmatprep.subr.mxu0 0.0
  %1870 = vmatpush1.msra.mxu0 0.0
  %1871 = vmatprep.subr.mxu0 0.0
  %1872 = vmatpush1.msra.mxu0 0.0
  %1873 = vmatprep.subr.mxu0 0.0
  %1874 = vmatpush1.msra.mxu0 0.0
  %1875 = vmatprep.subr.mxu0 0.0
  %1876 = vmatpush1.msra.mxu0 0.0
  %1877 = vmatprep.subr.mxu0 0.0
  %1878 = vmatpush1.msra.mxu0 0.0
  %1879 = vmatprep.subr.mxu0 0.0
  %1880 = vmatpush1.msra.mxu0 0.0
  %1881 = vmatprep.subr.mxu0 0.0
  %1882 = vmatpush1.msra.mxu0 0.0
  %1883 = vmatprep.subr.mxu0 0.0
  %1884 = vmatpush1.msra.mxu0 0.0
  %1885 = vmatprep.subr.mxu0 0.0
  %1886 = vmatpush1.msra.mxu0 0.0
  %1887 = vmatprep.subr.mxu0 0.0
  %1888 = vmatpush1.msra.mxu0 0.0
  %1889 = vmatprep.subr.mxu0 0.0
  %1890 = vmatpush1.msra.mxu0 0.0
  %1891 = vmatprep.subr.mxu0 0.0
  %1892 = vmatpush1.msra.mxu0 0.0
  %1893 = vmatprep.subr.mxu0 0.0
  %1894 = vmatpush1.msra.mxu0 0.0
  %1895 = vmatprep.subr.mxu0 0.0
  %1896 = vmatpush1.msra.mxu0 0.0
  %1897 = vmatprep.subr.mxu0 0.0
  %1898 = vmatpush1.msra.mxu0 0.0
  %1899 = vmatprep.subr.mxu0 0.0
  %1900 = vmatpush1.msra.mxu0 0.0
  %1901 = vmatprep.subr.mxu0 0.0
  %1902 = vmatpush1.msra.mxu0 0.0
  %1903 = vmatprep.subr.mxu0 0.0
  %1904 = vmatpush1.msra.mxu0 0.0
  %1905 = vmatprep.subr.mxu0 0.0
  %1906 = vmatpush1.msra.mxu0 0.0
  %1907 = vmatprep.subr.mxu0 0.0
  %1908 = vmatpush1.msra.mxu0 0.0
  %1909 = vmatprep.subr.mxu0 0.0
  %1910 = vmatpush1.msra.mxu0 0.0
  %1911 = vmatprep.subr.mxu0 0.0
  %1912 = vmatpush1.msra.mxu0 0.0
  %1913 = vmatprep.subr.mxu0 0.0
  %1914 = vmatpush1.msra.mxu0 0.0
  %1915 = vmatprep.subr.mxu0 0.0
  %1916 = vmatpush1.msra.mxu0 0.0
  %1917 = vmatprep.subr.mxu0 0.0
  %1918 = vmatpush1.msra.mxu0 0.0
  %1919 = vmatprep.subr.mxu0 0.0
  %1920 = vmatpush1.msra.mxu0 0.0
  %1921 = vmatprep.subr.mxu0 0.0
  %1922 = vmatpush1.msra.mxu0 0.0
  %1923 = vmatprep.subr.mxu0 0.0
  %1924 = vmatpush1.msra.mxu0 0.0
  %1925 = vmatprep.mubr.f32.mxu0 0.0
  %1926 = vmatmul.mubr.f32.gmra.mrb[0].mxu0 %v1859
  %v1927 = vpop.f32.mrb[0].mxu0
  %v1928 = vadd.f32 0.0, %v1927
  %v1929 = vpop.f32.mrb[0].mxu0
  %1930 = vdwg.mxu0
  %v1931 = vadd.f32 %v1855, %v1928
  %v1932 = vxor.u32 %v1931, 2147483648
  %v1933 = vmul.f32 %v1932, 1.442695
  %v1934 = vpow.pop %v1933
  %v1935 = vadd.f32 %v1934, 1.0
  %v1936 = vrcp.pop %v1935
  %v1937 = vmul.f32 1.0, %v1936
  %v1938 = vtanh.pop %v1931
  %v1939 = vmul.f32 %v1937, %v1848
  %1941 = vrot.lane.b32.xlu0 %v1938, 64
  %v1942 = vpop.permute.xlu0 %1941
  %v1944 = vmul.f32 %v1937, %v1942
  %1946 = vrot.lane.b32.xlu0 %v1944, 32
  %v1947 = vpop.permute.xlu0 %1946
  %v1949 = vadd.f32 %v1939, %v1947
  %v1950 = vtanh.pop %v1949
  %1952 = vrot.lane.b32.xlu0 %v1950, 64
  %v1953 = vpop.permute.xlu0 %1952
  %v1955 = vmul.f32 %v1937, %v1953
  %v1956 = vld [vmem:[%s977] sm:$0xff]
  %1958 = vrot.lane.b32.xlu0 %v1955, 32
  %v1959 = vpop.permute.xlu0 %1958
  %v1960 = vsel %vm328, %v1959, 0
  %1962 = vmatprep.subr.mxu0 0.0
  %1963 = vmatpush1.msra.mxu0 %v1352
  %1964 = vmatprep.subr.mxu0 0.0
  %1965 = vmatpush1.msra.mxu0 %v1353
  %1966 = vmatprep.subr.mxu0 0.0
  %1967 = vmatpush1.msra.mxu0 %v1354
  %1968 = vmatprep.subr.mxu0 0.0
  %1969 = vmatpush1.msra.mxu0 %v1355
  %1970 = vmatprep.subr.mxu0 0.0
  %1971 = vmatpush1.msra.mxu0 0.0
  %1972 = vmatprep.subr.mxu0 0.0
  %1973 = vmatpush1.msra.mxu0 0.0
  %1974 = vmatprep.subr.mxu0 0.0
  %1975 = vmatpush1.msra.mxu0 0.0
  %1976 = vmatprep.subr.mxu0 0.0
  %1977 = vmatpush1.msra.mxu0 0.0
  %1978 = vmatprep.subr.mxu0 0.0
  %1979 = vmatpush1.msra.mxu0 0.0
  %1980 = vmatprep.subr.mxu0 0.0
  %1981 = vmatpush1.msra.mxu0 0.0
  %1982 = vmatprep.subr.mxu0 0.0
  %1983 = vmatpush1.msra.mxu0 0.0
  %1984 = vmatprep.subr.mxu0 0.0
  %1985 = vmatpush1.msra.mxu0 0.0
  %1986 = vmatprep.subr.mxu0 0.0
  %1987 = vmatpush1.msra.mxu0 0.0
  %1988 = vmatprep.subr.mxu0 0.0
  %1989 = vmatpush1.msra.mxu0 0.0
  %1990 = vmatprep.subr.mxu0 0.0
  %1991 = vmatpush1.msra.mxu0 0.0
  %1992 = vmatprep.subr.mxu0 0.0
  %1993 = vmatpush1.msra.mxu0 0.0
  %1994 = vmatprep.subr.mxu0 0.0
  %1995 = vmatpush1.msra.mxu0 0.0
  %1996 = vmatprep.subr.mxu0 0.0
  %1997 = vmatpush1.msra.mxu0 0.0
  %1998 = vmatprep.subr.mxu0 0.0
  %1999 = vmatpush1.msra.mxu0 0.0
  %2000 = vmatprep.subr.mxu0 0.0
  %2001 = vmatpush1.msra.mxu0 0.0
  %2002 = vmatprep.subr.mxu0 0.0
  %2003 = vmatpush1.msra.mxu0 0.0
  %2004 = vmatprep.subr.mxu0 0.0
  %2005 = vmatpush1.msra.mxu0 0.0
  %2006 = vmatprep.subr.mxu0 0.0
  %2007 = vmatpush1.msra.mxu0 0.0
  %2008 = vmatprep.subr.mxu0 0.0
  %2009 = vmatpush1.msra.mxu0 0.0
  %2010 = vmatprep.subr.mxu0 0.0
  %2011 = vmatpush1.msra.mxu0 0.0
  %2012 = vmatprep.subr.mxu0 0.0
  %2013 = vmatpush1.msra.mxu0 0.0
  %2014 = vmatprep.subr.mxu0 0.0
  %2015 = vmatpush1.msra.mxu0 0.0
  %2016 = vmatprep.subr.mxu0 0.0
  %2017 = vmatpush1.msra.mxu0 0.0
  %2018 = vmatprep.subr.mxu0 0.0
  %2019 = vmatpush1.msra.mxu0 0.0
  %2020 = vmatprep.subr.mxu0 0.0
  %2021 = vmatpush1.msra.mxu0 0.0
  %2022 = vmatprep.subr.mxu0 0.0
  %2023 = vmatpush1.msra.mxu0 0.0
  %2024 = vmatprep.subr.mxu0 0.0
  %2025 = vmatpush1.msra.mxu0 0.0
  %2026 = vmatprep.mubr.f32.mxu0 0.0
  %2027 = vmatmul.mubr.f32.gmra.mrb[0].mxu0 %v1960
  %v2028 = vpop.f32.mrb[0].mxu0
  %v2029 = vadd.f32 0.0, %v2028
  %v2030 = vpop.f32.mrb[0].mxu0
  %2031 = vdwg.mxu0
  %v2032 = vadd.f32 %v1956, %v2029
  %v2033 = vxor.u32 %v2032, 2147483648
  %v2034 = vmul.f32 %v2033, 1.442695
  %v2035 = vpow.pop %v2034
  %v2036 = vadd.f32 %v2035, 1.0
  %v2037 = vrcp.pop %v2036
  %v2038 = vmul.f32 1.0, %v2037
  %v2039 = vtanh.pop %v2032
  %v2040 = vmul.f32 %v2038, %v1949
  %2042 = vrot.lane.b32.xlu0 %v2039, 64
  %v2043 = vpop.permute.xlu0 %2042
  %v2045 = vmul.f32 %v2038, %v2043
  %2047 = vrot.lane.b32.xlu0 %v2045, 32
  %v2048 = vpop.permute.xlu0 %2047
  %v2050 = vadd.f32 %v2040, %v2048
  %v2051 = vtanh.pop %v2050
  %2053 = vrot.lane.b32.xlu0 %v2051, 64
  %v2054 = vpop.permute.xlu0 %2053
  %v2056 = vmul.f32 %v2038, %v2054
  %v2057 = vld [vmem:[%s1086] sm:$0xff]
  %2059 = vrot.lane.b32.xlu0 %v2056, 32
  %v2060 = vpop.permute.xlu0 %2059
  %v2061 = vsel %vm328, %v2060, 0
  %2063 = vmatprep.subr.mxu0 0.0
  %2064 = vmatpush1.msra.mxu0 %v1352
  %2065 = vmatprep.subr.mxu0 0.0
  %2066 = vmatpush1.msra.mxu0 %v1353
  %2067 = vmatprep.subr.mxu0 0.0
  %2068 = vmatpush1.msra.mxu0 %v1354
  %2069 = vmatprep.subr.mxu0 0.0
  %2070 = vmatpush1.msra.mxu0 %v1355
  %2071 = vmatprep.subr.mxu0 0.0
  %2072 = vmatpush1.msra.mxu0 0.0
  %2073 = vmatprep.subr.mxu0 0.0
  %2074 = vmatpush1.msra.mxu0 0.0
  %2075 = vmatprep.subr.mxu0 0.0
  %2076 = vmatpush1.msra.mxu0 0.0
  %2077 = vmatprep.subr.mxu0 0.0
  %2078 = vmatpush1.msra.mxu0 0.0
  %2079 = vmatprep.subr.mxu0 0.0
  %2080 = vmatpush1.msra.mxu0 0.0
  %2081 = vmatprep.subr.mxu0 0.0
  %2082 = vmatpush1.msra.mxu0 0.0
  %2083 = vmatprep.subr.mxu0 0.0
  %2084 = vmatpush1.msra.mxu0 0.0
  %2085 = vmatprep.subr.mxu0 0.0
  %2086 = vmatpush1.msra.mxu0 0.0
  %2087 = vmatprep.subr.mxu0 0.0
  %2088 = vmatpush1.msra.mxu0 0.0
  %2089 = vmatprep.subr.mxu0 0.0
  %2090 = vmatpush1.msra.mxu0 0.0
  %2091 = vmatprep.subr.mxu0 0.0
  %2092 = vmatpush1.msra.mxu0 0.0
  %2093 = vmatprep.subr.mxu0 0.0
  %2094 = vmatpush1.msra.mxu0 0.0
  %2095 = vmatprep.subr.mxu0 0.0
  %2096 = vmatpush1.msra.mxu0 0.0
  %2097 = vmatprep.subr.mxu0 0.0
  %2098 = vmatpush1.msra.mxu0 0.0
  %2099 = vmatprep.subr.mxu0 0.0
  %2100 = vmatpush1.msra.mxu0 0.0
  %2101 = vmatprep.subr.mxu0 0.0
  %2102 = vmatpush1.msra.mxu0 0.0
  %2103 = vmatprep.subr.mxu0 0.0
  %2104 = vmatpush1.msra.mxu0 0.0
  %2105 = vmatprep.subr.mxu0 0.0
  %2106 = vmatpush1.msra.mxu0 0.0
  %2107 = vmatprep.subr.mxu0 0.0
  %2108 = vmatpush1.msra.mxu0 0.0
  %2109 = vmatprep.subr.mxu0 0.0
  %2110 = vmatpush1.msra.mxu0 0.0
  %2111 = vmatprep.subr.mxu0 0.0
  %2112 = vmatpush1.msra.mxu0 0.0
  %2113 = vmatprep.subr.mxu0 0.0
  %2114 = vmatpush1.msra.mxu0 0.0
  %2115 = vmatprep.subr.mxu0 0.0
  %2116 = vmatpush1.msra.mxu0 0.0
  %2117 = vmatprep.subr.mxu0 0.0
  %2118 = vmatpush1.msra.mxu0 0.0
  %2119 = vmatprep.subr.mxu0 0.0
  %2120 = vmatpush1.msra.mxu0 0.0
  %2121 = vmatprep.subr.mxu0 0.0
  %2122 = vmatpush1.msra.mxu0 0.0
  %2123 = vmatprep.subr.mxu0 0.0
  %2124 = vmatpush1.msra.mxu0 0.0
  %2125 = vmatprep.subr.mxu0 0.0
  %2126 = vmatpush1.msra.mxu0 0.0
  %2127 = vmatprep.mubr.f32.mxu0 0.0
  %2128 = vmatmul.mubr.f32.gmra.mrb[0].mxu0 %v2061
  %v2129 = vpop.f32.mrb[0].mxu0
  %v2130 = vadd.f32 0.0, %v2129
  %v2131 = vpop.f32.mrb[0].mxu0
  %2132 = vdwg.mxu0
  %v2133 = vadd.f32 %v2057, %v2130
  %v2134 = vxor.u32 %v2133, 2147483648
  %v2135 = vmul.f32 %v2134, 1.442695
  %v2136 = vpow.pop %v2135
  %v2137 = vadd.f32 %v2136, 1.0
  %v2138 = vrcp.pop %v2137
  %v2139 = vmul.f32 1.0, %v2138
  %v2140 = vtanh.pop %v2133
  %v2141 = vmul.f32 %v2139, %v2050
  %2143 = vrot.lane.b32.xlu0 %v2140, 64
  %v2144 = vpop.permute.xlu0 %2143
  %v2146 = vmul.f32 %v2139, %v2144
  %2148 = vrot.lane.b32.xlu0 %v2146, 32
  %v2149 = vpop.permute.xlu0 %2148
  %v2151 = vadd.f32 %v2141, %v2149
  %v2152 = vtanh.pop %v2151
  %2154 = vrot.lane.b32.xlu0 %v2152, 64
  %v2155 = vpop.permute.xlu0 %2154
  %v2157 = vmul.f32 %v2139, %v2155
  %v2158 = vld [vmem:[%s7] sm:$0xff]
  %v2159 = vld [vmem:[%s7 + $0x8] sm:$0xff]
  %v2160 = vld [vmem:[%s7 + $0x10] sm:$0xff]
  %v2161 = vld [vmem:[%s7 + $0x18] sm:$0xff]
  %v2162 = vld [vmem:[%s8] sm:$0x1]
  %v2164 = vlaneseq
  %v2165 = vshrl.u32 %v2164, 7
  %v2166 = vsub.s32 0, %v2165
  %v2167 = vrot.slane %v2162, %v2166
  %2170 = vrot.lane.b32.xlu0 %v2157, 32
  %v2171 = vpop.permute.xlu0 %2170
  %v2172 = vsel %vm328, %v2171, 0
  %2174 = vmatprep.subr.mxu0 0.0
  %2175 = vmatpush1.msra.mxu0 %v2158
  %2176 = vmatprep.subr.mxu0 0.0
  %2177 = vmatpush1.msra.mxu0 %v2159
  %2178 = vmatprep.subr.mxu0 0.0
  %2179 = vmatpush1.msra.mxu0 %v2160
  %2180 = vmatprep.subr.mxu0 0.0
  %2181 = vmatpush1.msra.mxu0 %v2161
  %2182 = vmatprep.subr.mxu0 0.0
  %2183 = vmatpush1.msra.mxu0 0.0
  %2184 = vmatprep.subr.mxu0 0.0
  %2185 = vmatpush1.msra.mxu0 0.0
  %2186 = vmatprep.subr.mxu0 0.0
  %2187 = vmatpush1.msra.mxu0 0.0
  %2188 = vmatprep.subr.mxu0 0.0
  %2189 = vmatpush1.msra.mxu0 0.0
  %2190 = vmatprep.subr.mxu0 0.0
  %2191 = vmatpush1.msra.mxu0 0.0
  %2192 = vmatprep.subr.mxu0 0.0
  %2193 = vmatpush1.msra.mxu0 0.0
  %2194 = vmatprep.subr.mxu0 0.0
  %2195 = vmatpush1.msra.mxu0 0.0
  %2196 = vmatprep.subr.mxu0 0.0
  %2197 = vmatpush1.msra.mxu0 0.0
  %2198 = vmatprep.subr.mxu0 0.0
  %2199 = vmatpush1.msra.mxu0 0.0
  %2200 = vmatprep.subr.mxu0 0.0
  %2201 = vmatpush1.msra.mxu0 0.0
  %2202 = vmatprep.subr.mxu0 0.0
  %2203 = vmatpush1.msra.mxu0 0.0
  %2204 = vmatprep.subr.mxu0 0.0
  %2205 = vmatpush1.msra.mxu0 0.0
  %2206 = vmatprep.subr.mxu0 0.0
  %2207 = vmatpush1.msra.mxu0 0.0
  %2208 = vmatprep.subr.mxu0 0.0
  %2209 = vmatpush1.msra.mxu0 0.0
  %2210 = vmatprep.subr.mxu0 0.0
  %2211 = vmatpush1.msra.mxu0 0.0
  %2212 = vmatprep.subr.mxu0 0.0
  %2213 = vmatpush1.msra.mxu0 0.0
  %2214 = vmatprep.subr.mxu0 0.0
  %2215 = vmatpush1.msra.mxu0 0.0
  %2216 = vmatprep.subr.mxu0 0.0
  %2217 = vmatpush1.msra.mxu0 0.0
  %2218 = vmatprep.subr.mxu0 0.0
  %2219 = vmatpush1.msra.mxu0 0.0
  %2220 = vmatprep.subr.mxu0 0.0
  %2221 = vmatpush1.msra.mxu0 0.0
  %2222 = vmatprep.subr.mxu0 0.0
  %2223 = vmatpush1.msra.mxu0 0.0
  %2224 = vmatprep.subr.mxu0 0.0
  %2225 = vmatpush1.msra.mxu0 0.0
  %2226 = vmatprep.subr.mxu0 0.0
  %2227 = vmatpush1.msra.mxu0 0.0
  %2228 = vmatprep.subr.mxu0 0.0
  %2229 = vmatpush1.msra.mxu0 0.0
  %2230 = vmatprep.subr.mxu0 0.0
  %2231 = vmatpush1.msra.mxu0 0.0
  %2232 = vmatprep.subr.mxu0 0.0
  %2233 = vmatpush1.msra.mxu0 0.0
  %2234 = vmatprep.subr.mxu0 0.0
  %2235 = vmatpush1.msra.mxu0 0.0
  %2236 = vmatprep.subr.mxu0 0.0
  %2237 = vmatpush1.msra.mxu0 0.0
  %2238 = vmatprep.mubr.f32.mxu0 0.0
  %2239 = vmatmul.mubr.f32.gmra.mrb[0].mxu0 %v2172
  %v2240 = vpop.f32.mrb[0].mxu0
  %v2241 = vadd.f32 %v2167, %v2240
  %v2242 = vpop.f32.mrb[0].mxu0
  %2243 = vdwg.mxu0
  %vm2244 = vcmask 31744
  %2245 = vst.msk [vmem:[%s9] sm:$0xff] %vm2244, %v2241
  // Predicated region
  $region38: #{prediction_model_forward.1} parent=0 // pred_check
    _
  $region39: #{prediction_model_forward.1} parent=0 // pred_check_branch
    %2247 = sbr.rel (0) target = $region41
  $region40: #{prediction_model_forward.1} parent=0 // pred_region
    _
  $region41: #{prediction_model_forward.1} parent=0 // pred_fallthru
    _
  // Predicated region
  $region42: #{prediction_model_forward.1} parent=0 // pred_check
    _
  $region43: #{prediction_model_forward.1} parent=0 // pred_check_branch
    %2249 = sbr.rel (0) target = $region45
  $region44: #{prediction_model_forward.1} parent=0 // pred_region
    _
  $region45: #{prediction_model_forward.1} parent=0 // pred_fallthru
    _

</llo_original>
